<compile_context>
chip_gen: v7x
topology: tpu7x:2x2x1
jax: 0.10.0
libtpu: 0.0.40
codegen_flags: <defaults>
</compile_context>

<pallas_src>
import functools

import jax
import jax.numpy as jnp
from jax.experimental import pallas as pl
from jax.experimental.pallas import tpu as pltpu


def _round_up(n: int, m: int) -> int:
    return ((n + m - 1) // m) * m


def _pad_rows(w, rows: int):
    r, c = w.shape
    if r == rows:
        return w
    return jnp.zeros((rows, c), w.dtype).at[:r, :].set(w)


def _pad_gate_cols(w, H: int, HP: int):
    """(rows, 4H) -> (rows, 4HP); each gate block goes to the low H lanes of its
    128-lane group, padded lanes are exact zeros."""
    if H == HP:
        return w
    rows = w.shape[0]
    out = jnp.zeros((rows, 4 * HP), w.dtype)
    for g in range(4):
        out = out.at[:, g * HP:g * HP + H].set(w[:, g * H:(g + 1) * H])
    return out


def _make_lstm_kernel(num_layers: int, seq_len: int, hp: int):
    """Kernel body: whole sequence processed in one invocation."""

    def kernel(x_ref, *refs):
        # refs layout:
        #   per layer l: w_ih_T (in_pad_l, 4HP), w_hh_T (HP, 4HP), bias (1, 4HP)
        #   then: fc_w_T (HP, CP), fc_b (1, CP), out_ref (B, CP)
        layer_refs = refs[: 3 * num_layers]
        fc_w_ref, fc_b_ref, out_ref = refs[3 * num_layers:]

        B = x_ref.shape[1]
        HP = hp

        # Load grid-invariant weights once; they stay live across the time loop.
        ws = [
            (layer_refs[3 * l][...], layer_refs[3 * l + 1][...], layer_refs[3 * l + 2][...])
            for l in range(num_layers)
        ]

        def step(t, carry):
            hs, cs = carry                      # tuples of (B, HP) register-carried state
            inp = x_ref[t]                      # (B, I) current timestep
            new_hs, new_cs = [], []
            for l in range(num_layers):
                w_ih, w_hh, b = ws[l]
                h_prev, c_prev = hs[l], cs[l]
                gates = (
                    jnp.dot(inp, w_ih, preferred_element_type=jnp.float32)
                    + jnp.dot(h_prev, w_hh, preferred_element_type=jnp.float32)
                    + b
                )                               # (B, 4HP), lane-group aligned gates
                i_g = jax.nn.sigmoid(gates[:, 0:HP])
                f_g = jax.nn.sigmoid(gates[:, HP:2 * HP])
                g_g = jnp.tanh(gates[:, 2 * HP:3 * HP])
                o_g = jax.nn.sigmoid(gates[:, 3 * HP:4 * HP])
                c_new = f_g * c_prev + i_g * g_g
                h_new = o_g * jnp.tanh(c_new)
                new_hs.append(h_new)
                new_cs.append(c_new)
                inp = h_new                     # feed next layer
            return tuple(new_hs), tuple(new_cs)

        zeros = tuple(jnp.zeros((B, HP), jnp.float32) for _ in range(num_layers))
        hs, _ = jax.lax.fori_loop(0, seq_len, step, (zeros, zeros), unroll=True)

        last = hs[-1]                           # last layer, last timestep
        out_ref[...] = (
            jnp.dot(last, fc_w_ref[...], preferred_element_type=jnp.float32)
            + fc_b_ref[...]
        ).astype(out_ref.dtype)

    return kernel


def stock_model_lstm_forward(x, params, *, hidden_size, num_layers, num_classes):
    """x: (B, T, I) float32 (PyTorch batch_first convention).

    params: per layer l: 'w_ih_l{l}': (4H, in_l), 'w_hh_l{l}': (4H, H),
            'b_ih_l{l}': (4H,), 'b_hh_l{l}': (4H,); plus 'fc_w': (C, H), 'fc_b': (C,)
    Returns: (B, C) float32
    """
    B, T, I = x.shape
    H, L, C = hidden_size, num_layers, num_classes
    HP = _round_up(H, 128)      # lane-aligned per-gate width
    CP = _round_up(C, 128)      # lane-dense output width

    # Time-major layout for the in-kernel recurrence.
    x_tm = jnp.transpose(x, (1, 0, 2)).astype(jnp.float32)  # (T, B, I)

    inputs = [x_tm]
    for l in range(L):
        in_lp = I if l == 0 else HP
        w_ih = jnp.transpose(params[f"w_ih_l{l}"]).astype(jnp.float32)   # (in_l, 4H)
        w_hh = jnp.transpose(params[f"w_hh_l{l}"]).astype(jnp.float32)   # (H, 4H)
        bias = (params[f"b_ih_l{l}"] + params[f"b_hh_l{l}"]).astype(jnp.float32)  # (4H,)

        inputs += [
            _pad_gate_cols(_pad_rows(w_ih, in_lp), H, HP),   # (in_pad_l, 4HP)
            _pad_gate_cols(_pad_rows(w_hh, HP), H, HP),      # (HP, 4HP)
            _pad_gate_cols(bias.reshape(1, 4 * H), H, HP),   # (1, 4HP)
        ]

    fc_w = jnp.transpose(params["fc_w"]).astype(jnp.float32)            # (H, C)
    fc_w_p = jnp.zeros((HP, CP), jnp.float32).at[:H, :C].set(fc_w)
    fc_b_p = jnp.zeros((1, CP), jnp.float32).at[0, :C].set(params["fc_b"].astype(jnp.float32))
    inputs += [fc_w_p, fc_b_p]

    kernel = _make_lstm_kernel(L, T, HP)

    vmem_spec = pl.BlockSpec(memory_space=pltpu.MemorySpace.VMEM)
    out = pl.pallas_call(
        kernel,
        out_shape=jax.ShapeDtypeStruct((B, CP), jnp.float32),
        in_specs=[vmem_spec] * len(inputs),
        out_specs=vmem_spec,
    )(*inputs)
    return out[:, :C]


def _init_params(key, input_size, hidden_size, num_layers, num_classes):
    """Deterministic init mimicking PyTorch's U(-1/sqrt(H), 1/sqrt(H))."""
    H = hidden_size
    k = 1.0 / jnp.sqrt(jnp.float32(H))
    params = {}
    for l in range(num_layers):
        in_l = input_size if l == 0 else H
        key, k1, k2, k3, k4 = jax.random.split(key, 5)
        params[f"w_ih_l{l}"] = jax.random.uniform(k1, (4 * H, in_l), jnp.float32, -k, k)
        params[f"w_hh_l{l}"] = jax.random.uniform(k2, (4 * H, H), jnp.float32, -k, k)
        params[f"b_ih_l{l}"] = jax.random.uniform(k3, (4 * H,), jnp.float32, -k, k)
        params[f"b_hh_l{l}"] = jax.random.uniform(k4, (4 * H,), jnp.float32, -k, k)
    key, k5, k6 = jax.random.split(key, 3)
    kf = 1.0 / jnp.sqrt(jnp.float32(H))
    params["fc_w"] = jax.random.uniform(k5, (num_classes, H), jnp.float32, -kf, kf)
    params["fc_b"] = jax.random.uniform(k6, (num_classes,), jnp.float32, -kf, kf)
    return params


def _reference_forward(x, params, *, hidden_size, num_layers, num_classes):
    """Pure-JAX reference matching torch.nn.LSTM (batch_first) + Linear."""
    B, T, _ = x.shape
    H = hidden_size
    layer_in = x.astype(jnp.float32)
    for l in range(num_layers):
        w_ih = params[f"w_ih_l{l}"]
        w_hh = params[f"w_hh_l{l}"]
        b = params[f"b_ih_l{l}"] + params[f"b_hh_l{l}"]
        h = jnp.zeros((B, H), jnp.float32)
        c = jnp.zeros((B, H), jnp.float32)
        outs = []
        for t in range(T):
            g = layer_in[:, t, :] @ w_ih.T + h @ w_hh.T + b
            i_g = jax.nn.sigmoid(g[:, 0:H])
            f_g = jax.nn.sigmoid(g[:, H:2 * H])
            g_g = jnp.tanh(g[:, 2 * H:3 * H])
            o_g = jax.nn.sigmoid(g[:, 3 * H:4 * H])
            c = f_g * c + i_g * g_g
            h = o_g * jnp.tanh(c)
            outs.append(h)
        layer_in = jnp.stack(outs, axis=1)
    last = layer_in[:, -1, :]
    return last @ params["fc_w"].T + params["fc_b"]


if __name__ == "__main__":
    # Small shapes consistent with the module's forward: x is (B, T, input_size).
    B, T = 2, 8
    input_size, hidden_size, num_layers, num_classes = 4, 32, 2, 3

    key = jax.random.PRNGKey(0)
    key, xk = jax.random.split(key)
    x = jax.random.normal(xk, (B, T, input_size), dtype=jnp.float32)

    params = _init_params(key, input_size, hidden_size, num_layers, num_classes)

    fwd = jax.jit(functools.partial(
        stock_model_lstm_forward,
        hidden_size=hidden_size,
        num_layers=num_layers,
        num_classes=num_classes,
    ))
    out = jax.block_until_ready(fwd(x, params))

    ref = _reference_forward(
        x, params,
        hidden_size=hidden_size, num_layers=num_layers, num_classes=num_classes,
    )
    assert out.shape == (B, num_classes)
    assert jnp.allclose(out, ref, atol=1e-5, rtol=1e-5), (out, ref)

    print("KERNEL_OK")
</pallas_src>

<mosaic_0001>
module attributes {stable_mosaic.version = 11 : i64} {
  func.func @kernel(%arg0: memref<8x2x4xf32, #tpu.memory_space<vmem>>, %arg1: memref<4x512xf32, #tpu.memory_space<vmem>>, %arg2: memref<128x512xf32, #tpu.memory_space<vmem>>, %arg3: memref<1x512xf32, #tpu.memory_space<vmem>>, %arg4: memref<128x512xf32, #tpu.memory_space<vmem>>, %arg5: memref<128x512xf32, #tpu.memory_space<vmem>>, %arg6: memref<1x512xf32, #tpu.memory_space<vmem>>, %arg7: memref<128x128xf32, #tpu.memory_space<vmem>>, %arg8: memref<1x128xf32, #tpu.memory_space<vmem>>, %arg9: memref<2x128xf32, #tpu.memory_space<vmem>>) attributes {dimension_semantics = [], scalar_prefetch = 0 : i64, scratch_operands = 0 : i64, tpu.core_type = #tpu.core_type<tc>} {
    %c0 = arith.constant 0 : index
    %c0_0 = arith.constant 0 : index
    %0 = vector.load %arg1[%c0, %c0_0] : memref<4x512xf32, #tpu.memory_space<vmem>>, vector<4x512xf32>
    %c0_1 = arith.constant 0 : index
    %c0_2 = arith.constant 0 : index
    %1 = vector.load %arg2[%c0_1, %c0_2] : memref<128x512xf32, #tpu.memory_space<vmem>>, vector<128x512xf32>
    %c0_3 = arith.constant 0 : index
    %c0_4 = arith.constant 0 : index
    %2 = vector.load %arg3[%c0_3, %c0_4] : memref<1x512xf32, #tpu.memory_space<vmem>>, vector<1x512xf32>
    %c0_5 = arith.constant 0 : index
    %c0_6 = arith.constant 0 : index
    %3 = vector.load %arg4[%c0_5, %c0_6] : memref<128x512xf32, #tpu.memory_space<vmem>>, vector<128x512xf32>
    %c0_7 = arith.constant 0 : index
    %c0_8 = arith.constant 0 : index
    %4 = vector.load %arg5[%c0_7, %c0_8] : memref<128x512xf32, #tpu.memory_space<vmem>>, vector<128x512xf32>
    %c0_9 = arith.constant 0 : index
    %c0_10 = arith.constant 0 : index
    %5 = vector.load %arg6[%c0_9, %c0_10] : memref<1x512xf32, #tpu.memory_space<vmem>>, vector<1x512xf32>
    %cst = arith.constant 0.000000e+00 : f32
    %6 = vector.broadcast %cst : f32 to vector<2x128xf32>
    %cst_11 = arith.constant 0.000000e+00 : f32
    %7 = vector.broadcast %cst_11 : f32 to vector<2x128xf32>
    %c0_i32 = arith.constant 0 : i32
    %8 = arith.index_cast %c0_i32 : i32 to index
    %c0_12 = arith.constant 0 : index
    %c0_13 = arith.constant 0 : index
    %9 = vector.load %arg0[%8, %c0_12, %c0_13] : memref<8x2x4xf32, #tpu.memory_space<vmem>>, vector<1x2x4xf32>
    %10 = vector.shape_cast %9 : vector<1x2x4xf32> to vector<2x4xf32>
    %cst_14 = arith.constant dense<0.000000e+00> : vector<2x512xf32>
    %11 = tpu.matmul %10, %0, %cst_14 {dimension_numbers = #tpu.dot_dimension_numbers<[1], [0], [0], [1], [0, 0, 1, 1], [], []>} : vector<2x4xf32>, vector<4x512xf32>, vector<2x512xf32> -> vector<2x512xf32>
    %cst_15 = arith.constant dense<0.000000e+00> : vector<2x512xf32>
    %12 = tpu.matmul %6, %1, %cst_15 {dimension_numbers = #tpu.dot_dimension_numbers<[1], [0], [0], [1], [0, 0, 1, 1], [], []>} : vector<2x128xf32>, vector<128x512xf32>, vector<2x512xf32> -> vector<2x512xf32>
    %13 = arith.addf %11, %12 : vector<2x512xf32>
    %14 = vector.broadcast %2 : vector<1x512xf32> to vector<2x512xf32>
    %15 = arith.addf %13, %14 : vector<2x512xf32>
    %16 = vector.extract_strided_slice %15 {offsets = [0, 0], sizes = [2, 128], strides = [1, 1]} : vector<2x512xf32> to vector<2x128xf32>
    %17 = arith.negf %16 : vector<2x128xf32>
    %18 = math.exp %17 : vector<2x128xf32>
    %cst_16 = arith.constant 1.000000e+00 : f32
    %19 = vector.broadcast %cst_16 : f32 to vector<2x128xf32>
    %20 = arith.addf %19, %18 : vector<2x128xf32>
    %21 = arith.divf %19, %20 : vector<2x128xf32>
    %22 = vector.extract_strided_slice %15 {offsets = [0, 128], sizes = [2, 128], strides = [1, 1]} : vector<2x512xf32> to vector<2x128xf32>
    %23 = arith.negf %22 : vector<2x128xf32>
    %24 = math.exp %23 : vector<2x128xf32>
    %cst_17 = arith.constant 1.000000e+00 : f32
    %25 = vector.broadcast %cst_17 : f32 to vector<2x128xf32>
    %26 = arith.addf %25, %24 : vector<2x128xf32>
    %27 = arith.divf %25, %26 : vector<2x128xf32>
    %28 = vector.extract_strided_slice %15 {offsets = [0, 256], sizes = [2, 128], strides = [1, 1]} : vector<2x512xf32> to vector<2x128xf32>
    %29 = math.tanh %28 : vector<2x128xf32>
    %30 = vector.extract_strided_slice %15 {offsets = [0, 384], sizes = [2, 128], strides = [1, 1]} : vector<2x512xf32> to vector<2x128xf32>
    %31 = arith.negf %30 : vector<2x128xf32>
    %32 = math.exp %31 : vector<2x128xf32>
    %cst_18 = arith.constant 1.000000e+00 : f32
    %33 = vector.broadcast %cst_18 : f32 to vector<2x128xf32>
    %34 = arith.addf %33, %32 : vector<2x128xf32>
    %35 = arith.divf %33, %34 : vector<2x128xf32>
    %36 = arith.mulf %27, %6 : vector<2x128xf32>
    %37 = arith.mulf %21, %29 : vector<2x128xf32>
    %38 = arith.addf %36, %37 : vector<2x128xf32>
    %39 = math.tanh %38 : vector<2x128xf32>
    %40 = arith.mulf %35, %39 : vector<2x128xf32>
    %cst_19 = arith.constant dense<0.000000e+00> : vector<2x512xf32>
    %41 = tpu.matmul %40, %3, %cst_19 {dimension_numbers = #tpu.dot_dimension_numbers<[1], [0], [0], [1], [0, 0, 1, 1], [], []>} : vector<2x128xf32>, vector<128x512xf32>, vector<2x512xf32> -> vector<2x512xf32>
    %cst_20 = arith.constant dense<0.000000e+00> : vector<2x512xf32>
    %42 = tpu.matmul %7, %4, %cst_20 {dimension_numbers = #tpu.dot_dimension_numbers<[1], [0], [0], [1], [0, 0, 1, 1], [], []>} : vector<2x128xf32>, vector<128x512xf32>, vector<2x512xf32> -> vector<2x512xf32>
    %43 = arith.addf %41, %42 : vector<2x512xf32>
    %44 = vector.broadcast %5 : vector<1x512xf32> to vector<2x512xf32>
    %45 = arith.addf %43, %44 : vector<2x512xf32>
    %46 = vector.extract_strided_slice %45 {offsets = [0, 0], sizes = [2, 128], strides = [1, 1]} : vector<2x512xf32> to vector<2x128xf32>
    %47 = arith.negf %46 : vector<2x128xf32>
    %48 = math.exp %47 : vector<2x128xf32>
    %cst_21 = arith.constant 1.000000e+00 : f32
    %49 = vector.broadcast %cst_21 : f32 to vector<2x128xf32>
    %50 = arith.addf %49, %48 : vector<2x128xf32>
    %51 = arith.divf %49, %50 : vector<2x128xf32>
    %52 = vector.extract_strided_slice %45 {offsets = [0, 128], sizes = [2, 128], strides = [1, 1]} : vector<2x512xf32> to vector<2x128xf32>
    %53 = arith.negf %52 : vector<2x128xf32>
    %54 = math.exp %53 : vector<2x128xf32>
    %cst_22 = arith.constant 1.000000e+00 : f32
    %55 = vector.broadcast %cst_22 : f32 to vector<2x128xf32>
    %56 = arith.addf %55, %54 : vector<2x128xf32>
    %57 = arith.divf %55, %56 : vector<2x128xf32>
    %58 = vector.extract_strided_slice %45 {offsets = [0, 256], sizes = [2, 128], strides = [1, 1]} : vector<2x512xf32> to vector<2x128xf32>
    %59 = math.tanh %58 : vector<2x128xf32>
    %60 = vector.extract_strided_slice %45 {offsets = [0, 384], sizes = [2, 128], strides = [1, 1]} : vector<2x512xf32> to vector<2x128xf32>
    %61 = arith.negf %60 : vector<2x128xf32>
    %62 = math.exp %61 : vector<2x128xf32>
    %cst_23 = arith.constant 1.000000e+00 : f32
    %63 = vector.broadcast %cst_23 : f32 to vector<2x128xf32>
    %64 = arith.addf %63, %62 : vector<2x128xf32>
    %65 = arith.divf %63, %64 : vector<2x128xf32>
    %66 = arith.mulf %57, %7 : vector<2x128xf32>
    %67 = arith.mulf %51, %59 : vector<2x128xf32>
    %68 = arith.addf %66, %67 : vector<2x128xf32>
    %69 = math.tanh %68 : vector<2x128xf32>
    %70 = arith.mulf %65, %69 : vector<2x128xf32>
    %c1_i32 = arith.constant 1 : i32
    %71 = arith.index_cast %c1_i32 : i32 to index
    %c0_24 = arith.constant 0 : index
    %c0_25 = arith.constant 0 : index
    %72 = vector.load %arg0[%71, %c0_24, %c0_25] : memref<8x2x4xf32, #tpu.memory_space<vmem>>, vector<1x2x4xf32>
    %73 = vector.shape_cast %72 : vector<1x2x4xf32> to vector<2x4xf32>
    %cst_26 = arith.constant dense<0.000000e+00> : vector<2x512xf32>
    %74 = tpu.matmul %73, %0, %cst_26 {dimension_numbers = #tpu.dot_dimension_numbers<[1], [0], [0], [1], [0, 0, 1, 1], [], []>} : vector<2x4xf32>, vector<4x512xf32>, vector<2x512xf32> -> vector<2x512xf32>
    %cst_27 = arith.constant dense<0.000000e+00> : vector<2x512xf32>
    %75 = tpu.matmul %40, %1, %cst_27 {dimension_numbers = #tpu.dot_dimension_numbers<[1], [0], [0], [1], [0, 0, 1, 1], [], []>} : vector<2x128xf32>, vector<128x512xf32>, vector<2x512xf32> -> vector<2x512xf32>
    %76 = arith.addf %74, %75 : vector<2x512xf32>
    %77 = vector.broadcast %2 : vector<1x512xf32> to vector<2x512xf32>
    %78 = arith.addf %76, %77 : vector<2x512xf32>
    %79 = vector.extract_strided_slice %78 {offsets = [0, 0], sizes = [2, 128], strides = [1, 1]} : vector<2x512xf32> to vector<2x128xf32>
    %80 = arith.negf %79 : vector<2x128xf32>
    %81 = math.exp %80 : vector<2x128xf32>
    %cst_28 = arith.constant 1.000000e+00 : f32
    %82 = vector.broadcast %cst_28 : f32 to vector<2x128xf32>
    %83 = arith.addf %82, %81 : vector<2x128xf32>
    %84 = arith.divf %82, %83 : vector<2x128xf32>
    %85 = vector.extract_strided_slice %78 {offsets = [0, 128], sizes = [2, 128], strides = [1, 1]} : vector<2x512xf32> to vector<2x128xf32>
    %86 = arith.negf %85 : vector<2x128xf32>
    %87 = math.exp %86 : vector<2x128xf32>
    %cst_29 = arith.constant 1.000000e+00 : f32
    %88 = vector.broadcast %cst_29 : f32 to vector<2x128xf32>
    %89 = arith.addf %88, %87 : vector<2x128xf32>
    %90 = arith.divf %88, %89 : vector<2x128xf32>
    %91 = vector.extract_strided_slice %78 {offsets = [0, 256], sizes = [2, 128], strides = [1, 1]} : vector<2x512xf32> to vector<2x128xf32>
    %92 = math.tanh %91 : vector<2x128xf32>
    %93 = vector.extract_strided_slice %78 {offsets = [0, 384], sizes = [2, 128], strides = [1, 1]} : vector<2x512xf32> to vector<2x128xf32>
    %94 = arith.negf %93 : vector<2x128xf32>
    %95 = math.exp %94 : vector<2x128xf32>
    %cst_30 = arith.constant 1.000000e+00 : f32
    %96 = vector.broadcast %cst_30 : f32 to vector<2x128xf32>
    %97 = arith.addf %96, %95 : vector<2x128xf32>
    %98 = arith.divf %96, %97 : vector<2x128xf32>
    %99 = arith.mulf %90, %38 : vector<2x128xf32>
    %100 = arith.mulf %84, %92 : vector<2x128xf32>
    %101 = arith.addf %99, %100 : vector<2x128xf32>
    %102 = math.tanh %101 : vector<2x128xf32>
    %103 = arith.mulf %98, %102 : vector<2x128xf32>
    %cst_31 = arith.constant dense<0.000000e+00> : vector<2x512xf32>
    %104 = tpu.matmul %103, %3, %cst_31 {dimension_numbers = #tpu.dot_dimension_numbers<[1], [0], [0], [1], [0, 0, 1, 1], [], []>} : vector<2x128xf32>, vector<128x512xf32>, vector<2x512xf32> -> vector<2x512xf32>
    %cst_32 = arith.constant dense<0.000000e+00> : vector<2x512xf32>
    %105 = tpu.matmul %70, %4, %cst_32 {dimension_numbers = #tpu.dot_dimension_numbers<[1], [0], [0], [1], [0, 0, 1, 1], [], []>} : vector<2x128xf32>, vector<128x512xf32>, vector<2x512xf32> -> vector<2x512xf32>
    %106 = arith.addf %104, %105 : vector<2x512xf32>
    %107 = vector.broadcast %5 : vector<1x512xf32> to vector<2x512xf32>
    %108 = arith.addf %106, %107 : vector<2x512xf32>
    %109 = vector.extract_strided_slice %108 {offsets = [0, 0], sizes = [2, 128], strides = [1, 1]} : vector<2x512xf32> to vector<2x128xf32>
    %110 = arith.negf %109 : vector<2x128xf32>
    %111 = math.exp %110 : vector<2x128xf32>
    %cst_33 = arith.constant 1.000000e+00 : f32
    %112 = vector.broadcast %cst_33 : f32 to vector<2x128xf32>
    %113 = arith.addf %112, %111 : vector<2x128xf32>
    %114 = arith.divf %112, %113 : vector<2x128xf32>
    %115 = vector.extract_strided_slice %108 {offsets = [0, 128], sizes = [2, 128], strides = [1, 1]} : vector<2x512xf32> to vector<2x128xf32>
    %116 = arith.negf %115 : vector<2x128xf32>
    %117 = math.exp %116 : vector<2x128xf32>
    %cst_34 = arith.constant 1.000000e+00 : f32
    %118 = vector.broadcast %cst_34 : f32 to vector<2x128xf32>
    %119 = arith.addf %118, %117 : vector<2x128xf32>
    %120 = arith.divf %118, %119 : vector<2x128xf32>
    %121 = vector.extract_strided_slice %108 {offsets = [0, 256], sizes = [2, 128], strides = [1, 1]} : vector<2x512xf32> to vector<2x128xf32>
    %122 = math.tanh %121 : vector<2x128xf32>
    %123 = vector.extract_strided_slice %108 {offsets = [0, 384], sizes = [2, 128], strides = [1, 1]} : vector<2x512xf32> to vector<2x128xf32>
    %124 = arith.negf %123 : vector<2x128xf32>
    %125 = math.exp %124 : vector<2x128xf32>
    %cst_35 = arith.constant 1.000000e+00 : f32
    %126 = vector.broadcast %cst_35 : f32 to vector<2x128xf32>
    %127 = arith.addf %126, %125 : vector<2x128xf32>
    %128 = arith.divf %126, %127 : vector<2x128xf32>
    %129 = arith.mulf %120, %68 : vector<2x128xf32>
    %130 = arith.mulf %114, %122 : vector<2x128xf32>
    %131 = arith.addf %129, %130 : vector<2x128xf32>
    %132 = math.tanh %131 : vector<2x128xf32>
    %133 = arith.mulf %128, %132 : vector<2x128xf32>
    %c2_i32 = arith.constant 2 : i32
    %134 = arith.index_cast %c2_i32 : i32 to index
    %c0_36 = arith.constant 0 : index
    %c0_37 = arith.constant 0 : index
    %135 = vector.load %arg0[%134, %c0_36, %c0_37] : memref<8x2x4xf32, #tpu.memory_space<vmem>>, vector<1x2x4xf32>
    %136 = vector.shape_cast %135 : vector<1x2x4xf32> to vector<2x4xf32>
    %cst_38 = arith.constant dense<0.000000e+00> : vector<2x512xf32>
    %137 = tpu.matmul %136, %0, %cst_38 {dimension_numbers = #tpu.dot_dimension_numbers<[1], [0], [0], [1], [0, 0, 1, 1], [], []>} : vector<2x4xf32>, vector<4x512xf32>, vector<2x512xf32> -> vector<2x512xf32>
    %cst_39 = arith.constant dense<0.000000e+00> : vector<2x512xf32>
    %138 = tpu.matmul %103, %1, %cst_39 {dimension_numbers = #tpu.dot_dimension_numbers<[1], [0], [0], [1], [0, 0, 1, 1], [], []>} : vector<2x128xf32>, vector<128x512xf32>, vector<2x512xf32> -> vector<2x512xf32>
    %139 = arith.addf %137, %138 : vector<2x512xf32>
    %140 = vector.broadcast %2 : vector<1x512xf32> to vector<2x512xf32>
    %141 = arith.addf %139, %140 : vector<2x512xf32>
    %142 = vector.extract_strided_slice %141 {offsets = [0, 0], sizes = [2, 128], strides = [1, 1]} : vector<2x512xf32> to vector<2x128xf32>
    %143 = arith.negf %142 : vector<2x128xf32>
    %144 = math.exp %143 : vector<2x128xf32>
    %cst_40 = arith.constant 1.000000e+00 : f32
    %145 = vector.broadcast %cst_40 : f32 to vector<2x128xf32>
    %146 = arith.addf %145, %144 : vector<2x128xf32>
    %147 = arith.divf %145, %146 : vector<2x128xf32>
    %148 = vector.extract_strided_slice %141 {offsets = [0, 128], sizes = [2, 128], strides = [1, 1]} : vector<2x512xf32> to vector<2x128xf32>
    %149 = arith.negf %148 : vector<2x128xf32>
    %150 = math.exp %149 : vector<2x128xf32>
    %cst_41 = arith.constant 1.000000e+00 : f32
    %151 = vector.broadcast %cst_41 : f32 to vector<2x128xf32>
    %152 = arith.addf %151, %150 : vector<2x128xf32>
    %153 = arith.divf %151, %152 : vector<2x128xf32>
    %154 = vector.extract_strided_slice %141 {offsets = [0, 256], sizes = [2, 128], strides = [1, 1]} : vector<2x512xf32> to vector<2x128xf32>
    %155 = math.tanh %154 : vector<2x128xf32>
    %156 = vector.extract_strided_slice %141 {offsets = [0, 384], sizes = [2, 128], strides = [1, 1]} : vector<2x512xf32> to vector<2x128xf32>
    %157 = arith.negf %156 : vector<2x128xf32>
    %158 = math.exp %157 : vector<2x128xf32>
    %cst_42 = arith.constant 1.000000e+00 : f32
    %159 = vector.broadcast %cst_42 : f32 to vector<2x128xf32>
    %160 = arith.addf %159, %158 : vector<2x128xf32>
    %161 = arith.divf %159, %160 : vector<2x128xf32>
    %162 = arith.mulf %153, %101 : vector<2x128xf32>
    %163 = arith.mulf %147, %155 : vector<2x128xf32>
    %164 = arith.addf %162, %163 : vector<2x128xf32>
    %165 = math.tanh %164 : vector<2x128xf32>
    %166 = arith.mulf %161, %165 : vector<2x128xf32>
    %cst_43 = arith.constant dense<0.000000e+00> : vector<2x512xf32>
    %167 = tpu.matmul %166, %3, %cst_43 {dimension_numbers = #tpu.dot_dimension_numbers<[1], [0], [0], [1], [0, 0, 1, 1], [], []>} : vector<2x128xf32>, vector<128x512xf32>, vector<2x512xf32> -> vector<2x512xf32>
    %cst_44 = arith.constant dense<0.000000e+00> : vector<2x512xf32>
    %168 = tpu.matmul %133, %4, %cst_44 {dimension_numbers = #tpu.dot_dimension_numbers<[1], [0], [0], [1], [0, 0, 1, 1], [], []>} : vector<2x128xf32>, vector<128x512xf32>, vector<2x512xf32> -> vector<2x512xf32>
    %169 = arith.addf %167, %168 : vector<2x512xf32>
    %170 = vector.broadcast %5 : vector<1x512xf32> to vector<2x512xf32>
    %171 = arith.addf %169, %170 : vector<2x512xf32>
    %172 = vector.extract_strided_slice %171 {offsets = [0, 0], sizes = [2, 128], strides = [1, 1]} : vector<2x512xf32> to vector<2x128xf32>
    %173 = arith.negf %172 : vector<2x128xf32>
    %174 = math.exp %173 : vector<2x128xf32>
    %cst_45 = arith.constant 1.000000e+00 : f32
    %175 = vector.broadcast %cst_45 : f32 to vector<2x128xf32>
    %176 = arith.addf %175, %174 : vector<2x128xf32>
    %177 = arith.divf %175, %176 : vector<2x128xf32>
    %178 = vector.extract_strided_slice %171 {offsets = [0, 128], sizes = [2, 128], strides = [1, 1]} : vector<2x512xf32> to vector<2x128xf32>
    %179 = arith.negf %178 : vector<2x128xf32>
    %180 = math.exp %179 : vector<2x128xf32>
    %cst_46 = arith.constant 1.000000e+00 : f32
    %181 = vector.broadcast %cst_46 : f32 to vector<2x128xf32>
    %182 = arith.addf %181, %180 : vector<2x128xf32>
    %183 = arith.divf %181, %182 : vector<2x128xf32>
    %184 = vector.extract_strided_slice %171 {offsets = [0, 256], sizes = [2, 128], strides = [1, 1]} : vector<2x512xf32> to vector<2x128xf32>
    %185 = math.tanh %184 : vector<2x128xf32>
    %186 = vector.extract_strided_slice %171 {offsets = [0, 384], sizes = [2, 128], strides = [1, 1]} : vector<2x512xf32> to vector<2x128xf32>
    %187 = arith.negf %186 : vector<2x128xf32>
    %188 = math.exp %187 : vector<2x128xf32>
    %cst_47 = arith.constant 1.000000e+00 : f32
    %189 = vector.broadcast %cst_47 : f32 to vector<2x128xf32>
    %190 = arith.addf %189, %188 : vector<2x128xf32>
    %191 = arith.divf %189, %190 : vector<2x128xf32>
    %192 = arith.mulf %183, %131 : vector<2x128xf32>
    %193 = arith.mulf %177, %185 : vector<2x128xf32>
    %194 = arith.addf %192, %193 : vector<2x128xf32>
    %195 = math.tanh %194 : vector<2x128xf32>
    %196 = arith.mulf %191, %195 : vector<2x128xf32>
    %c3_i32 = arith.constant 3 : i32
    %197 = arith.index_cast %c3_i32 : i32 to index
    %c0_48 = arith.constant 0 : index
    %c0_49 = arith.constant 0 : index
    %198 = vector.load %arg0[%197, %c0_48, %c0_49] : memref<8x2x4xf32, #tpu.memory_space<vmem>>, vector<1x2x4xf32>
    %199 = vector.shape_cast %198 : vector<1x2x4xf32> to vector<2x4xf32>
    %cst_50 = arith.constant dense<0.000000e+00> : vector<2x512xf32>
    %200 = tpu.matmul %199, %0, %cst_50 {dimension_numbers = #tpu.dot_dimension_numbers<[1], [0], [0], [1], [0, 0, 1, 1], [], []>} : vector<2x4xf32>, vector<4x512xf32>, vector<2x512xf32> -> vector<2x512xf32>
    %cst_51 = arith.constant dense<0.000000e+00> : vector<2x512xf32>
    %201 = tpu.matmul %166, %1, %cst_51 {dimension_numbers = #tpu.dot_dimension_numbers<[1], [0], [0], [1], [0, 0, 1, 1], [], []>} : vector<2x128xf32>, vector<128x512xf32>, vector<2x512xf32> -> vector<2x512xf32>
    %202 = arith.addf %200, %201 : vector<2x512xf32>
    %203 = vector.broadcast %2 : vector<1x512xf32> to vector<2x512xf32>
    %204 = arith.addf %202, %203 : vector<2x512xf32>
    %205 = vector.extract_strided_slice %204 {offsets = [0, 0], sizes = [2, 128], strides = [1, 1]} : vector<2x512xf32> to vector<2x128xf32>
    %206 = arith.negf %205 : vector<2x128xf32>
    %207 = math.exp %206 : vector<2x128xf32>
    %cst_52 = arith.constant 1.000000e+00 : f32
    %208 = vector.broadcast %cst_52 : f32 to vector<2x128xf32>
    %209 = arith.addf %208, %207 : vector<2x128xf32>
    %210 = arith.divf %208, %209 : vector<2x128xf32>
    %211 = vector.extract_strided_slice %204 {offsets = [0, 128], sizes = [2, 128], strides = [1, 1]} : vector<2x512xf32> to vector<2x128xf32>
    %212 = arith.negf %211 : vector<2x128xf32>
    %213 = math.exp %212 : vector<2x128xf32>
    %cst_53 = arith.constant 1.000000e+00 : f32
    %214 = vector.broadcast %cst_53 : f32 to vector<2x128xf32>
    %215 = arith.addf %214, %213 : vector<2x128xf32>
    %216 = arith.divf %214, %215 : vector<2x128xf32>
    %217 = vector.extract_strided_slice %204 {offsets = [0, 256], sizes = [2, 128], strides = [1, 1]} : vector<2x512xf32> to vector<2x128xf32>
    %218 = math.tanh %217 : vector<2x128xf32>
    %219 = vector.extract_strided_slice %204 {offsets = [0, 384], sizes = [2, 128], strides = [1, 1]} : vector<2x512xf32> to vector<2x128xf32>
    %220 = arith.negf %219 : vector<2x128xf32>
    %221 = math.exp %220 : vector<2x128xf32>
    %cst_54 = arith.constant 1.000000e+00 : f32
    %222 = vector.broadcast %cst_54 : f32 to vector<2x128xf32>
    %223 = arith.addf %222, %221 : vector<2x128xf32>
    %224 = arith.divf %222, %223 : vector<2x128xf32>
    %225 = arith.mulf %216, %164 : vector<2x128xf32>
    %226 = arith.mulf %210, %218 : vector<2x128xf32>
    %227 = arith.addf %225, %226 : vector<2x128xf32>
    %228 = math.tanh %227 : vector<2x128xf32>
    %229 = arith.mulf %224, %228 : vector<2x128xf32>
    %cst_55 = arith.constant dense<0.000000e+00> : vector<2x512xf32>
    %230 = tpu.matmul %229, %3, %cst_55 {dimension_numbers = #tpu.dot_dimension_numbers<[1], [0], [0], [1], [0, 0, 1, 1], [], []>} : vector<2x128xf32>, vector<128x512xf32>, vector<2x512xf32> -> vector<2x512xf32>
    %cst_56 = arith.constant dense<0.000000e+00> : vector<2x512xf32>
    %231 = tpu.matmul %196, %4, %cst_56 {dimension_numbers = #tpu.dot_dimension_numbers<[1], [0], [0], [1], [0, 0, 1, 1], [], []>} : vector<2x128xf32>, vector<128x512xf32>, vector<2x512xf32> -> vector<2x512xf32>
    %232 = arith.addf %230, %231 : vector<2x512xf32>
    %233 = vector.broadcast %5 : vector<1x512xf32> to vector<2x512xf32>
    %234 = arith.addf %232, %233 : vector<2x512xf32>
    %235 = vector.extract_strided_slice %234 {offsets = [0, 0], sizes = [2, 128], strides = [1, 1]} : vector<2x512xf32> to vector<2x128xf32>
    %236 = arith.negf %235 : vector<2x128xf32>
    %237 = math.exp %236 : vector<2x128xf32>
    %cst_57 = arith.constant 1.000000e+00 : f32
    %238 = vector.broadcast %cst_57 : f32 to vector<2x128xf32>
    %239 = arith.addf %238, %237 : vector<2x128xf32>
    %240 = arith.divf %238, %239 : vector<2x128xf32>
    %241 = vector.extract_strided_slice %234 {offsets = [0, 128], sizes = [2, 128], strides = [1, 1]} : vector<2x512xf32> to vector<2x128xf32>
    %242 = arith.negf %241 : vector<2x128xf32>
    %243 = math.exp %242 : vector<2x128xf32>
    %cst_58 = arith.constant 1.000000e+00 : f32
    %244 = vector.broadcast %cst_58 : f32 to vector<2x128xf32>
    %245 = arith.addf %244, %243 : vector<2x128xf32>
    %246 = arith.divf %244, %245 : vector<2x128xf32>
    %247 = vector.extract_strided_slice %234 {offsets = [0, 256], sizes = [2, 128], strides = [1, 1]} : vector<2x512xf32> to vector<2x128xf32>
    %248 = math.tanh %247 : vector<2x128xf32>
    %249 = vector.extract_strided_slice %234 {offsets = [0, 384], sizes = [2, 128], strides = [1, 1]} : vector<2x512xf32> to vector<2x128xf32>
    %250 = arith.negf %249 : vector<2x128xf32>
    %251 = math.exp %250 : vector<2x128xf32>
    %cst_59 = arith.constant 1.000000e+00 : f32
    %252 = vector.broadcast %cst_59 : f32 to vector<2x128xf32>
    %253 = arith.addf %252, %251 : vector<2x128xf32>
    %254 = arith.divf %252, %253 : vector<2x128xf32>
    %255 = arith.mulf %246, %194 : vector<2x128xf32>
    %256 = arith.mulf %240, %248 : vector<2x128xf32>
    %257 = arith.addf %255, %256 : vector<2x128xf32>
    %258 = math.tanh %257 : vector<2x128xf32>
    %259 = arith.mulf %254, %258 : vector<2x128xf32>
    %c4_i32 = arith.constant 4 : i32
    %260 = arith.index_cast %c4_i32 : i32 to index
    %c0_60 = arith.constant 0 : index
    %c0_61 = arith.constant 0 : index
    %261 = vector.load %arg0[%260, %c0_60, %c0_61] : memref<8x2x4xf32, #tpu.memory_space<vmem>>, vector<1x2x4xf32>
    %262 = vector.shape_cast %261 : vector<1x2x4xf32> to vector<2x4xf32>
    %cst_62 = arith.constant dense<0.000000e+00> : vector<2x512xf32>
    %263 = tpu.matmul %262, %0, %cst_62 {dimension_numbers = #tpu.dot_dimension_numbers<[1], [0], [0], [1], [0, 0, 1, 1], [], []>} : vector<2x4xf32>, vector<4x512xf32>, vector<2x512xf32> -> vector<2x512xf32>
    %cst_63 = arith.constant dense<0.000000e+00> : vector<2x512xf32>
    %264 = tpu.matmul %229, %1, %cst_63 {dimension_numbers = #tpu.dot_dimension_numbers<[1], [0], [0], [1], [0, 0, 1, 1], [], []>} : vector<2x128xf32>, vector<128x512xf32>, vector<2x512xf32> -> vector<2x512xf32>
    %265 = arith.addf %263, %264 : vector<2x512xf32>
    %266 = vector.broadcast %2 : vector<1x512xf32> to vector<2x512xf32>
    %267 = arith.addf %265, %266 : vector<2x512xf32>
    %268 = vector.extract_strided_slice %267 {offsets = [0, 0], sizes = [2, 128], strides = [1, 1]} : vector<2x512xf32> to vector<2x128xf32>
    %269 = arith.negf %268 : vector<2x128xf32>
    %270 = math.exp %269 : vector<2x128xf32>
    %cst_64 = arith.constant 1.000000e+00 : f32
    %271 = vector.broadcast %cst_64 : f32 to vector<2x128xf32>
    %272 = arith.addf %271, %270 : vector<2x128xf32>
    %273 = arith.divf %271, %272 : vector<2x128xf32>
    %274 = vector.extract_strided_slice %267 {offsets = [0, 128], sizes = [2, 128], strides = [1, 1]} : vector<2x512xf32> to vector<2x128xf32>
    %275 = arith.negf %274 : vector<2x128xf32>
    %276 = math.exp %275 : vector<2x128xf32>
    %cst_65 = arith.constant 1.000000e+00 : f32
    %277 = vector.broadcast %cst_65 : f32 to vector<2x128xf32>
    %278 = arith.addf %277, %276 : vector<2x128xf32>
    %279 = arith.divf %277, %278 : vector<2x128xf32>
    %280 = vector.extract_strided_slice %267 {offsets = [0, 256], sizes = [2, 128], strides = [1, 1]} : vector<2x512xf32> to vector<2x128xf32>
    %281 = math.tanh %280 : vector<2x128xf32>
    %282 = vector.extract_strided_slice %267 {offsets = [0, 384], sizes = [2, 128], strides = [1, 1]} : vector<2x512xf32> to vector<2x128xf32>
    %283 = arith.negf %282 : vector<2x128xf32>
    %284 = math.exp %283 : vector<2x128xf32>
    %cst_66 = arith.constant 1.000000e+00 : f32
    %285 = vector.broadcast %cst_66 : f32 to vector<2x128xf32>
    %286 = arith.addf %285, %284 : vector<2x128xf32>
    %287 = arith.divf %285, %286 : vector<2x128xf32>
    %288 = arith.mulf %279, %227 : vector<2x128xf32>
    %289 = arith.mulf %273, %281 : vector<2x128xf32>
    %290 = arith.addf %288, %289 : vector<2x128xf32>
    %291 = math.tanh %290 : vector<2x128xf32>
    %292 = arith.mulf %287, %291 : vector<2x128xf32>
    %cst_67 = arith.constant dense<0.000000e+00> : vector<2x512xf32>
    %293 = tpu.matmul %292, %3, %cst_67 {dimension_numbers = #tpu.dot_dimension_numbers<[1], [0], [0], [1], [0, 0, 1, 1], [], []>} : vector<2x128xf32>, vector<128x512xf32>, vector<2x512xf32> -> vector<2x512xf32>
    %cst_68 = arith.constant dense<0.000000e+00> : vector<2x512xf32>
    %294 = tpu.matmul %259, %4, %cst_68 {dimension_numbers = #tpu.dot_dimension_numbers<[1], [0], [0], [1], [0, 0, 1, 1], [], []>} : vector<2x128xf32>, vector<128x512xf32>, vector<2x512xf32> -> vector<2x512xf32>
    %295 = arith.addf %293, %294 : vector<2x512xf32>
    %296 = vector.broadcast %5 : vector<1x512xf32> to vector<2x512xf32>
    %297 = arith.addf %295, %296 : vector<2x512xf32>
    %298 = vector.extract_strided_slice %297 {offsets = [0, 0], sizes = [2, 128], strides = [1, 1]} : vector<2x512xf32> to vector<2x128xf32>
    %299 = arith.negf %298 : vector<2x128xf32>
    %300 = math.exp %299 : vector<2x128xf32>
    %cst_69 = arith.constant 1.000000e+00 : f32
    %301 = vector.broadcast %cst_69 : f32 to vector<2x128xf32>
    %302 = arith.addf %301, %300 : vector<2x128xf32>
    %303 = arith.divf %301, %302 : vector<2x128xf32>
    %304 = vector.extract_strided_slice %297 {offsets = [0, 128], sizes = [2, 128], strides = [1, 1]} : vector<2x512xf32> to vector<2x128xf32>
    %305 = arith.negf %304 : vector<2x128xf32>
    %306 = math.exp %305 : vector<2x128xf32>
    %cst_70 = arith.constant 1.000000e+00 : f32
    %307 = vector.broadcast %cst_70 : f32 to vector<2x128xf32>
    %308 = arith.addf %307, %306 : vector<2x128xf32>
    %309 = arith.divf %307, %308 : vector<2x128xf32>
    %310 = vector.extract_strided_slice %297 {offsets = [0, 256], sizes = [2, 128], strides = [1, 1]} : vector<2x512xf32> to vector<2x128xf32>
    %311 = math.tanh %310 : vector<2x128xf32>
    %312 = vector.extract_strided_slice %297 {offsets = [0, 384], sizes = [2, 128], strides = [1, 1]} : vector<2x512xf32> to vector<2x128xf32>
    %313 = arith.negf %312 : vector<2x128xf32>
    %314 = math.exp %313 : vector<2x128xf32>
    %cst_71 = arith.constant 1.000000e+00 : f32
    %315 = vector.broadcast %cst_71 : f32 to vector<2x128xf32>
    %316 = arith.addf %315, %314 : vector<2x128xf32>
    %317 = arith.divf %315, %316 : vector<2x128xf32>
    %318 = arith.mulf %309, %257 : vector<2x128xf32>
    %319 = arith.mulf %303, %311 : vector<2x128xf32>
    %320 = arith.addf %318, %319 : vector<2x128xf32>
    %321 = math.tanh %320 : vector<2x128xf32>
    %322 = arith.mulf %317, %321 : vector<2x128xf32>
    %c5_i32 = arith.constant 5 : i32
    %323 = arith.index_cast %c5_i32 : i32 to index
    %c0_72 = arith.constant 0 : index
    %c0_73 = arith.constant 0 : index
    %324 = vector.load %arg0[%323, %c0_72, %c0_73] : memref<8x2x4xf32, #tpu.memory_space<vmem>>, vector<1x2x4xf32>
    %325 = vector.shape_cast %324 : vector<1x2x4xf32> to vector<2x4xf32>
    %cst_74 = arith.constant dense<0.000000e+00> : vector<2x512xf32>
    %326 = tpu.matmul %325, %0, %cst_74 {dimension_numbers = #tpu.dot_dimension_numbers<[1], [0], [0], [1], [0, 0, 1, 1], [], []>} : vector<2x4xf32>, vector<4x512xf32>, vector<2x512xf32> -> vector<2x512xf32>
    %cst_75 = arith.constant dense<0.000000e+00> : vector<2x512xf32>
    %327 = tpu.matmul %292, %1, %cst_75 {dimension_numbers = #tpu.dot_dimension_numbers<[1], [0], [0], [1], [0, 0, 1, 1], [], []>} : vector<2x128xf32>, vector<128x512xf32>, vector<2x512xf32> -> vector<2x512xf32>
    %328 = arith.addf %326, %327 : vector<2x512xf32>
    %329 = vector.broadcast %2 : vector<1x512xf32> to vector<2x512xf32>
    %330 = arith.addf %328, %329 : vector<2x512xf32>
    %331 = vector.extract_strided_slice %330 {offsets = [0, 0], sizes = [2, 128], strides = [1, 1]} : vector<2x512xf32> to vector<2x128xf32>
    %332 = arith.negf %331 : vector<2x128xf32>
    %333 = math.exp %332 : vector<2x128xf32>
    %cst_76 = arith.constant 1.000000e+00 : f32
    %334 = vector.broadcast %cst_76 : f32 to vector<2x128xf32>
    %335 = arith.addf %334, %333 : vector<2x128xf32>
    %336 = arith.divf %334, %335 : vector<2x128xf32>
    %337 = vector.extract_strided_slice %330 {offsets = [0, 128], sizes = [2, 128], strides = [1, 1]} : vector<2x512xf32> to vector<2x128xf32>
    %338 = arith.negf %337 : vector<2x128xf32>
    %339 = math.exp %338 : vector<2x128xf32>
    %cst_77 = arith.constant 1.000000e+00 : f32
    %340 = vector.broadcast %cst_77 : f32 to vector<2x128xf32>
    %341 = arith.addf %340, %339 : vector<2x128xf32>
    %342 = arith.divf %340, %341 : vector<2x128xf32>
    %343 = vector.extract_strided_slice %330 {offsets = [0, 256], sizes = [2, 128], strides = [1, 1]} : vector<2x512xf32> to vector<2x128xf32>
    %344 = math.tanh %343 : vector<2x128xf32>
    %345 = vector.extract_strided_slice %330 {offsets = [0, 384], sizes = [2, 128], strides = [1, 1]} : vector<2x512xf32> to vector<2x128xf32>
    %346 = arith.negf %345 : vector<2x128xf32>
    %347 = math.exp %346 : vector<2x128xf32>
    %cst_78 = arith.constant 1.000000e+00 : f32
    %348 = vector.broadcast %cst_78 : f32 to vector<2x128xf32>
    %349 = arith.addf %348, %347 : vector<2x128xf32>
    %350 = arith.divf %348, %349 : vector<2x128xf32>
    %351 = arith.mulf %342, %290 : vector<2x128xf32>
    %352 = arith.mulf %336, %344 : vector<2x128xf32>
    %353 = arith.addf %351, %352 : vector<2x128xf32>
    %354 = math.tanh %353 : vector<2x128xf32>
    %355 = arith.mulf %350, %354 : vector<2x128xf32>
    %cst_79 = arith.constant dense<0.000000e+00> : vector<2x512xf32>
    %356 = tpu.matmul %355, %3, %cst_79 {dimension_numbers = #tpu.dot_dimension_numbers<[1], [0], [0], [1], [0, 0, 1, 1], [], []>} : vector<2x128xf32>, vector<128x512xf32>, vector<2x512xf32> -> vector<2x512xf32>
    %cst_80 = arith.constant dense<0.000000e+00> : vector<2x512xf32>
    %357 = tpu.matmul %322, %4, %cst_80 {dimension_numbers = #tpu.dot_dimension_numbers<[1], [0], [0], [1], [0, 0, 1, 1], [], []>} : vector<2x128xf32>, vector<128x512xf32>, vector<2x512xf32> -> vector<2x512xf32>
    %358 = arith.addf %356, %357 : vector<2x512xf32>
    %359 = vector.broadcast %5 : vector<1x512xf32> to vector<2x512xf32>
    %360 = arith.addf %358, %359 : vector<2x512xf32>
    %361 = vector.extract_strided_slice %360 {offsets = [0, 0], sizes = [2, 128], strides = [1, 1]} : vector<2x512xf32> to vector<2x128xf32>
    %362 = arith.negf %361 : vector<2x128xf32>
    %363 = math.exp %362 : vector<2x128xf32>
    %cst_81 = arith.constant 1.000000e+00 : f32
    %364 = vector.broadcast %cst_81 : f32 to vector<2x128xf32>
    %365 = arith.addf %364, %363 : vector<2x128xf32>
    %366 = arith.divf %364, %365 : vector<2x128xf32>
    %367 = vector.extract_strided_slice %360 {offsets = [0, 128], sizes = [2, 128], strides = [1, 1]} : vector<2x512xf32> to vector<2x128xf32>
    %368 = arith.negf %367 : vector<2x128xf32>
    %369 = math.exp %368 : vector<2x128xf32>
    %cst_82 = arith.constant 1.000000e+00 : f32
    %370 = vector.broadcast %cst_82 : f32 to vector<2x128xf32>
    %371 = arith.addf %370, %369 : vector<2x128xf32>
    %372 = arith.divf %370, %371 : vector<2x128xf32>
    %373 = vector.extract_strided_slice %360 {offsets = [0, 256], sizes = [2, 128], strides = [1, 1]} : vector<2x512xf32> to vector<2x128xf32>
    %374 = math.tanh %373 : vector<2x128xf32>
    %375 = vector.extract_strided_slice %360 {offsets = [0, 384], sizes = [2, 128], strides = [1, 1]} : vector<2x512xf32> to vector<2x128xf32>
    %376 = arith.negf %375 : vector<2x128xf32>
    %377 = math.exp %376 : vector<2x128xf32>
    %cst_83 = arith.constant 1.000000e+00 : f32
    %378 = vector.broadcast %cst_83 : f32 to vector<2x128xf32>
    %379 = arith.addf %378, %377 : vector<2x128xf32>
    %380 = arith.divf %378, %379 : vector<2x128xf32>
    %381 = arith.mulf %372, %320 : vector<2x128xf32>
    %382 = arith.mulf %366, %374 : vector<2x128xf32>
    %383 = arith.addf %381, %382 : vector<2x128xf32>
    %384 = math.tanh %383 : vector<2x128xf32>
    %385 = arith.mulf %380, %384 : vector<2x128xf32>
    %c6_i32 = arith.constant 6 : i32
    %386 = arith.index_cast %c6_i32 : i32 to index
    %c0_84 = arith.constant 0 : index
    %c0_85 = arith.constant 0 : index
    %387 = vector.load %arg0[%386, %c0_84, %c0_85] : memref<8x2x4xf32, #tpu.memory_space<vmem>>, vector<1x2x4xf32>
    %388 = vector.shape_cast %387 : vector<1x2x4xf32> to vector<2x4xf32>
    %cst_86 = arith.constant dense<0.000000e+00> : vector<2x512xf32>
    %389 = tpu.matmul %388, %0, %cst_86 {dimension_numbers = #tpu.dot_dimension_numbers<[1], [0], [0], [1], [0, 0, 1, 1], [], []>} : vector<2x4xf32>, vector<4x512xf32>, vector<2x512xf32> -> vector<2x512xf32>
    %cst_87 = arith.constant dense<0.000000e+00> : vector<2x512xf32>
    %390 = tpu.matmul %355, %1, %cst_87 {dimension_numbers = #tpu.dot_dimension_numbers<[1], [0], [0], [1], [0, 0, 1, 1], [], []>} : vector<2x128xf32>, vector<128x512xf32>, vector<2x512xf32> -> vector<2x512xf32>
    %391 = arith.addf %389, %390 : vector<2x512xf32>
    %392 = vector.broadcast %2 : vector<1x512xf32> to vector<2x512xf32>
    %393 = arith.addf %391, %392 : vector<2x512xf32>
    %394 = vector.extract_strided_slice %393 {offsets = [0, 0], sizes = [2, 128], strides = [1, 1]} : vector<2x512xf32> to vector<2x128xf32>
    %395 = arith.negf %394 : vector<2x128xf32>
    %396 = math.exp %395 : vector<2x128xf32>
    %cst_88 = arith.constant 1.000000e+00 : f32
    %397 = vector.broadcast %cst_88 : f32 to vector<2x128xf32>
    %398 = arith.addf %397, %396 : vector<2x128xf32>
    %399 = arith.divf %397, %398 : vector<2x128xf32>
    %400 = vector.extract_strided_slice %393 {offsets = [0, 128], sizes = [2, 128], strides = [1, 1]} : vector<2x512xf32> to vector<2x128xf32>
    %401 = arith.negf %400 : vector<2x128xf32>
    %402 = math.exp %401 : vector<2x128xf32>
    %cst_89 = arith.constant 1.000000e+00 : f32
    %403 = vector.broadcast %cst_89 : f32 to vector<2x128xf32>
    %404 = arith.addf %403, %402 : vector<2x128xf32>
    %405 = arith.divf %403, %404 : vector<2x128xf32>
    %406 = vector.extract_strided_slice %393 {offsets = [0, 256], sizes = [2, 128], strides = [1, 1]} : vector<2x512xf32> to vector<2x128xf32>
    %407 = math.tanh %406 : vector<2x128xf32>
    %408 = vector.extract_strided_slice %393 {offsets = [0, 384], sizes = [2, 128], strides = [1, 1]} : vector<2x512xf32> to vector<2x128xf32>
    %409 = arith.negf %408 : vector<2x128xf32>
    %410 = math.exp %409 : vector<2x128xf32>
    %cst_90 = arith.constant 1.000000e+00 : f32
    %411 = vector.broadcast %cst_90 : f32 to vector<2x128xf32>
    %412 = arith.addf %411, %410 : vector<2x128xf32>
    %413 = arith.divf %411, %412 : vector<2x128xf32>
    %414 = arith.mulf %405, %353 : vector<2x128xf32>
    %415 = arith.mulf %399, %407 : vector<2x128xf32>
    %416 = arith.addf %414, %415 : vector<2x128xf32>
    %417 = math.tanh %416 : vector<2x128xf32>
    %418 = arith.mulf %413, %417 : vector<2x128xf32>
    %cst_91 = arith.constant dense<0.000000e+00> : vector<2x512xf32>
    %419 = tpu.matmul %418, %3, %cst_91 {dimension_numbers = #tpu.dot_dimension_numbers<[1], [0], [0], [1], [0, 0, 1, 1], [], []>} : vector<2x128xf32>, vector<128x512xf32>, vector<2x512xf32> -> vector<2x512xf32>
    %cst_92 = arith.constant dense<0.000000e+00> : vector<2x512xf32>
    %420 = tpu.matmul %385, %4, %cst_92 {dimension_numbers = #tpu.dot_dimension_numbers<[1], [0], [0], [1], [0, 0, 1, 1], [], []>} : vector<2x128xf32>, vector<128x512xf32>, vector<2x512xf32> -> vector<2x512xf32>
    %421 = arith.addf %419, %420 : vector<2x512xf32>
    %422 = vector.broadcast %5 : vector<1x512xf32> to vector<2x512xf32>
    %423 = arith.addf %421, %422 : vector<2x512xf32>
    %424 = vector.extract_strided_slice %423 {offsets = [0, 0], sizes = [2, 128], strides = [1, 1]} : vector<2x512xf32> to vector<2x128xf32>
    %425 = arith.negf %424 : vector<2x128xf32>
    %426 = math.exp %425 : vector<2x128xf32>
    %cst_93 = arith.constant 1.000000e+00 : f32
    %427 = vector.broadcast %cst_93 : f32 to vector<2x128xf32>
    %428 = arith.addf %427, %426 : vector<2x128xf32>
    %429 = arith.divf %427, %428 : vector<2x128xf32>
    %430 = vector.extract_strided_slice %423 {offsets = [0, 128], sizes = [2, 128], strides = [1, 1]} : vector<2x512xf32> to vector<2x128xf32>
    %431 = arith.negf %430 : vector<2x128xf32>
    %432 = math.exp %431 : vector<2x128xf32>
    %cst_94 = arith.constant 1.000000e+00 : f32
    %433 = vector.broadcast %cst_94 : f32 to vector<2x128xf32>
    %434 = arith.addf %433, %432 : vector<2x128xf32>
    %435 = arith.divf %433, %434 : vector<2x128xf32>
    %436 = vector.extract_strided_slice %423 {offsets = [0, 256], sizes = [2, 128], strides = [1, 1]} : vector<2x512xf32> to vector<2x128xf32>
    %437 = math.tanh %436 : vector<2x128xf32>
    %438 = vector.extract_strided_slice %423 {offsets = [0, 384], sizes = [2, 128], strides = [1, 1]} : vector<2x512xf32> to vector<2x128xf32>
    %439 = arith.negf %438 : vector<2x128xf32>
    %440 = math.exp %439 : vector<2x128xf32>
    %cst_95 = arith.constant 1.000000e+00 : f32
    %441 = vector.broadcast %cst_95 : f32 to vector<2x128xf32>
    %442 = arith.addf %441, %440 : vector<2x128xf32>
    %443 = arith.divf %441, %442 : vector<2x128xf32>
    %444 = arith.mulf %435, %383 : vector<2x128xf32>
    %445 = arith.mulf %429, %437 : vector<2x128xf32>
    %446 = arith.addf %444, %445 : vector<2x128xf32>
    %447 = math.tanh %446 : vector<2x128xf32>
    %448 = arith.mulf %443, %447 : vector<2x128xf32>
    %c7_i32 = arith.constant 7 : i32
    %449 = arith.index_cast %c7_i32 : i32 to index
    %c0_96 = arith.constant 0 : index
    %c0_97 = arith.constant 0 : index
    %450 = vector.load %arg0[%449, %c0_96, %c0_97] : memref<8x2x4xf32, #tpu.memory_space<vmem>>, vector<1x2x4xf32>
    %451 = vector.shape_cast %450 : vector<1x2x4xf32> to vector<2x4xf32>
    %cst_98 = arith.constant dense<0.000000e+00> : vector<2x512xf32>
    %452 = tpu.matmul %451, %0, %cst_98 {dimension_numbers = #tpu.dot_dimension_numbers<[1], [0], [0], [1], [0, 0, 1, 1], [], []>} : vector<2x4xf32>, vector<4x512xf32>, vector<2x512xf32> -> vector<2x512xf32>
    %cst_99 = arith.constant dense<0.000000e+00> : vector<2x512xf32>
    %453 = tpu.matmul %418, %1, %cst_99 {dimension_numbers = #tpu.dot_dimension_numbers<[1], [0], [0], [1], [0, 0, 1, 1], [], []>} : vector<2x128xf32>, vector<128x512xf32>, vector<2x512xf32> -> vector<2x512xf32>
    %454 = arith.addf %452, %453 : vector<2x512xf32>
    %455 = vector.broadcast %2 : vector<1x512xf32> to vector<2x512xf32>
    %456 = arith.addf %454, %455 : vector<2x512xf32>
    %457 = vector.extract_strided_slice %456 {offsets = [0, 0], sizes = [2, 128], strides = [1, 1]} : vector<2x512xf32> to vector<2x128xf32>
    %458 = arith.negf %457 : vector<2x128xf32>
    %459 = math.exp %458 : vector<2x128xf32>
    %cst_100 = arith.constant 1.000000e+00 : f32
    %460 = vector.broadcast %cst_100 : f32 to vector<2x128xf32>
    %461 = arith.addf %460, %459 : vector<2x128xf32>
    %462 = arith.divf %460, %461 : vector<2x128xf32>
    %463 = vector.extract_strided_slice %456 {offsets = [0, 128], sizes = [2, 128], strides = [1, 1]} : vector<2x512xf32> to vector<2x128xf32>
    %464 = arith.negf %463 : vector<2x128xf32>
    %465 = math.exp %464 : vector<2x128xf32>
    %cst_101 = arith.constant 1.000000e+00 : f32
    %466 = vector.broadcast %cst_101 : f32 to vector<2x128xf32>
    %467 = arith.addf %466, %465 : vector<2x128xf32>
    %468 = arith.divf %466, %467 : vector<2x128xf32>
    %469 = vector.extract_strided_slice %456 {offsets = [0, 256], sizes = [2, 128], strides = [1, 1]} : vector<2x512xf32> to vector<2x128xf32>
    %470 = math.tanh %469 : vector<2x128xf32>
    %471 = vector.extract_strided_slice %456 {offsets = [0, 384], sizes = [2, 128], strides = [1, 1]} : vector<2x512xf32> to vector<2x128xf32>
    %472 = arith.negf %471 : vector<2x128xf32>
    %473 = math.exp %472 : vector<2x128xf32>
    %cst_102 = arith.constant 1.000000e+00 : f32
    %474 = vector.broadcast %cst_102 : f32 to vector<2x128xf32>
    %475 = arith.addf %474, %473 : vector<2x128xf32>
    %476 = arith.divf %474, %475 : vector<2x128xf32>
    %477 = arith.mulf %468, %416 : vector<2x128xf32>
    %478 = arith.mulf %462, %470 : vector<2x128xf32>
    %479 = arith.addf %477, %478 : vector<2x128xf32>
    %480 = math.tanh %479 : vector<2x128xf32>
    %481 = arith.mulf %476, %480 : vector<2x128xf32>
    %cst_103 = arith.constant dense<0.000000e+00> : vector<2x512xf32>
    %482 = tpu.matmul %481, %3, %cst_103 {dimension_numbers = #tpu.dot_dimension_numbers<[1], [0], [0], [1], [0, 0, 1, 1], [], []>} : vector<2x128xf32>, vector<128x512xf32>, vector<2x512xf32> -> vector<2x512xf32>
    %cst_104 = arith.constant dense<0.000000e+00> : vector<2x512xf32>
    %483 = tpu.matmul %448, %4, %cst_104 {dimension_numbers = #tpu.dot_dimension_numbers<[1], [0], [0], [1], [0, 0, 1, 1], [], []>} : vector<2x128xf32>, vector<128x512xf32>, vector<2x512xf32> -> vector<2x512xf32>
    %484 = arith.addf %482, %483 : vector<2x512xf32>
    %485 = vector.broadcast %5 : vector<1x512xf32> to vector<2x512xf32>
    %486 = arith.addf %484, %485 : vector<2x512xf32>
    %487 = vector.extract_strided_slice %486 {offsets = [0, 0], sizes = [2, 128], strides = [1, 1]} : vector<2x512xf32> to vector<2x128xf32>
    %488 = arith.negf %487 : vector<2x128xf32>
    %489 = math.exp %488 : vector<2x128xf32>
    %cst_105 = arith.constant 1.000000e+00 : f32
    %490 = vector.broadcast %cst_105 : f32 to vector<2x128xf32>
    %491 = arith.addf %490, %489 : vector<2x128xf32>
    %492 = arith.divf %490, %491 : vector<2x128xf32>
    %493 = vector.extract_strided_slice %486 {offsets = [0, 128], sizes = [2, 128], strides = [1, 1]} : vector<2x512xf32> to vector<2x128xf32>
    %494 = arith.negf %493 : vector<2x128xf32>
    %495 = math.exp %494 : vector<2x128xf32>
    %cst_106 = arith.constant 1.000000e+00 : f32
    %496 = vector.broadcast %cst_106 : f32 to vector<2x128xf32>
    %497 = arith.addf %496, %495 : vector<2x128xf32>
    %498 = arith.divf %496, %497 : vector<2x128xf32>
    %499 = vector.extract_strided_slice %486 {offsets = [0, 256], sizes = [2, 128], strides = [1, 1]} : vector<2x512xf32> to vector<2x128xf32>
    %500 = math.tanh %499 : vector<2x128xf32>
    %501 = vector.extract_strided_slice %486 {offsets = [0, 384], sizes = [2, 128], strides = [1, 1]} : vector<2x512xf32> to vector<2x128xf32>
    %502 = arith.negf %501 : vector<2x128xf32>
    %503 = math.exp %502 : vector<2x128xf32>
    %cst_107 = arith.constant 1.000000e+00 : f32
    %504 = vector.broadcast %cst_107 : f32 to vector<2x128xf32>
    %505 = arith.addf %504, %503 : vector<2x128xf32>
    %506 = arith.divf %504, %505 : vector<2x128xf32>
    %507 = arith.mulf %498, %446 : vector<2x128xf32>
    %508 = arith.mulf %492, %500 : vector<2x128xf32>
    %509 = arith.addf %507, %508 : vector<2x128xf32>
    %510 = math.tanh %509 : vector<2x128xf32>
    %511 = arith.mulf %506, %510 : vector<2x128xf32>
    %c8_i32 = arith.constant 8 : i32
    %c0_108 = arith.constant 0 : index
    %c0_109 = arith.constant 0 : index
    %512 = vector.load %arg7[%c0_108, %c0_109] : memref<128x128xf32, #tpu.memory_space<vmem>>, vector<128x128xf32>
    %cst_110 = arith.constant dense<0.000000e+00> : vector<2x128xf32>
    %513 = tpu.matmul %511, %512, %cst_110 {dimension_numbers = #tpu.dot_dimension_numbers<[1], [0], [0], [1], [0, 0, 1, 1], [], []>} : vector<2x128xf32>, vector<128x128xf32>, vector<2x128xf32> -> vector<2x128xf32>
    %c0_111 = arith.constant 0 : index
    %c0_112 = arith.constant 0 : index
    %514 = vector.load %arg8[%c0_111, %c0_112] : memref<1x128xf32, #tpu.memory_space<vmem>>, vector<1x128xf32>
    %515 = vector.broadcast %514 : vector<1x128xf32> to vector<2x128xf32>
    %516 = arith.addf %513, %515 : vector<2x128xf32>
    %c0_113 = arith.constant 0 : index
    %c0_114 = arith.constant 0 : index
    %517 = vector.load %arg9[%c0_113, %c0_114] : memref<2x128xf32, #tpu.memory_space<vmem>>, vector<2x128xf32>
    tpu.vector_store %arg9[%c0_113, %c0_114], %516 {strides = array<i32>} : memref<2x128xf32, #tpu.memory_space<vmem>>, vector<2x128xf32>,
    return
  }
}

</mosaic_0001>

<llo_original>
// kernel: stock_model_lstm_forward.1
$region0: #{stock_model_lstm_forward.1}
  #allocation0 [shape = 'u32[]', space=smem, size = 0x4, offset = 0x4, fixed_abs, tag = 'smem constant byte address 0x4 - core index']
  #allocation1 [shape = 'u32[144,128]{1,0:T(1,128)}', space=vmem, size = 0x12000, scoped, tag = 'internal scratch']
  %s0 = inlined_call_operand.vmem [shape: f32[8,2,4], index: 0, kind: input, shape index: {}]
  %s1 = inlined_call_operand.vmem [shape: f32[4,512], index: 1, kind: input, shape index: {}]
  %s2 = inlined_call_operand.vmem [shape: f32[128,512], index: 2, kind: input, shape index: {}]
  %s3 = inlined_call_operand.vmem [shape: f32[1,512], index: 3, kind: input, shape index: {}]
  %s4 = inlined_call_operand.vmem [shape: f32[128,512], index: 4, kind: input, shape index: {}]
  %s5 = inlined_call_operand.vmem [shape: f32[128,512], index: 5, kind: input, shape index: {}]
  %s6 = inlined_call_operand.vmem [shape: f32[1,512], index: 6, kind: input, shape index: {}]
  %s7 = inlined_call_operand.vmem [shape: f32[128,128], index: 7, kind: input, shape index: {}]
  %s8 = inlined_call_operand.vmem [shape: f32[1,128], index: 8, kind: input, shape index: {}]
  %s9 = inlined_call_operand.hbm [shape: f32[2,128], index: 9, kind: output, shape index: {}]
  %s10 = sld [smem:[#allocation0]]
  $region46: #{stock_model_lstm_forward.1} parent=0
    _
  %s12 = ssub.s32 1, %s10
  %s13 = scalar_select 0, %s12, %s10
  $region1: #{stock_model_lstm_forward.1} parent=0
    #allocation2 [shape = 'u8[1024]{0}', space=vmem, size = 0x400, scoped, tag = 'output window, operand 0, single buffered']
    #allocation3 [shape = 's32[1]{0}', space=sflag, size = 0x4, scoped, tag = 'scoped memory for stock_model_lstm_forward.1']
    %14 = vsyncpa [#allocation3], 0
    // Predicated region
    $region2: #{stock_model_lstm_forward.1} parent=1 // pred_check
      _
    $region3: #{stock_model_lstm_forward.1} parent=1 // pred_check_branch
      %16 = sbr.rel (0) target = $region5
    $region4: #{stock_model_lstm_forward.1} parent=1 // pred_region
      _
    $region5: #{stock_model_lstm_forward.1} parent=1 // pred_fallthru
      _
    // Predicated region
    $region6: #{stock_model_lstm_forward.1} parent=1 // pred_check
      _
    $region7: #{stock_model_lstm_forward.1} parent=1 // pred_check_branch
      %18 = sbr.rel (0) target = $region9
    $region8: #{stock_model_lstm_forward.1} parent=1 // pred_region
      _
    $region9: #{stock_model_lstm_forward.1} parent=1 // pred_fallthru
      _
    // Predicated region
    $region10: #{stock_model_lstm_forward.1} parent=1 // pred_check
      _
    $region11: #{stock_model_lstm_forward.1} parent=1 // pred_check_branch
      %20 = sbr.rel (0) target = $region13
    $region12: #{stock_model_lstm_forward.1} parent=1 // pred_region
      _
    $region13: #{stock_model_lstm_forward.1} parent=1 // pred_fallthru
      _
    // Predicated region
    $region14: #{stock_model_lstm_forward.1} parent=1 // pred_check
      _
    $region15: #{stock_model_lstm_forward.1} parent=1 // pred_check_branch
      %22 = sbr.rel (0) target = $region17
    $region16: #{stock_model_lstm_forward.1} parent=1 // pred_region
      _
    $region17: #{stock_model_lstm_forward.1} parent=1 // pred_fallthru
      _
    // Predicated region
    $region18: #{stock_model_lstm_forward.1} parent=1 // pred_check
      _
    $region19: #{stock_model_lstm_forward.1} parent=1 // pred_check_branch
      %24 = sbr.rel (0) target = $region21
    $region20: #{stock_model_lstm_forward.1} parent=1 // pred_region
      _
    $region21: #{stock_model_lstm_forward.1} parent=1 // pred_fallthru
      _
    // Predicated region
    $region22: #{stock_model_lstm_forward.1} parent=1 // pred_check
      _
    $region23: #{stock_model_lstm_forward.1} parent=1 // pred_check_branch
      %26 = sbr.rel (0) target = $region25
    $region24: #{stock_model_lstm_forward.1} parent=1 // pred_region
      _
    $region25: #{stock_model_lstm_forward.1} parent=1 // pred_fallthru
      _
    // Predicated region
    $region26: #{stock_model_lstm_forward.1} parent=1 // pred_check
      _
    $region27: #{stock_model_lstm_forward.1} parent=1 // pred_check_branch
      %28 = sbr.rel (0) target = $region29
    $region28: #{stock_model_lstm_forward.1} parent=1 // pred_region
      _
    $region29: #{stock_model_lstm_forward.1} parent=1 // pred_fallthru
      _
    // Predicated region
    $region30: #{stock_model_lstm_forward.1} parent=1 // pred_check
      _
    $region31: #{stock_model_lstm_forward.1} parent=1 // pred_check_branch
      %30 = sbr.rel (0) target = $region33
    $region32: #{stock_model_lstm_forward.1} parent=1 // pred_region
      _
    $region33: #{stock_model_lstm_forward.1} parent=1 // pred_fallthru
      _
    // Predicated region
    $region34: #{stock_model_lstm_forward.1} parent=1 // pred_check
      _
    $region35: #{stock_model_lstm_forward.1} parent=1 // pred_check_branch
      %32 = sbr.rel (0) target = $region37
    $region36: #{stock_model_lstm_forward.1} parent=1 // pred_region
      _
    $region37: #{stock_model_lstm_forward.1} parent=1 // pred_fallthru
      _
    %v33 = vld [vmem:[%s1] sm:$0xff]
    %v34 = vld [vmem:[%s1 + $0x8] sm:$0xff]
    %v35 = vld [vmem:[%s2] sm:$0xff]
    %v36 = vld [vmem:[%s2 + $0x8] sm:$0xff]
    %v37 = vld [vmem:[%s2 + $0x10] sm:$0xff]
    %v38 = vld [vmem:[%s2 + $0x18] sm:$0xff]
    %v39 = vld [vmem:[%s2 + $0x20] sm:$0xff]
    %v40 = vld [vmem:[%s2 + $0x28] sm:$0xff]
    %v41 = vld [vmem:[%s2 + $0x30] sm:$0xff]
    %v42 = vld [vmem:[%s2 + $0x38] sm:$0xff]
    %v43 = vld [vmem:[%s2 + $0x40] sm:$0xff]
    %v44 = vld [vmem:[%s2 + $0x48] sm:$0xff]
    %v45 = vld [vmem:[%s2 + $0x50] sm:$0xff]
    %v46 = vld [vmem:[%s2 + $0x58] sm:$0xff]
    %v47 = vld [vmem:[%s2 + $0x60] sm:$0xff]
    %v48 = vld [vmem:[%s2 + $0x68] sm:$0xff]
    %v49 = vld [vmem:[%s2 + $0x70] sm:$0xff]
    %v50 = vld [vmem:[%s2 + $0x78] sm:$0xff]
    %v51 = vld [vmem:[%s2 + $0x80] sm:$0xff]
    %v52 = vld [vmem:[%s2 + $0x88] sm:$0xff]
    %v53 = vld [vmem:[%s2 + $0x90] sm:$0xff]
    %v54 = vld [vmem:[%s2 + $0x98] sm:$0xff]
    %v55 = vld [vmem:[%s2 + $0xa0] sm:$0xff]
    %v56 = vld [vmem:[%s2 + $0xa8] sm:$0xff]
    %v57 = vld [vmem:[%s2 + $0xb0] sm:$0xff]
    %v58 = vld [vmem:[%s2 + $0xb8] sm:$0xff]
    %v59 = vld [vmem:[%s2 + $0xc0] sm:$0xff]
    %v60 = vld [vmem:[%s2 + $0xc8] sm:$0xff]
    %v61 = vld [vmem:[%s2 + $0xd0] sm:$0xff]
    %v62 = vld [vmem:[%s2 + $0xd8] sm:$0xff]
    %v63 = vld [vmem:[%s2 + $0xe0] sm:$0xff]
    %v64 = vld [vmem:[%s2 + $0xe8] sm:$0xff]
    %v65 = vld [vmem:[%s2 + $0xf0] sm:$0xff]
    %v66 = vld [vmem:[%s2 + $0xf8] sm:$0xff]
    %v67 = vld [vmem:[%s2 + $0x100] sm:$0xff]
    %v68 = vld [vmem:[%s2 + $0x108] sm:$0xff]
    %v69 = vld [vmem:[%s2 + $0x110] sm:$0xff]
    %v70 = vld [vmem:[%s2 + $0x118] sm:$0xff]
    %v71 = vld [vmem:[%s2 + $0x120] sm:$0xff]
    %v72 = vld [vmem:[%s2 + $0x128] sm:$0xff]
    %v73 = vld [vmem:[%s2 + $0x130] sm:$0xff]
    %v74 = vld [vmem:[%s2 + $0x138] sm:$0xff]
    %v75 = vld [vmem:[%s2 + $0x140] sm:$0xff]
    %v76 = vld [vmem:[%s2 + $0x148] sm:$0xff]
    %v77 = vld [vmem:[%s2 + $0x150] sm:$0xff]
    %v78 = vld [vmem:[%s2 + $0x158] sm:$0xff]
    %v79 = vld [vmem:[%s2 + $0x160] sm:$0xff]
    %v80 = vld [vmem:[%s2 + $0x168] sm:$0xff]
    %v81 = vld [vmem:[%s2 + $0x170] sm:$0xff]
    %v82 = vld [vmem:[%s2 + $0x178] sm:$0xff]
    %v83 = vld [vmem:[%s2 + $0x180] sm:$0xff]
    %v84 = vld [vmem:[%s2 + $0x188] sm:$0xff]
    %v85 = vld [vmem:[%s2 + $0x190] sm:$0xff]
    %v86 = vld [vmem:[%s2 + $0x198] sm:$0xff]
    %v87 = vld [vmem:[%s2 + $0x1a0] sm:$0xff]
    %v88 = vld [vmem:[%s2 + $0x1a8] sm:$0xff]
    %v89 = vld [vmem:[%s2 + $0x1b0] sm:$0xff]
    %v90 = vld [vmem:[%s2 + $0x1b8] sm:$0xff]
    %v91 = vld [vmem:[%s2 + $0x1c0] sm:$0xff]
    %v92 = vld [vmem:[%s2 + $0x1c8] sm:$0xff]
    %v93 = vld [vmem:[%s2 + $0x1d0] sm:$0xff]
    %v94 = vld [vmem:[%s2 + $0x1d8] sm:$0xff]
    %v95 = vld [vmem:[%s2 + $0x1e0] sm:$0xff]
    %v96 = vld [vmem:[%s2 + $0x1e8] sm:$0xff]
    %v97 = vld [vmem:[%s2 + $0x1f0] sm:$0xff]
    %v98 = vld [vmem:[%s2 + $0x1f8] sm:$0xff]
    %v99 = vld [vmem:[%s3] sm:$0xf]
    %v100 = vld [vmem:[%s4] sm:$0xff]
    %v101 = vld [vmem:[%s4 + $0x8] sm:$0xff]
    %v102 = vld [vmem:[%s4 + $0x10] sm:$0xff]
    %v103 = vld [vmem:[%s4 + $0x18] sm:$0xff]
    %v104 = vld [vmem:[%s4 + $0x20] sm:$0xff]
    %v105 = vld [vmem:[%s4 + $0x28] sm:$0xff]
    %v106 = vld [vmem:[%s4 + $0x30] sm:$0xff]
    %v107 = vld [vmem:[%s4 + $0x38] sm:$0xff]
    %v108 = vld [vmem:[%s4 + $0x40] sm:$0xff]
    %v109 = vld [vmem:[%s4 + $0x48] sm:$0xff]
    %v110 = vld [vmem:[%s4 + $0x50] sm:$0xff]
    %v111 = vld [vmem:[%s4 + $0x58] sm:$0xff]
    %v112 = vld [vmem:[%s4 + $0x60] sm:$0xff]
    %v113 = vld [vmem:[%s4 + $0x68] sm:$0xff]
    %v114 = vld [vmem:[%s4 + $0x70] sm:$0xff]
    %v115 = vld [vmem:[%s4 + $0x78] sm:$0xff]
    %v116 = vld [vmem:[%s4 + $0x80] sm:$0xff]
    %v117 = vld [vmem:[%s4 + $0x88] sm:$0xff]
    %v118 = vld [vmem:[%s4 + $0x90] sm:$0xff]
    %v119 = vld [vmem:[%s4 + $0x98] sm:$0xff]
    %v120 = vld [vmem:[%s4 + $0xa0] sm:$0xff]
    %v121 = vld [vmem:[%s4 + $0xa8] sm:$0xff]
    %v122 = vld [vmem:[%s4 + $0xb0] sm:$0xff]
    %v123 = vld [vmem:[%s4 + $0xb8] sm:$0xff]
    %v124 = vld [vmem:[%s4 + $0xc0] sm:$0xff]
    %v125 = vld [vmem:[%s4 + $0xc8] sm:$0xff]
    %v126 = vld [vmem:[%s4 + $0xd0] sm:$0xff]
    %v127 = vld [vmem:[%s4 + $0xd8] sm:$0xff]
    %v128 = vld [vmem:[%s4 + $0xe0] sm:$0xff]
    %v129 = vld [vmem:[%s4 + $0xe8] sm:$0xff]
    %v130 = vld [vmem:[%s4 + $0xf0] sm:$0xff]
    %v131 = vld [vmem:[%s4 + $0xf8] sm:$0xff]
    %v132 = vld [vmem:[%s4 + $0x100] sm:$0xff]
    %v133 = vld [vmem:[%s4 + $0x108] sm:$0xff]
    %v134 = vld [vmem:[%s4 + $0x110] sm:$0xff]
    %v135 = vld [vmem:[%s4 + $0x118] sm:$0xff]
    %v136 = vld [vmem:[%s4 + $0x120] sm:$0xff]
    %v137 = vld [vmem:[%s4 + $0x128] sm:$0xff]
    %v138 = vld [vmem:[%s4 + $0x130] sm:$0xff]
    %v139 = vld [vmem:[%s4 + $0x138] sm:$0xff]
    %v140 = vld [vmem:[%s4 + $0x140] sm:$0xff]
    %v141 = vld [vmem:[%s4 + $0x148] sm:$0xff]
    %v142 = vld [vmem:[%s4 + $0x150] sm:$0xff]
    %v143 = vld [vmem:[%s4 + $0x158] sm:$0xff]
    %v144 = vld [vmem:[%s4 + $0x160] sm:$0xff]
    %v145 = vld [vmem:[%s4 + $0x168] sm:$0xff]
    %v146 = vld [vmem:[%s4 + $0x170] sm:$0xff]
    %v147 = vld [vmem:[%s4 + $0x178] sm:$0xff]
    %v148 = vld [vmem:[%s4 + $0x180] sm:$0xff]
    %v149 = vld [vmem:[%s4 + $0x188] sm:$0xff]
    %v150 = vld [vmem:[%s4 + $0x190] sm:$0xff]
    %v151 = vld [vmem:[%s4 + $0x198] sm:$0xff]
    %v152 = vld [vmem:[%s4 + $0x1a0] sm:$0xff]
    %v153 = vld [vmem:[%s4 + $0x1a8] sm:$0xff]
    %v154 = vld [vmem:[%s4 + $0x1b0] sm:$0xff]
    %v155 = vld [vmem:[%s4 + $0x1b8] sm:$0xff]
    %v156 = vld [vmem:[%s4 + $0x1c0] sm:$0xff]
    %v157 = vld [vmem:[%s4 + $0x1c8] sm:$0xff]
    %v158 = vld [vmem:[%s4 + $0x1d0] sm:$0xff]
    %v159 = vld [vmem:[%s4 + $0x1d8] sm:$0xff]
    %v160 = vld [vmem:[%s4 + $0x1e0] sm:$0xff]
    %v161 = vld [vmem:[%s4 + $0x1e8] sm:$0xff]
    %v162 = vld [vmem:[%s4 + $0x1f0] sm:$0xff]
    %v163 = vld [vmem:[%s4 + $0x1f8] sm:$0xff]
    %v164 = vld [vmem:[%s5] sm:$0xff]
    %v165 = vld [vmem:[%s5 + $0x8] sm:$0xff]
    %v166 = vld [vmem:[%s5 + $0x10] sm:$0xff]
    %v167 = vld [vmem:[%s5 + $0x18] sm:$0xff]
    %v168 = vld [vmem:[%s5 + $0x20] sm:$0xff]
    %v169 = vld [vmem:[%s5 + $0x28] sm:$0xff]
    %v170 = vld [vmem:[%s5 + $0x30] sm:$0xff]
    %v171 = vld [vmem:[%s5 + $0x38] sm:$0xff]
    %v172 = vld [vmem:[%s5 + $0x40] sm:$0xff]
    %v173 = vld [vmem:[%s5 + $0x48] sm:$0xff]
    %v174 = vld [vmem:[%s5 + $0x50] sm:$0xff]
    %v175 = vld [vmem:[%s5 + $0x58] sm:$0xff]
    %v176 = vld [vmem:[%s5 + $0x60] sm:$0xff]
    %v177 = vld [vmem:[%s5 + $0x68] sm:$0xff]
    %v178 = vld [vmem:[%s5 + $0x70] sm:$0xff]
    %v179 = vld [vmem:[%s5 + $0x78] sm:$0xff]
    %v180 = vld [vmem:[%s5 + $0x80] sm:$0xff]
    %v181 = vld [vmem:[%s5 + $0x88] sm:$0xff]
    %v182 = vld [vmem:[%s5 + $0x90] sm:$0xff]
    %v183 = vld [vmem:[%s5 + $0x98] sm:$0xff]
    %v184 = vld [vmem:[%s5 + $0xa0] sm:$0xff]
    %v185 = vld [vmem:[%s5 + $0xa8] sm:$0xff]
    %v186 = vld [vmem:[%s5 + $0xb0] sm:$0xff]
    %v187 = vld [vmem:[%s5 + $0xb8] sm:$0xff]
    %v188 = vld [vmem:[%s5 + $0xc0] sm:$0xff]
    %v189 = vld [vmem:[%s5 + $0xc8] sm:$0xff]
    %v190 = vld [vmem:[%s5 + $0xd0] sm:$0xff]
    %v191 = vld [vmem:[%s5 + $0xd8] sm:$0xff]
    %v192 = vld [vmem:[%s5 + $0xe0] sm:$0xff]
    %v193 = vld [vmem:[%s5 + $0xe8] sm:$0xff]
    %v194 = vld [vmem:[%s5 + $0xf0] sm:$0xff]
    %v195 = vld [vmem:[%s5 + $0xf8] sm:$0xff]
    %v196 = vld [vmem:[%s5 + $0x100] sm:$0xff]
    %v197 = vld [vmem:[%s5 + $0x108] sm:$0xff]
    %v198 = vld [vmem:[%s5 + $0x110] sm:$0xff]
    %v199 = vld [vmem:[%s5 + $0x118] sm:$0xff]
    %v200 = vld [vmem:[%s5 + $0x120] sm:$0xff]
    %v201 = vld [vmem:[%s5 + $0x128] sm:$0xff]
    %v202 = vld [vmem:[%s5 + $0x130] sm:$0xff]
    %v203 = vld [vmem:[%s5 + $0x138] sm:$0xff]
    %v204 = vld [vmem:[%s5 + $0x140] sm:$0xff]
    %v205 = vld [vmem:[%s5 + $0x148] sm:$0xff]
    %v206 = vld [vmem:[%s5 + $0x150] sm:$0xff]
    %v207 = vld [vmem:[%s5 + $0x158] sm:$0xff]
    %v208 = vld [vmem:[%s5 + $0x160] sm:$0xff]
    %v209 = vld [vmem:[%s5 + $0x168] sm:$0xff]
    %v210 = vld [vmem:[%s5 + $0x170] sm:$0xff]
    %v211 = vld [vmem:[%s5 + $0x178] sm:$0xff]
    %v212 = vld [vmem:[%s5 + $0x180] sm:$0xff]
    %v213 = vld [vmem:[%s5 + $0x188] sm:$0xff]
    %v214 = vld [vmem:[%s5 + $0x190] sm:$0xff]
    %v215 = vld [vmem:[%s5 + $0x198] sm:$0xff]
    %v216 = vld [vmem:[%s5 + $0x1a0] sm:$0xff]
    %v217 = vld [vmem:[%s5 + $0x1a8] sm:$0xff]
    %v218 = vld [vmem:[%s5 + $0x1b0] sm:$0xff]
    %v219 = vld [vmem:[%s5 + $0x1b8] sm:$0xff]
    %v220 = vld [vmem:[%s5 + $0x1c0] sm:$0xff]
    %v221 = vld [vmem:[%s5 + $0x1c8] sm:$0xff]
    %v222 = vld [vmem:[%s5 + $0x1d0] sm:$0xff]
    %v223 = vld [vmem:[%s5 + $0x1d8] sm:$0xff]
    %v224 = vld [vmem:[%s5 + $0x1e0] sm:$0xff]
    %v225 = vld [vmem:[%s5 + $0x1e8] sm:$0xff]
    %v226 = vld [vmem:[%s5 + $0x1f0] sm:$0xff]
    %v227 = vld [vmem:[%s5 + $0x1f8] sm:$0xff]
    %v228 = vld [vmem:[%s6] sm:$0xf]
    %v229 = vld [vmem:[%s0] sm:$0x3]
    %230 = vmatprep.subr.mxu0 %v36
    %231 = vmatpush1.msra.mxu0 %v35
    %232 = vmatprep.subr.mxu0 %v40
    %233 = vmatpush1.msra.mxu0 %v39
    %234 = vmatprep.subr.mxu0 %v44
    %235 = vmatpush1.msra.mxu0 %v43
    %236 = vmatprep.subr.mxu0 %v48
    %237 = vmatpush1.msra.mxu0 %v47
    %238 = vmatprep.subr.mxu0 %v52
    %239 = vmatpush1.msra.mxu0 %v51
    %240 = vmatprep.subr.mxu0 %v56
    %241 = vmatpush1.msra.mxu0 %v55
    %242 = vmatprep.subr.mxu0 %v60
    %243 = vmatpush1.msra.mxu0 %v59
    %244 = vmatprep.subr.mxu0 %v64
    %245 = vmatpush1.msra.mxu0 %v63
    %246 = vmatprep.subr.mxu0 %v68
    %247 = vmatpush1.msra.mxu0 %v67
    %248 = vmatprep.subr.mxu0 %v72
    %249 = vmatpush1.msra.mxu0 %v71
    %250 = vmatprep.subr.mxu0 %v76
    %251 = vmatpush1.msra.mxu0 %v75
    %252 = vmatprep.subr.mxu0 %v80
    %253 = vmatpush1.msra.mxu0 %v79
    %254 = vmatprep.subr.mxu0 %v84
    %255 = vmatpush1.msra.mxu0 %v83
    %256 = vmatprep.subr.mxu0 %v88
    %257 = vmatpush1.msra.mxu0 %v87
    %258 = vmatprep.subr.mxu0 %v92
    %259 = vmatpush1.msra.mxu0 %v91
    %260 = vmatprep.subr.mxu0 %v96
    %261 = vmatpush1.msra.mxu0 %v95
    %262 = vmatprep.subr.mxu0 0.0
    %263 = vmatpush1.msra.mxu0 0.0
    %264 = vmatprep.subr.mxu0 0.0
    %265 = vmatpush1.msra.mxu0 0.0
    %266 = vmatprep.subr.mxu0 0.0
    %267 = vmatpush1.msra.mxu0 0.0
    %268 = vmatprep.subr.mxu0 0.0
    %269 = vmatpush1.msra.mxu0 0.0
    %270 = vmatprep.subr.mxu0 0.0
    %271 = vmatpush1.msra.mxu0 0.0
    %272 = vmatprep.subr.mxu0 0.0
    %273 = vmatpush1.msra.mxu0 0.0
    %274 = vmatprep.subr.mxu0 0.0
    %275 = vmatpush1.msra.mxu0 0.0
    %276 = vmatprep.subr.mxu0 0.0
    %277 = vmatpush1.msra.mxu0 0.0
    %278 = vmatprep.subr.mxu0 0.0
    %279 = vmatpush1.msra.mxu0 0.0
    %280 = vmatprep.subr.mxu0 0.0
    %281 = vmatpush1.msra.mxu0 0.0
    %282 = vmatprep.subr.mxu0 0.0
    %283 = vmatpush1.msra.mxu0 0.0
    %284 = vmatprep.subr.mxu0 0.0
    %285 = vmatpush1.msra.mxu0 0.0
    %286 = vmatprep.subr.mxu0 0.0
    %287 = vmatpush1.msra.mxu0 0.0
    %288 = vmatprep.subr.mxu0 0.0
    %289 = vmatpush1.msra.mxu0 0.0
    %290 = vmatprep.subr.mxu0 0.0
    %291 = vmatpush1.msra.mxu0 0.0
    %292 = vmatprep.subr.mxu0 0.0
    %293 = vmatpush1.msra.mxu0 0.0
    %294 = vmatprep.mubr.f32.mxu0 0.0
    %295 = vmatmul.mubr.f32.gmra.mrb[0].mxu0 0.0
    %v296 = vpop.f32.mrb[0].mxu0
    %v297 = vadd.f32 0.0, %v296
    %v298 = vpop.f32.mrb[0].mxu0
    %v299 = vadd.f32 0.0, %v298
    %300 = vdwg.mxu0
    %301 = vmatprep.subr.mxu0 %v38
    %302 = vmatpush1.msra.mxu0 %v37
    %303 = vmatprep.subr.mxu0 %v42
    %304 = vmatpush1.msra.mxu0 %v41
    %305 = vmatprep.subr.mxu0 %v46
    %306 = vmatpush1.msra.mxu0 %v45
    %307 = vmatprep.subr.mxu0 %v50
    %308 = vmatpush1.msra.mxu0 %v49
    %309 = vmatprep.subr.mxu0 %v54
    %310 = vmatpush1.msra.mxu0 %v53
    %311 = vmatprep.subr.mxu0 %v58
    %312 = vmatpush1.msra.mxu0 %v57
    %313 = vmatprep.subr.mxu0 %v62
    %314 = vmatpush1.msra.mxu0 %v61
    %315 = vmatprep.subr.mxu0 %v66
    %316 = vmatpush1.msra.mxu0 %v65
    %317 = vmatprep.subr.mxu0 %v70
    %318 = vmatpush1.msra.mxu0 %v69
    %319 = vmatprep.subr.mxu0 %v74
    %320 = vmatpush1.msra.mxu0 %v73
    %321 = vmatprep.subr.mxu0 %v78
    %322 = vmatpush1.msra.mxu0 %v77
    %323 = vmatprep.subr.mxu0 %v82
    %324 = vmatpush1.msra.mxu0 %v81
    %325 = vmatprep.subr.mxu0 %v86
    %326 = vmatpush1.msra.mxu0 %v85
    %327 = vmatprep.subr.mxu0 %v90
    %328 = vmatpush1.msra.mxu0 %v89
    %329 = vmatprep.subr.mxu0 %v94
    %330 = vmatpush1.msra.mxu0 %v93
    %331 = vmatprep.subr.mxu0 %v98
    %332 = vmatpush1.msra.mxu0 %v97
    %333 = vmatprep.subr.mxu0 0.0
    %334 = vmatpush1.msra.mxu0 0.0
    %335 = vmatprep.subr.mxu0 0.0
    %336 = vmatpush1.msra.mxu0 0.0
    %337 = vmatprep.subr.mxu0 0.0
    %338 = vmatpush1.msra.mxu0 0.0
    %339 = vmatprep.subr.mxu0 0.0
    %340 = vmatpush1.msra.mxu0 0.0
    %341 = vmatprep.subr.mxu0 0.0
    %342 = vmatpush1.msra.mxu0 0.0
    %343 = vmatprep.subr.mxu0 0.0
    %344 = vmatpush1.msra.mxu0 0.0
    %345 = vmatprep.subr.mxu0 0.0
    %346 = vmatpush1.msra.mxu0 0.0
    %347 = vmatprep.subr.mxu0 0.0
    %348 = vmatpush1.msra.mxu0 0.0
    %349 = vmatprep.subr.mxu0 0.0
    %350 = vmatpush1.msra.mxu0 0.0
    %351 = vmatprep.subr.mxu0 0.0
    %352 = vmatpush1.msra.mxu0 0.0
    %353 = vmatprep.subr.mxu0 0.0
    %354 = vmatpush1.msra.mxu0 0.0
    %355 = vmatprep.subr.mxu0 0.0
    %356 = vmatpush1.msra.mxu0 0.0
    %357 = vmatprep.subr.mxu0 0.0
    %358 = vmatpush1.msra.mxu0 0.0
    %359 = vmatprep.subr.mxu0 0.0
    %360 = vmatpush1.msra.mxu0 0.0
    %361 = vmatprep.subr.mxu0 0.0
    %362 = vmatpush1.msra.mxu0 0.0
    %363 = vmatprep.subr.mxu0 0.0
    %364 = vmatpush1.msra.mxu0 0.0
    %365 = vmatprep.mubr.f32.mxu0 0.0
    %366 = vmatmul.mubr.f32.gmra.mrb[0].mxu0 0.0
    %v367 = vpop.f32.mrb[0].mxu0
    %v368 = vadd.f32 0.0, %v367
    %v369 = vpop.f32.mrb[0].mxu0
    %v370 = vadd.f32 0.0, %v369
    %371 = vdwg.mxu0
    %v374 = vcombine.high %v33, %v33
    %v375 = vcombine.high %v34, %v34
    %vm376 = vcmask 31744
    %v378 = vsel %vm376, %v229, 0
    %vm380 = vcmask 1043456
    %v381 = vsel %vm380, %v33, 0
    %v383 = vsel %vm380, %v374, 0
    %v385 = vsel %vm380, %v34, 0
    %v387 = vsel %vm380, %v375, 0
    %389 = vmatprep.subr.mxu0 %v383
    %390 = vmatpush1.msra.mxu0 %v381
    %391 = vmatprep.subr.mxu0 0.0
    %392 = vmatpush1.msra.mxu0 0.0
    %393 = vmatprep.subr.mxu0 0.0
    %394 = vmatpush1.msra.mxu0 0.0
    %395 = vmatprep.subr.mxu0 0.0
    %396 = vmatpush1.msra.mxu0 0.0
    %397 = vmatprep.subr.mxu0 0.0
    %398 = vmatpush1.msra.mxu0 0.0
    %399 = vmatprep.subr.mxu0 0.0
    %400 = vmatpush1.msra.mxu0 0.0
    %401 = vmatprep.subr.mxu0 0.0
    %402 = vmatpush1.msra.mxu0 0.0
    %403 = vmatprep.subr.mxu0 0.0
    %404 = vmatpush1.msra.mxu0 0.0
    %405 = vmatprep.subr.mxu0 0.0
    %406 = vmatpush1.msra.mxu0 0.0
    %407 = vmatprep.subr.mxu0 0.0
    %408 = vmatpush1.msra.mxu0 0.0
    %409 = vmatprep.subr.mxu0 0.0
    %410 = vmatpush1.msra.mxu0 0.0
    %411 = vmatprep.subr.mxu0 0.0
    %412 = vmatpush1.msra.mxu0 0.0
    %413 = vmatprep.subr.mxu0 0.0
    %414 = vmatpush1.msra.mxu0 0.0
    %415 = vmatprep.subr.mxu0 0.0
    %416 = vmatpush1.msra.mxu0 0.0
    %417 = vmatprep.subr.mxu0 0.0
    %418 = vmatpush1.msra.mxu0 0.0
    %419 = vmatprep.subr.mxu0 0.0
    %420 = vmatpush1.msra.mxu0 0.0
    %421 = vmatprep.subr.mxu0 0.0
    %422 = vmatpush1.msra.mxu0 0.0
    %423 = vmatprep.subr.mxu0 0.0
    %424 = vmatpush1.msra.mxu0 0.0
    %425 = vmatprep.subr.mxu0 0.0
    %426 = vmatpush1.msra.mxu0 0.0
    %427 = vmatprep.subr.mxu0 0.0
    %428 = vmatpush1.msra.mxu0 0.0
    %429 = vmatprep.subr.mxu0 0.0
    %430 = vmatpush1.msra.mxu0 0.0
    %431 = vmatprep.subr.mxu0 0.0
    %432 = vmatpush1.msra.mxu0 0.0
    %433 = vmatprep.subr.mxu0 0.0
    %434 = vmatpush1.msra.mxu0 0.0
    %435 = vmatprep.subr.mxu0 0.0
    %436 = vmatpush1.msra.mxu0 0.0
    %437 = vmatprep.subr.mxu0 0.0
    %438 = vmatpush1.msra.mxu0 0.0
    %439 = vmatprep.subr.mxu0 0.0
    %440 = vmatpush1.msra.mxu0 0.0
    %441 = vmatprep.subr.mxu0 0.0
    %442 = vmatpush1.msra.mxu0 0.0
    %443 = vmatprep.subr.mxu0 0.0
    %444 = vmatpush1.msra.mxu0 0.0
    %445 = vmatprep.subr.mxu0 0.0
    %446 = vmatpush1.msra.mxu0 0.0
    %447 = vmatprep.subr.mxu0 0.0
    %448 = vmatpush1.msra.mxu0 0.0
    %449 = vmatprep.subr.mxu0 0.0
    %450 = vmatpush1.msra.mxu0 0.0
    %451 = vmatprep.subr.mxu0 0.0
    %452 = vmatpush1.msra.mxu0 0.0
    %453 = vmatprep.mubr.f32.mxu0 0.0
    %454 = vmatmul.mubr.f32.gmra.mrb[0].mxu0 %v378
    %v455 = vpop.f32.mrb[0].mxu0
    %v456 = vadd.f32 %v297, %v455
    %v457 = vpop.f32.mrb[0].mxu0
    %v458 = vadd.f32 %v299, %v457
    %459 = vdwg.mxu0
    %460 = vmatprep.subr.mxu0 %v387
    %461 = vmatpush1.msra.mxu0 %v385
    %462 = vmatprep.subr.mxu0 0.0
    %463 = vmatpush1.msra.mxu0 0.0
    %464 = vmatprep.subr.mxu0 0.0
    %465 = vmatpush1.msra.mxu0 0.0
    %466 = vmatprep.subr.mxu0 0.0
    %467 = vmatpush1.msra.mxu0 0.0
    %468 = vmatprep.subr.mxu0 0.0
    %469 = vmatpush1.msra.mxu0 0.0
    %470 = vmatprep.subr.mxu0 0.0
    %471 = vmatpush1.msra.mxu0 0.0
    %472 = vmatprep.subr.mxu0 0.0
    %473 = vmatpush1.msra.mxu0 0.0
    %474 = vmatprep.subr.mxu0 0.0
    %475 = vmatpush1.msra.mxu0 0.0
    %476 = vmatprep.subr.mxu0 0.0
    %477 = vmatpush1.msra.mxu0 0.0
    %478 = vmatprep.subr.mxu0 0.0
    %479 = vmatpush1.msra.mxu0 0.0
    %480 = vmatprep.subr.mxu0 0.0
    %481 = vmatpush1.msra.mxu0 0.0
    %482 = vmatprep.subr.mxu0 0.0
    %483 = vmatpush1.msra.mxu0 0.0
    %484 = vmatprep.subr.mxu0 0.0
    %485 = vmatpush1.msra.mxu0 0.0
    %486 = vmatprep.subr.mxu0 0.0
    %487 = vmatpush1.msra.mxu0 0.0
    %488 = vmatprep.subr.mxu0 0.0
    %489 = vmatpush1.msra.mxu0 0.0
    %490 = vmatprep.subr.mxu0 0.0
    %491 = vmatpush1.msra.mxu0 0.0
    %492 = vmatprep.subr.mxu0 0.0
    %493 = vmatpush1.msra.mxu0 0.0
    %494 = vmatprep.subr.mxu0 0.0
    %495 = vmatpush1.msra.mxu0 0.0
    %496 = vmatprep.subr.mxu0 0.0
    %497 = vmatpush1.msra.mxu0 0.0
    %498 = vmatprep.subr.mxu0 0.0
    %499 = vmatpush1.msra.mxu0 0.0
    %500 = vmatprep.subr.mxu0 0.0
    %501 = vmatpush1.msra.mxu0 0.0
    %502 = vmatprep.subr.mxu0 0.0
    %503 = vmatpush1.msra.mxu0 0.0
    %504 = vmatprep.subr.mxu0 0.0
    %505 = vmatpush1.msra.mxu0 0.0
    %506 = vmatprep.subr.mxu0 0.0
    %507 = vmatpush1.msra.mxu0 0.0
    %508 = vmatprep.subr.mxu0 0.0
    %509 = vmatpush1.msra.mxu0 0.0
    %510 = vmatprep.subr.mxu0 0.0
    %511 = vmatpush1.msra.mxu0 0.0
    %512 = vmatprep.subr.mxu0 0.0
    %513 = vmatpush1.msra.mxu0 0.0
    %514 = vmatprep.subr.mxu0 0.0
    %515 = vmatpush1.msra.mxu0 0.0
    %516 = vmatprep.subr.mxu0 0.0
    %517 = vmatpush1.msra.mxu0 0.0
    %518 = vmatprep.subr.mxu0 0.0
    %519 = vmatpush1.msra.mxu0 0.0
    %520 = vmatprep.subr.mxu0 0.0
    %521 = vmatpush1.msra.mxu0 0.0
    %522 = vmatprep.subr.mxu0 0.0
    %523 = vmatpush1.msra.mxu0 0.0
    %524 = vmatprep.mubr.f32.mxu0 0.0
    %525 = vmatmul.mubr.f32.gmra.mrb[0].mxu0 %v378
    %v526 = vpop.f32.mrb[0].mxu0
    %v527 = vadd.f32 %v368, %v526
    %v528 = vpop.f32.mrb[0].mxu0
    %v529 = vadd.f32 %v370, %v528
    %530 = vdwg.mxu0
    %v532 = vlaneseq
    %v533 = vshrl.u32 %v532, 7
    %v534 = vsub.s32 0, %v533
    %v535 = vrot.slane %v99, %v534
    %v536 = vlaneseq
    %v537 = vshrl.u32 %v536, 7
    %v538 = vsub.s32 1, %v537
    %v539 = vrot.slane %v99, %v538
    %v540 = vlaneseq
    %v541 = vshrl.u32 %v540, 7
    %v542 = vsub.s32 2, %v541
    %v543 = vrot.slane %v99, %v542
    %v544 = vlaneseq
    %v545 = vshrl.u32 %v544, 7
    %v546 = vsub.s32 3, %v545
    %v547 = vrot.slane %v99, %v546
    %v552 = vadd.f32 %v456, %v535
    %v553 = vadd.f32 %v458, %v539
    %v554 = vadd.f32 %v527, %v543
    %v555 = vadd.f32 %v529, %v547
    %v556 = vxor.u32 %v552, 2147483648
    %v557 = vmul.f32 %v556, 1.442695
    %v558 = vpow.pop %v557
    %v559 = vadd.f32 %v558, 1.0
    %v560 = vrcp.pop %v559
    %v561 = vmul.f32 1.0, %v560
    %v562 = vxor.u32 %v553, 2147483648
    %v563 = vmul.f32 %v562, 1.442695
    %v564 = vpow.pop %v563
    %v565 = vadd.f32 %v564, 1.0
    %v566 = vrcp.pop %v565
    %v567 = vmul.f32 1.0, %v566
    %v568 = vtanh.pop %v554
    %v569 = vxor.u32 %v555, 2147483648
    %v570 = vmul.f32 %v569, 1.442695
    %v571 = vpow.pop %v570
    %v572 = vadd.f32 %v571, 1.0
    %v573 = vrcp.pop %v572
    %v574 = vmul.f32 1.0, %v573
    %v575 = vmul.f32 %v567, 0.0
    %v576 = vmul.f32 %v561, %v568
    %v577 = vadd.f32 %v575, %v576
    %v578 = vtanh.pop %v577
    %v579 = vmul.f32 %v574, %v578
    %580 = vmatprep.subr.mxu0 %v165
    %581 = vmatpush1.msra.mxu0 %v164
    %582 = vmatprep.subr.mxu0 %v169
    %583 = vmatpush1.msra.mxu0 %v168
    %584 = vmatprep.subr.mxu0 %v173
    %585 = vmatpush1.msra.mxu0 %v172
    %586 = vmatprep.subr.mxu0 %v177
    %587 = vmatpush1.msra.mxu0 %v176
    %588 = vmatprep.subr.mxu0 %v181
    %589 = vmatpush1.msra.mxu0 %v180
    %590 = vmatprep.subr.mxu0 %v185
    %591 = vmatpush1.msra.mxu0 %v184
    %592 = vmatprep.subr.mxu0 %v189
    %593 = vmatpush1.msra.mxu0 %v188
    %594 = vmatprep.subr.mxu0 %v193
    %595 = vmatpush1.msra.mxu0 %v192
    %596 = vmatprep.subr.mxu0 %v197
    %597 = vmatpush1.msra.mxu0 %v196
    %598 = vmatprep.subr.mxu0 %v201
    %599 = vmatpush1.msra.mxu0 %v200
    %600 = vmatprep.subr.mxu0 %v205
    %601 = vmatpush1.msra.mxu0 %v204
    %602 = vmatprep.subr.mxu0 %v209
    %603 = vmatpush1.msra.mxu0 %v208
    %604 = vmatprep.subr.mxu0 %v213
    %605 = vmatpush1.msra.mxu0 %v212
    %606 = vmatprep.subr.mxu0 %v217
    %607 = vmatpush1.msra.mxu0 %v216
    %608 = vmatprep.subr.mxu0 %v221
    %609 = vmatpush1.msra.mxu0 %v220
    %610 = vmatprep.subr.mxu0 %v225
    %611 = vmatpush1.msra.mxu0 %v224
    %612 = vmatprep.subr.mxu0 0.0
    %613 = vmatpush1.msra.mxu0 0.0
    %614 = vmatprep.subr.mxu0 0.0
    %615 = vmatpush1.msra.mxu0 0.0
    %616 = vmatprep.subr.mxu0 0.0
    %617 = vmatpush1.msra.mxu0 0.0
    %618 = vmatprep.subr.mxu0 0.0
    %619 = vmatpush1.msra.mxu0 0.0
    %620 = vmatprep.subr.mxu0 0.0
    %621 = vmatpush1.msra.mxu0 0.0
    %622 = vmatprep.subr.mxu0 0.0
    %623 = vmatpush1.msra.mxu0 0.0
    %624 = vmatprep.subr.mxu0 0.0
    %625 = vmatpush1.msra.mxu0 0.0
    %626 = vmatprep.subr.mxu0 0.0
    %627 = vmatpush1.msra.mxu0 0.0
    %628 = vmatprep.subr.mxu0 0.0
    %629 = vmatpush1.msra.mxu0 0.0
    %630 = vmatprep.subr.mxu0 0.0
    %631 = vmatpush1.msra.mxu0 0.0
    %632 = vmatprep.subr.mxu0 0.0
    %633 = vmatpush1.msra.mxu0 0.0
    %634 = vmatprep.subr.mxu0 0.0
    %635 = vmatpush1.msra.mxu0 0.0
    %636 = vmatprep.subr.mxu0 0.0
    %637 = vmatpush1.msra.mxu0 0.0
    %638 = vmatprep.subr.mxu0 0.0
    %639 = vmatpush1.msra.mxu0 0.0
    %640 = vmatprep.subr.mxu0 0.0
    %641 = vmatpush1.msra.mxu0 0.0
    %642 = vmatprep.subr.mxu0 0.0
    %643 = vmatpush1.msra.mxu0 0.0
    %644 = vmatprep.mubr.f32.mxu0 0.0
    %645 = vmatmul.mubr.f32.gmra.mrb[0].mxu0 0.0
    %v646 = vpop.f32.mrb[0].mxu0
    %v647 = vadd.f32 0.0, %v646
    %v648 = vpop.f32.mrb[0].mxu0
    %v649 = vadd.f32 0.0, %v648
    %650 = vdwg.mxu0
    %651 = vmatprep.subr.mxu0 %v167
    %652 = vmatpush1.msra.mxu0 %v166
    %653 = vmatprep.subr.mxu0 %v171
    %654 = vmatpush1.msra.mxu0 %v170
    %655 = vmatprep.subr.mxu0 %v175
    %656 = vmatpush1.msra.mxu0 %v174
    %657 = vmatprep.subr.mxu0 %v179
    %658 = vmatpush1.msra.mxu0 %v178
    %659 = vmatprep.subr.mxu0 %v183
    %660 = vmatpush1.msra.mxu0 %v182
    %661 = vmatprep.subr.mxu0 %v187
    %662 = vmatpush1.msra.mxu0 %v186
    %663 = vmatprep.subr.mxu0 %v191
    %664 = vmatpush1.msra.mxu0 %v190
    %665 = vmatprep.subr.mxu0 %v195
    %666 = vmatpush1.msra.mxu0 %v194
    %667 = vmatprep.subr.mxu0 %v199
    %668 = vmatpush1.msra.mxu0 %v198
    %669 = vmatprep.subr.mxu0 %v203
    %670 = vmatpush1.msra.mxu0 %v202
    %671 = vmatprep.subr.mxu0 %v207
    %672 = vmatpush1.msra.mxu0 %v206
    %673 = vmatprep.subr.mxu0 %v211
    %674 = vmatpush1.msra.mxu0 %v210
    %675 = vmatprep.subr.mxu0 %v215
    %676 = vmatpush1.msra.mxu0 %v214
    %677 = vmatprep.subr.mxu0 %v219
    %678 = vmatpush1.msra.mxu0 %v218
    %679 = vmatprep.subr.mxu0 %v223
    %680 = vmatpush1.msra.mxu0 %v222
    %681 = vmatprep.subr.mxu0 %v227
    %682 = vmatpush1.msra.mxu0 %v226
    %683 = vmatprep.subr.mxu0 0.0
    %684 = vmatpush1.msra.mxu0 0.0
    %685 = vmatprep.subr.mxu0 0.0
    %686 = vmatpush1.msra.mxu0 0.0
    %687 = vmatprep.subr.mxu0 0.0
    %688 = vmatpush1.msra.mxu0 0.0
    %689 = vmatprep.subr.mxu0 0.0
    %690 = vmatpush1.msra.mxu0 0.0
    %691 = vmatprep.subr.mxu0 0.0
    %692 = vmatpush1.msra.mxu0 0.0
    %693 = vmatprep.subr.mxu0 0.0
    %694 = vmatpush1.msra.mxu0 0.0
    %695 = vmatprep.subr.mxu0 0.0
    %696 = vmatpush1.msra.mxu0 0.0
    %697 = vmatprep.subr.mxu0 0.0
    %698 = vmatpush1.msra.mxu0 0.0
    %699 = vmatprep.subr.mxu0 0.0
    %700 = vmatpush1.msra.mxu0 0.0
    %701 = vmatprep.subr.mxu0 0.0
    %702 = vmatpush1.msra.mxu0 0.0
    %703 = vmatprep.subr.mxu0 0.0
    %704 = vmatpush1.msra.mxu0 0.0
    %705 = vmatprep.subr.mxu0 0.0
    %706 = vmatpush1.msra.mxu0 0.0
    %707 = vmatprep.subr.mxu0 0.0
    %708 = vmatpush1.msra.mxu0 0.0
    %709 = vmatprep.subr.mxu0 0.0
    %710 = vmatpush1.msra.mxu0 0.0
    %711 = vmatprep.subr.mxu0 0.0
    %712 = vmatpush1.msra.mxu0 0.0
    %713 = vmatprep.subr.mxu0 0.0
    %714 = vmatpush1.msra.mxu0 0.0
    %715 = vmatprep.mubr.f32.mxu0 0.0
    %716 = vmatmul.mubr.f32.gmra.mrb[0].mxu0 0.0
    %v717 = vpop.f32.mrb[0].mxu0
    %v718 = vadd.f32 0.0, %v717
    %v719 = vpop.f32.mrb[0].mxu0
    %v720 = vadd.f32 0.0, %v719
    %721 = vdwg.mxu0
    %722 = vmatprep.subr.mxu0 %v101
    %723 = vmatpush1.msra.mxu0 %v100
    %724 = vmatprep.subr.mxu0 %v105
    %725 = vmatpush1.msra.mxu0 %v104
    %726 = vmatprep.subr.mxu0 %v109
    %727 = vmatpush1.msra.mxu0 %v108
    %728 = vmatprep.subr.mxu0 %v113
    %729 = vmatpush1.msra.mxu0 %v112
    %730 = vmatprep.subr.mxu0 %v117
    %731 = vmatpush1.msra.mxu0 %v116
    %732 = vmatprep.subr.mxu0 %v121
    %733 = vmatpush1.msra.mxu0 %v120
    %734 = vmatprep.subr.mxu0 %v125
    %735 = vmatpush1.msra.mxu0 %v124
    %736 = vmatprep.subr.mxu0 %v129
    %737 = vmatpush1.msra.mxu0 %v128
    %738 = vmatprep.subr.mxu0 %v133
    %739 = vmatpush1.msra.mxu0 %v132
    %740 = vmatprep.subr.mxu0 %v137
    %741 = vmatpush1.msra.mxu0 %v136
    %742 = vmatprep.subr.mxu0 %v141
    %743 = vmatpush1.msra.mxu0 %v140
    %744 = vmatprep.subr.mxu0 %v145
    %745 = vmatpush1.msra.mxu0 %v144
    %746 = vmatprep.subr.mxu0 %v149
    %747 = vmatpush1.msra.mxu0 %v148
    %748 = vmatprep.subr.mxu0 %v153
    %749 = vmatpush1.msra.mxu0 %v152
    %750 = vmatprep.subr.mxu0 %v157
    %751 = vmatpush1.msra.mxu0 %v156
    %752 = vmatprep.subr.mxu0 %v161
    %753 = vmatpush1.msra.mxu0 %v160
    %754 = vmatprep.subr.mxu0 0.0
    %755 = vmatpush1.msra.mxu0 0.0
    %756 = vmatprep.subr.mxu0 0.0
    %757 = vmatpush1.msra.mxu0 0.0
    %758 = vmatprep.subr.mxu0 0.0
    %759 = vmatpush1.msra.mxu0 0.0
    %760 = vmatprep.subr.mxu0 0.0
    %761 = vmatpush1.msra.mxu0 0.0
    %762 = vmatprep.subr.mxu0 0.0
    %763 = vmatpush1.msra.mxu0 0.0
    %764 = vmatprep.subr.mxu0 0.0
    %765 = vmatpush1.msra.mxu0 0.0
    %766 = vmatprep.subr.mxu0 0.0
    %767 = vmatpush1.msra.mxu0 0.0
    %768 = vmatprep.subr.mxu0 0.0
    %769 = vmatpush1.msra.mxu0 0.0
    %770 = vmatprep.subr.mxu0 0.0
    %771 = vmatpush1.msra.mxu0 0.0
    %772 = vmatprep.subr.mxu0 0.0
    %773 = vmatpush1.msra.mxu0 0.0
    %774 = vmatprep.subr.mxu0 0.0
    %775 = vmatpush1.msra.mxu0 0.0
    %776 = vmatprep.subr.mxu0 0.0
    %777 = vmatpush1.msra.mxu0 0.0
    %778 = vmatprep.subr.mxu0 0.0
    %779 = vmatpush1.msra.mxu0 0.0
    %780 = vmatprep.subr.mxu0 0.0
    %781 = vmatpush1.msra.mxu0 0.0
    %782 = vmatprep.subr.mxu0 0.0
    %783 = vmatpush1.msra.mxu0 0.0
    %784 = vmatprep.subr.mxu0 0.0
    %785 = vmatpush1.msra.mxu0 0.0
    %786 = vmatprep.mubr.f32.mxu0 0.0
    %787 = vmatmul.mubr.f32.gmra.mrb[0].mxu0 %v579
    %v788 = vpop.f32.mrb[0].mxu0
    %v789 = vadd.f32 %v647, %v788
    %v790 = vpop.f32.mrb[0].mxu0
    %v791 = vadd.f32 %v649, %v790
    %792 = vdwg.mxu0
    %793 = vmatprep.subr.mxu0 %v103
    %794 = vmatpush1.msra.mxu0 %v102
    %795 = vmatprep.subr.mxu0 %v107
    %796 = vmatpush1.msra.mxu0 %v106
    %797 = vmatprep.subr.mxu0 %v111
    %798 = vmatpush1.msra.mxu0 %v110
    %799 = vmatprep.subr.mxu0 %v115
    %800 = vmatpush1.msra.mxu0 %v114
    %801 = vmatprep.subr.mxu0 %v119
    %802 = vmatpush1.msra.mxu0 %v118
    %803 = vmatprep.subr.mxu0 %v123
    %804 = vmatpush1.msra.mxu0 %v122
    %805 = vmatprep.subr.mxu0 %v127
    %806 = vmatpush1.msra.mxu0 %v126
    %807 = vmatprep.subr.mxu0 %v131
    %808 = vmatpush1.msra.mxu0 %v130
    %809 = vmatprep.subr.mxu0 %v135
    %810 = vmatpush1.msra.mxu0 %v134
    %811 = vmatprep.subr.mxu0 %v139
    %812 = vmatpush1.msra.mxu0 %v138
    %813 = vmatprep.subr.mxu0 %v143
    %814 = vmatpush1.msra.mxu0 %v142
    %815 = vmatprep.subr.mxu0 %v147
    %816 = vmatpush1.msra.mxu0 %v146
    %817 = vmatprep.subr.mxu0 %v151
    %818 = vmatpush1.msra.mxu0 %v150
    %819 = vmatprep.subr.mxu0 %v155
    %820 = vmatpush1.msra.mxu0 %v154
    %821 = vmatprep.subr.mxu0 %v159
    %822 = vmatpush1.msra.mxu0 %v158
    %823 = vmatprep.subr.mxu0 %v163
    %824 = vmatpush1.msra.mxu0 %v162
    %825 = vmatprep.subr.mxu0 0.0
    %826 = vmatpush1.msra.mxu0 0.0
    %827 = vmatprep.subr.mxu0 0.0
    %828 = vmatpush1.msra.mxu0 0.0
    %829 = vmatprep.subr.mxu0 0.0
    %830 = vmatpush1.msra.mxu0 0.0
    %831 = vmatprep.subr.mxu0 0.0
    %832 = vmatpush1.msra.mxu0 0.0
    %833 = vmatprep.subr.mxu0 0.0
    %834 = vmatpush1.msra.mxu0 0.0
    %835 = vmatprep.subr.mxu0 0.0
    %836 = vmatpush1.msra.mxu0 0.0
    %837 = vmatprep.subr.mxu0 0.0
    %838 = vmatpush1.msra.mxu0 0.0
    %839 = vmatprep.subr.mxu0 0.0
    %840 = vmatpush1.msra.mxu0 0.0
    %841 = vmatprep.subr.mxu0 0.0
    %842 = vmatpush1.msra.mxu0 0.0
    %843 = vmatprep.subr.mxu0 0.0
    %844 = vmatpush1.msra.mxu0 0.0
    %845 = vmatprep.subr.mxu0 0.0
    %846 = vmatpush1.msra.mxu0 0.0
    %847 = vmatprep.subr.mxu0 0.0
    %848 = vmatpush1.msra.mxu0 0.0
    %849 = vmatprep.subr.mxu0 0.0
    %850 = vmatpush1.msra.mxu0 0.0
    %851 = vmatprep.subr.mxu0 0.0
    %852 = vmatpush1.msra.mxu0 0.0
    %853 = vmatprep.subr.mxu0 0.0
    %854 = vmatpush1.msra.mxu0 0.0
    %855 = vmatprep.subr.mxu0 0.0
    %856 = vmatpush1.msra.mxu0 0.0
    %857 = vmatprep.mubr.f32.mxu0 0.0
    %858 = vmatmul.mubr.f32.gmra.mrb[0].mxu0 %v579
    %v859 = vpop.f32.mrb[0].mxu0
    %v860 = vadd.f32 %v718, %v859
    %v861 = vpop.f32.mrb[0].mxu0
    %v862 = vadd.f32 %v720, %v861
    %863 = vdwg.mxu0
    %v865 = vlaneseq
    %v866 = vshrl.u32 %v865, 7
    %v867 = vsub.s32 0, %v866
    %v868 = vrot.slane %v228, %v867
    %v869 = vlaneseq
    %v870 = vshrl.u32 %v869, 7
    %v871 = vsub.s32 1, %v870
    %v872 = vrot.slane %v228, %v871
    %v873 = vlaneseq
    %v874 = vshrl.u32 %v873, 7
    %v875 = vsub.s32 2, %v874
    %v876 = vrot.slane %v228, %v875
    %v877 = vlaneseq
    %v878 = vshrl.u32 %v877, 7
    %v879 = vsub.s32 3, %v878
    %v880 = vrot.slane %v228, %v879
    %v885 = vadd.f32 %v789, %v868
    %v886 = vadd.f32 %v791, %v872
    %v887 = vadd.f32 %v860, %v876
    %v888 = vadd.f32 %v862, %v880
    %v889 = vxor.u32 %v885, 2147483648
    %v890 = vmul.f32 %v889, 1.442695
    %v891 = vpow.pop %v890
    %v892 = vadd.f32 %v891, 1.0
    %v893 = vrcp.pop %v892
    %v894 = vmul.f32 1.0, %v893
    %v895 = vxor.u32 %v886, 2147483648
    %v896 = vmul.f32 %v895, 1.442695
    %v897 = vpow.pop %v896
    %v898 = vadd.f32 %v897, 1.0
    %v899 = vrcp.pop %v898
    %v900 = vmul.f32 1.0, %v899
    %v901 = vtanh.pop %v887
    %v902 = vxor.u32 %v888, 2147483648
    %v903 = vmul.f32 %v902, 1.442695
    %v904 = vpow.pop %v903
    %v905 = vadd.f32 %v904, 1.0
    %v906 = vrcp.pop %v905
    %v907 = vmul.f32 1.0, %v906
    %v908 = vmul.f32 %v900, 0.0
    %v909 = vmul.f32 %v894, %v901
    %v910 = vadd.f32 %v908, %v909
    %v911 = vtanh.pop %v910
    %v912 = vmul.f32 %v907, %v911
    %s913 = scalar_lea.vmem %s0, 2
    %v914 = vld [vmem:[%s913] sm:$0x3]
    %915 = vmatprep.subr.mxu0 %v36
    %916 = vmatpush1.msra.mxu0 %v35
    %917 = vmatprep.subr.mxu0 %v40
    %918 = vmatpush1.msra.mxu0 %v39
    %919 = vmatprep.subr.mxu0 %v44
    %920 = vmatpush1.msra.mxu0 %v43
    %921 = vmatprep.subr.mxu0 %v48
    %922 = vmatpush1.msra.mxu0 %v47
    %923 = vmatprep.subr.mxu0 %v52
    %924 = vmatpush1.msra.mxu0 %v51
    %925 = vmatprep.subr.mxu0 %v56
    %926 = vmatpush1.msra.mxu0 %v55
    %927 = vmatprep.subr.mxu0 %v60
    %928 = vmatpush1.msra.mxu0 %v59
    %929 = vmatprep.subr.mxu0 %v64
    %930 = vmatpush1.msra.mxu0 %v63
    %931 = vmatprep.subr.mxu0 %v68
    %932 = vmatpush1.msra.mxu0 %v67
    %933 = vmatprep.subr.mxu0 %v72
    %934 = vmatpush1.msra.mxu0 %v71
    %935 = vmatprep.subr.mxu0 %v76
    %936 = vmatpush1.msra.mxu0 %v75
    %937 = vmatprep.subr.mxu0 %v80
    %938 = vmatpush1.msra.mxu0 %v79
    %939 = vmatprep.subr.mxu0 %v84
    %940 = vmatpush1.msra.mxu0 %v83
    %941 = vmatprep.subr.mxu0 %v88
    %942 = vmatpush1.msra.mxu0 %v87
    %943 = vmatprep.subr.mxu0 %v92
    %944 = vmatpush1.msra.mxu0 %v91
    %945 = vmatprep.subr.mxu0 %v96
    %946 = vmatpush1.msra.mxu0 %v95
    %947 = vmatprep.subr.mxu0 0.0
    %948 = vmatpush1.msra.mxu0 0.0
    %949 = vmatprep.subr.mxu0 0.0
    %950 = vmatpush1.msra.mxu0 0.0
    %951 = vmatprep.subr.mxu0 0.0
    %952 = vmatpush1.msra.mxu0 0.0
    %953 = vmatprep.subr.mxu0 0.0
    %954 = vmatpush1.msra.mxu0 0.0
    %955 = vmatprep.subr.mxu0 0.0
    %956 = vmatpush1.msra.mxu0 0.0
    %957 = vmatprep.subr.mxu0 0.0
    %958 = vmatpush1.msra.mxu0 0.0
    %959 = vmatprep.subr.mxu0 0.0
    %960 = vmatpush1.msra.mxu0 0.0
    %961 = vmatprep.subr.mxu0 0.0
    %962 = vmatpush1.msra.mxu0 0.0
    %963 = vmatprep.subr.mxu0 0.0
    %964 = vmatpush1.msra.mxu0 0.0
    %965 = vmatprep.subr.mxu0 0.0
    %966 = vmatpush1.msra.mxu0 0.0
    %967 = vmatprep.subr.mxu0 0.0
    %968 = vmatpush1.msra.mxu0 0.0
    %969 = vmatprep.subr.mxu0 0.0
    %970 = vmatpush1.msra.mxu0 0.0
    %971 = vmatprep.subr.mxu0 0.0
    %972 = vmatpush1.msra.mxu0 0.0
    %973 = vmatprep.subr.mxu0 0.0
    %974 = vmatpush1.msra.mxu0 0.0
    %975 = vmatprep.subr.mxu0 0.0
    %976 = vmatpush1.msra.mxu0 0.0
    %977 = vmatprep.subr.mxu0 0.0
    %978 = vmatpush1.msra.mxu0 0.0
    %979 = vmatprep.mubr.f32.mxu0 0.0
    %980 = vmatmul.mubr.f32.gmra.mrb[0].mxu0 %v579
    %v981 = vpop.f32.mrb[0].mxu0
    %v982 = vadd.f32 0.0, %v981
    %v983 = vpop.f32.mrb[0].mxu0
    %v984 = vadd.f32 0.0, %v983
    %985 = vdwg.mxu0
    %986 = vmatprep.subr.mxu0 %v38
    %987 = vmatpush1.msra.mxu0 %v37
    %988 = vmatprep.subr.mxu0 %v42
    %989 = vmatpush1.msra.mxu0 %v41
    %990 = vmatprep.subr.mxu0 %v46
    %991 = vmatpush1.msra.mxu0 %v45
    %992 = vmatprep.subr.mxu0 %v50
    %993 = vmatpush1.msra.mxu0 %v49
    %994 = vmatprep.subr.mxu0 %v54
    %995 = vmatpush1.msra.mxu0 %v53
    %996 = vmatprep.subr.mxu0 %v58
    %997 = vmatpush1.msra.mxu0 %v57
    %998 = vmatprep.subr.mxu0 %v62
    %999 = vmatpush1.msra.mxu0 %v61
    %1000 = vmatprep.subr.mxu0 %v66
    %1001 = vmatpush1.msra.mxu0 %v65
    %1002 = vmatprep.subr.mxu0 %v70
    %1003 = vmatpush1.msra.mxu0 %v69
    %1004 = vmatprep.subr.mxu0 %v74
    %1005 = vmatpush1.msra.mxu0 %v73
    %1006 = vmatprep.subr.mxu0 %v78
    %1007 = vmatpush1.msra.mxu0 %v77
    %1008 = vmatprep.subr.mxu0 %v82
    %1009 = vmatpush1.msra.mxu0 %v81
    %1010 = vmatprep.subr.mxu0 %v86
    %1011 = vmatpush1.msra.mxu0 %v85
    %1012 = vmatprep.subr.mxu0 %v90
    %1013 = vmatpush1.msra.mxu0 %v89
    %1014 = vmatprep.subr.mxu0 %v94
    %1015 = vmatpush1.msra.mxu0 %v93
    %1016 = vmatprep.subr.mxu0 %v98
    %1017 = vmatpush1.msra.mxu0 %v97
    %1018 = vmatprep.subr.mxu0 0.0
    %1019 = vmatpush1.msra.mxu0 0.0
    %1020 = vmatprep.subr.mxu0 0.0
    %1021 = vmatpush1.msra.mxu0 0.0
    %1022 = vmatprep.subr.mxu0 0.0
    %1023 = vmatpush1.msra.mxu0 0.0
    %1024 = vmatprep.subr.mxu0 0.0
    %1025 = vmatpush1.msra.mxu0 0.0
    %1026 = vmatprep.subr.mxu0 0.0
    %1027 = vmatpush1.msra.mxu0 0.0
    %1028 = vmatprep.subr.mxu0 0.0
    %1029 = vmatpush1.msra.mxu0 0.0
    %1030 = vmatprep.subr.mxu0 0.0
    %1031 = vmatpush1.msra.mxu0 0.0
    %1032 = vmatprep.subr.mxu0 0.0
    %1033 = vmatpush1.msra.mxu0 0.0
    %1034 = vmatprep.subr.mxu0 0.0
    %1035 = vmatpush1.msra.mxu0 0.0
    %1036 = vmatprep.subr.mxu0 0.0
    %1037 = vmatpush1.msra.mxu0 0.0
    %1038 = vmatprep.subr.mxu0 0.0
    %1039 = vmatpush1.msra.mxu0 0.0
    %1040 = vmatprep.subr.mxu0 0.0
    %1041 = vmatpush1.msra.mxu0 0.0
    %1042 = vmatprep.subr.mxu0 0.0
    %1043 = vmatpush1.msra.mxu0 0.0
    %1044 = vmatprep.subr.mxu0 0.0
    %1045 = vmatpush1.msra.mxu0 0.0
    %1046 = vmatprep.subr.mxu0 0.0
    %1047 = vmatpush1.msra.mxu0 0.0
    %1048 = vmatprep.subr.mxu0 0.0
    %1049 = vmatpush1.msra.mxu0 0.0
    %1050 = vmatprep.mubr.f32.mxu0 0.0
    %1051 = vmatmul.mubr.f32.gmra.mrb[0].mxu0 %v579
    %v1052 = vpop.f32.mrb[0].mxu0
    %v1053 = vadd.f32 0.0, %v1052
    %v1054 = vpop.f32.mrb[0].mxu0
    %v1055 = vadd.f32 0.0, %v1054
    %1056 = vdwg.mxu0
    %v1058 = vsel %vm376, %v914, 0
    %1060 = vmatprep.subr.mxu0 %v383
    %1061 = vmatpush1.msra.mxu0 %v381
    %1062 = vmatprep.subr.mxu0 0.0
    %1063 = vmatpush1.msra.mxu0 0.0
    %1064 = vmatprep.subr.mxu0 0.0
    %1065 = vmatpush1.msra.mxu0 0.0
    %1066 = vmatprep.subr.mxu0 0.0
    %1067 = vmatpush1.msra.mxu0 0.0
    %1068 = vmatprep.subr.mxu0 0.0
    %1069 = vmatpush1.msra.mxu0 0.0
    %1070 = vmatprep.subr.mxu0 0.0
    %1071 = vmatpush1.msra.mxu0 0.0
    %1072 = vmatprep.subr.mxu0 0.0
    %1073 = vmatpush1.msra.mxu0 0.0
    %1074 = vmatprep.subr.mxu0 0.0
    %1075 = vmatpush1.msra.mxu0 0.0
    %1076 = vmatprep.subr.mxu0 0.0
    %1077 = vmatpush1.msra.mxu0 0.0
    %1078 = vmatprep.subr.mxu0 0.0
    %1079 = vmatpush1.msra.mxu0 0.0
    %1080 = vmatprep.subr.mxu0 0.0
    %1081 = vmatpush1.msra.mxu0 0.0
    %1082 = vmatprep.subr.mxu0 0.0
    %1083 = vmatpush1.msra.mxu0 0.0
    %1084 = vmatprep.subr.mxu0 0.0
    %1085 = vmatpush1.msra.mxu0 0.0
    %1086 = vmatprep.subr.mxu0 0.0
    %1087 = vmatpush1.msra.mxu0 0.0
    %1088 = vmatprep.subr.mxu0 0.0
    %1089 = vmatpush1.msra.mxu0 0.0
    %1090 = vmatprep.subr.mxu0 0.0
    %1091 = vmatpush1.msra.mxu0 0.0
    %1092 = vmatprep.subr.mxu0 0.0
    %1093 = vmatpush1.msra.mxu0 0.0
    %1094 = vmatprep.subr.mxu0 0.0
    %1095 = vmatpush1.msra.mxu0 0.0
    %1096 = vmatprep.subr.mxu0 0.0
    %1097 = vmatpush1.msra.mxu0 0.0
    %1098 = vmatprep.subr.mxu0 0.0
    %1099 = vmatpush1.msra.mxu0 0.0
    %1100 = vmatprep.subr.mxu0 0.0
    %1101 = vmatpush1.msra.mxu0 0.0
    %1102 = vmatprep.subr.mxu0 0.0
    %1103 = vmatpush1.msra.mxu0 0.0
    %1104 = vmatprep.subr.mxu0 0.0
    %1105 = vmatpush1.msra.mxu0 0.0
    %1106 = vmatprep.subr.mxu0 0.0
    %1107 = vmatpush1.msra.mxu0 0.0
    %1108 = vmatprep.subr.mxu0 0.0
    %1109 = vmatpush1.msra.mxu0 0.0
    %1110 = vmatprep.subr.mxu0 0.0
    %1111 = vmatpush1.msra.mxu0 0.0
    %1112 = vmatprep.subr.mxu0 0.0
    %1113 = vmatpush1.msra.mxu0 0.0
    %1114 = vmatprep.subr.mxu0 0.0
    %1115 = vmatpush1.msra.mxu0 0.0
    %1116 = vmatprep.subr.mxu0 0.0
    %1117 = vmatpush1.msra.mxu0 0.0
    %1118 = vmatprep.subr.mxu0 0.0
    %1119 = vmatpush1.msra.mxu0 0.0
    %1120 = vmatprep.subr.mxu0 0.0
    %1121 = vmatpush1.msra.mxu0 0.0
    %1122 = vmatprep.subr.mxu0 0.0
    %1123 = vmatpush1.msra.mxu0 0.0
    %1124 = vmatprep.mubr.f32.mxu0 0.0
    %1125 = vmatmul.mubr.f32.gmra.mrb[0].mxu0 %v1058
    %v1126 = vpop.f32.mrb[0].mxu0
    %v1127 = vadd.f32 %v982, %v1126
    %v1128 = vpop.f32.mrb[0].mxu0
    %v1129 = vadd.f32 %v984, %v1128
    %1130 = vdwg.mxu0
    %1131 = vmatprep.subr.mxu0 %v387
    %1132 = vmatpush1.msra.mxu0 %v385
    %1133 = vmatprep.subr.mxu0 0.0
    %1134 = vmatpush1.msra.mxu0 0.0
    %1135 = vmatprep.subr.mxu0 0.0
    %1136 = vmatpush1.msra.mxu0 0.0
    %1137 = vmatprep.subr.mxu0 0.0
    %1138 = vmatpush1.msra.mxu0 0.0
    %1139 = vmatprep.subr.mxu0 0.0
    %1140 = vmatpush1.msra.mxu0 0.0
    %1141 = vmatprep.subr.mxu0 0.0
    %1142 = vmatpush1.msra.mxu0 0.0
    %1143 = vmatprep.subr.mxu0 0.0
    %1144 = vmatpush1.msra.mxu0 0.0
    %1145 = vmatprep.subr.mxu0 0.0
    %1146 = vmatpush1.msra.mxu0 0.0
    %1147 = vmatprep.subr.mxu0 0.0
    %1148 = vmatpush1.msra.mxu0 0.0
    %1149 = vmatprep.subr.mxu0 0.0
    %1150 = vmatpush1.msra.mxu0 0.0
    %1151 = vmatprep.subr.mxu0 0.0
    %1152 = vmatpush1.msra.mxu0 0.0
    %1153 = vmatprep.subr.mxu0 0.0
    %1154 = vmatpush1.msra.mxu0 0.0
    %1155 = vmatprep.subr.mxu0 0.0
    %1156 = vmatpush1.msra.mxu0 0.0
    %1157 = vmatprep.subr.mxu0 0.0
    %1158 = vmatpush1.msra.mxu0 0.0
    %1159 = vmatprep.subr.mxu0 0.0
    %1160 = vmatpush1.msra.mxu0 0.0
    %1161 = vmatprep.subr.mxu0 0.0
    %1162 = vmatpush1.msra.mxu0 0.0
    %1163 = vmatprep.subr.mxu0 0.0
    %1164 = vmatpush1.msra.mxu0 0.0
    %1165 = vmatprep.subr.mxu0 0.0
    %1166 = vmatpush1.msra.mxu0 0.0
    %1167 = vmatprep.subr.mxu0 0.0
    %1168 = vmatpush1.msra.mxu0 0.0
    %1169 = vmatprep.subr.mxu0 0.0
    %1170 = vmatpush1.msra.mxu0 0.0
    %1171 = vmatprep.subr.mxu0 0.0
    %1172 = vmatpush1.msra.mxu0 0.0
    %1173 = vmatprep.subr.mxu0 0.0
    %1174 = vmatpush1.msra.mxu0 0.0
    %1175 = vmatprep.subr.mxu0 0.0
    %1176 = vmatpush1.msra.mxu0 0.0
    %1177 = vmatprep.subr.mxu0 0.0
    %1178 = vmatpush1.msra.mxu0 0.0
    %1179 = vmatprep.subr.mxu0 0.0
    %1180 = vmatpush1.msra.mxu0 0.0
    %1181 = vmatprep.subr.mxu0 0.0
    %1182 = vmatpush1.msra.mxu0 0.0
    %1183 = vmatprep.subr.mxu0 0.0
    %1184 = vmatpush1.msra.mxu0 0.0
    %1185 = vmatprep.subr.mxu0 0.0
    %1186 = vmatpush1.msra.mxu0 0.0
    %1187 = vmatprep.subr.mxu0 0.0
    %1188 = vmatpush1.msra.mxu0 0.0
    %1189 = vmatprep.subr.mxu0 0.0
    %1190 = vmatpush1.msra.mxu0 0.0
    %1191 = vmatprep.subr.mxu0 0.0
    %1192 = vmatpush1.msra.mxu0 0.0
    %1193 = vmatprep.subr.mxu0 0.0
    %1194 = vmatpush1.msra.mxu0 0.0
    %1195 = vmatprep.mubr.f32.mxu0 0.0
    %1196 = vmatmul.mubr.f32.gmra.mrb[0].mxu0 %v1058
    %v1197 = vpop.f32.mrb[0].mxu0
    %v1198 = vadd.f32 %v1053, %v1197
    %v1199 = vpop.f32.mrb[0].mxu0
    %v1200 = vadd.f32 %v1055, %v1199
    %1201 = vdwg.mxu0
    %v1202 = vadd.f32 %v1127, %v535
    %v1203 = vadd.f32 %v1129, %v539
    %v1204 = vadd.f32 %v1198, %v543
    %v1205 = vadd.f32 %v1200, %v547
    %v1206 = vxor.u32 %v1202, 2147483648
    %v1207 = vmul.f32 %v1206, 1.442695
    %v1208 = vpow.pop %v1207
    %v1209 = vadd.f32 %v1208, 1.0
    %v1210 = vrcp.pop %v1209
    %v1211 = vmul.f32 1.0, %v1210
    %v1212 = vxor.u32 %v1203, 2147483648
    %v1213 = vmul.f32 %v1212, 1.442695
    %v1214 = vpow.pop %v1213
    %v1215 = vadd.f32 %v1214, 1.0
    %v1216 = vrcp.pop %v1215
    %v1217 = vmul.f32 1.0, %v1216
    %v1218 = vtanh.pop %v1204
    %v1219 = vxor.u32 %v1205, 2147483648
    %v1220 = vmul.f32 %v1219, 1.442695
    %v1221 = vpow.pop %v1220
    %v1222 = vadd.f32 %v1221, 1.0
    %v1223 = vrcp.pop %v1222
    %v1224 = vmul.f32 1.0, %v1223
    %v1225 = vmul.f32 %v1217, %v577
    %v1226 = vmul.f32 %v1211, %v1218
    %v1227 = vadd.f32 %v1225, %v1226
    %v1228 = vtanh.pop %v1227
    %v1229 = vmul.f32 %v1224, %v1228
    %1230 = vmatprep.subr.mxu0 %v165
    %1231 = vmatpush1.msra.mxu0 %v164
    %1232 = vmatprep.subr.mxu0 %v169
    %1233 = vmatpush1.msra.mxu0 %v168
    %1234 = vmatprep.subr.mxu0 %v173
    %1235 = vmatpush1.msra.mxu0 %v172
    %1236 = vmatprep.subr.mxu0 %v177
    %1237 = vmatpush1.msra.mxu0 %v176
    %1238 = vmatprep.subr.mxu0 %v181
    %1239 = vmatpush1.msra.mxu0 %v180
    %1240 = vmatprep.subr.mxu0 %v185
    %1241 = vmatpush1.msra.mxu0 %v184
    %1242 = vmatprep.subr.mxu0 %v189
    %1243 = vmatpush1.msra.mxu0 %v188
    %1244 = vmatprep.subr.mxu0 %v193
    %1245 = vmatpush1.msra.mxu0 %v192
    %1246 = vmatprep.subr.mxu0 %v197
    %1247 = vmatpush1.msra.mxu0 %v196
    %1248 = vmatprep.subr.mxu0 %v201
    %1249 = vmatpush1.msra.mxu0 %v200
    %1250 = vmatprep.subr.mxu0 %v205
    %1251 = vmatpush1.msra.mxu0 %v204
    %1252 = vmatprep.subr.mxu0 %v209
    %1253 = vmatpush1.msra.mxu0 %v208
    %1254 = vmatprep.subr.mxu0 %v213
    %1255 = vmatpush1.msra.mxu0 %v212
    %1256 = vmatprep.subr.mxu0 %v217
    %1257 = vmatpush1.msra.mxu0 %v216
    %1258 = vmatprep.subr.mxu0 %v221
    %1259 = vmatpush1.msra.mxu0 %v220
    %1260 = vmatprep.subr.mxu0 %v225
    %1261 = vmatpush1.msra.mxu0 %v224
    %1262 = vmatprep.subr.mxu0 0.0
    %1263 = vmatpush1.msra.mxu0 0.0
    %1264 = vmatprep.subr.mxu0 0.0
    %1265 = vmatpush1.msra.mxu0 0.0
    %1266 = vmatprep.subr.mxu0 0.0
    %1267 = vmatpush1.msra.mxu0 0.0
    %1268 = vmatprep.subr.mxu0 0.0
    %1269 = vmatpush1.msra.mxu0 0.0
    %1270 = vmatprep.subr.mxu0 0.0
    %1271 = vmatpush1.msra.mxu0 0.0
    %1272 = vmatprep.subr.mxu0 0.0
    %1273 = vmatpush1.msra.mxu0 0.0
    %1274 = vmatprep.subr.mxu0 0.0
    %1275 = vmatpush1.msra.mxu0 0.0
    %1276 = vmatprep.subr.mxu0 0.0
    %1277 = vmatpush1.msra.mxu0 0.0
    %1278 = vmatprep.subr.mxu0 0.0
    %1279 = vmatpush1.msra.mxu0 0.0
    %1280 = vmatprep.subr.mxu0 0.0
    %1281 = vmatpush1.msra.mxu0 0.0
    %1282 = vmatprep.subr.mxu0 0.0
    %1283 = vmatpush1.msra.mxu0 0.0
    %1284 = vmatprep.subr.mxu0 0.0
    %1285 = vmatpush1.msra.mxu0 0.0
    %1286 = vmatprep.subr.mxu0 0.0
    %1287 = vmatpush1.msra.mxu0 0.0
    %1288 = vmatprep.subr.mxu0 0.0
    %1289 = vmatpush1.msra.mxu0 0.0
    %1290 = vmatprep.subr.mxu0 0.0
    %1291 = vmatpush1.msra.mxu0 0.0
    %1292 = vmatprep.subr.mxu0 0.0
    %1293 = vmatpush1.msra.mxu0 0.0
    %1294 = vmatprep.mubr.f32.mxu0 0.0
    %1295 = vmatmul.mubr.f32.gmra.mrb[0].mxu0 %v912
    %v1296 = vpop.f32.mrb[0].mxu0
    %v1297 = vadd.f32 0.0, %v1296
    %v1298 = vpop.f32.mrb[0].mxu0
    %v1299 = vadd.f32 0.0, %v1298
    %1300 = vdwg.mxu0
    %1301 = vmatprep.subr.mxu0 %v167
    %1302 = vmatpush1.msra.mxu0 %v166
    %1303 = vmatprep.subr.mxu0 %v171
    %1304 = vmatpush1.msra.mxu0 %v170
    %1305 = vmatprep.subr.mxu0 %v175
    %1306 = vmatpush1.msra.mxu0 %v174
    %1307 = vmatprep.subr.mxu0 %v179
    %1308 = vmatpush1.msra.mxu0 %v178
    %1309 = vmatprep.subr.mxu0 %v183
    %1310 = vmatpush1.msra.mxu0 %v182
    %1311 = vmatprep.subr.mxu0 %v187
    %1312 = vmatpush1.msra.mxu0 %v186
    %1313 = vmatprep.subr.mxu0 %v191
    %1314 = vmatpush1.msra.mxu0 %v190
    %1315 = vmatprep.subr.mxu0 %v195
    %1316 = vmatpush1.msra.mxu0 %v194
    %1317 = vmatprep.subr.mxu0 %v199
    %1318 = vmatpush1.msra.mxu0 %v198
    %1319 = vmatprep.subr.mxu0 %v203
    %1320 = vmatpush1.msra.mxu0 %v202
    %1321 = vmatprep.subr.mxu0 %v207
    %1322 = vmatpush1.msra.mxu0 %v206
    %1323 = vmatprep.subr.mxu0 %v211
    %1324 = vmatpush1.msra.mxu0 %v210
    %1325 = vmatprep.subr.mxu0 %v215
    %1326 = vmatpush1.msra.mxu0 %v214
    %1327 = vmatprep.subr.mxu0 %v219
    %1328 = vmatpush1.msra.mxu0 %v218
    %1329 = vmatprep.subr.mxu0 %v223
    %1330 = vmatpush1.msra.mxu0 %v222
    %1331 = vmatprep.subr.mxu0 %v227
    %1332 = vmatpush1.msra.mxu0 %v226
    %1333 = vmatprep.subr.mxu0 0.0
    %1334 = vmatpush1.msra.mxu0 0.0
    %1335 = vmatprep.subr.mxu0 0.0
    %1336 = vmatpush1.msra.mxu0 0.0
    %1337 = vmatprep.subr.mxu0 0.0
    %1338 = vmatpush1.msra.mxu0 0.0
    %1339 = vmatprep.subr.mxu0 0.0
    %1340 = vmatpush1.msra.mxu0 0.0
    %1341 = vmatprep.subr.mxu0 0.0
    %1342 = vmatpush1.msra.mxu0 0.0
    %1343 = vmatprep.subr.mxu0 0.0
    %1344 = vmatpush1.msra.mxu0 0.0
    %1345 = vmatprep.subr.mxu0 0.0
    %1346 = vmatpush1.msra.mxu0 0.0
    %1347 = vmatprep.subr.mxu0 0.0
    %1348 = vmatpush1.msra.mxu0 0.0
    %1349 = vmatprep.subr.mxu0 0.0
    %1350 = vmatpush1.msra.mxu0 0.0
    %1351 = vmatprep.subr.mxu0 0.0
    %1352 = vmatpush1.msra.mxu0 0.0
    %1353 = vmatprep.subr.mxu0 0.0
    %1354 = vmatpush1.msra.mxu0 0.0
    %1355 = vmatprep.subr.mxu0 0.0
    %1356 = vmatpush1.msra.mxu0 0.0
    %1357 = vmatprep.subr.mxu0 0.0
    %1358 = vmatpush1.msra.mxu0 0.0
    %1359 = vmatprep.subr.mxu0 0.0
    %1360 = vmatpush1.msra.mxu0 0.0
    %1361 = vmatprep.subr.mxu0 0.0
    %1362 = vmatpush1.msra.mxu0 0.0
    %1363 = vmatprep.subr.mxu0 0.0
    %1364 = vmatpush1.msra.mxu0 0.0
    %1365 = vmatprep.mubr.f32.mxu0 0.0
    %1366 = vmatmul.mubr.f32.gmra.mrb[0].mxu0 %v912
    %v1367 = vpop.f32.mrb[0].mxu0
    %v1368 = vadd.f32 0.0, %v1367
    %v1369 = vpop.f32.mrb[0].mxu0
    %v1370 = vadd.f32 0.0, %v1369
    %1371 = vdwg.mxu0
    %1372 = vmatprep.subr.mxu0 %v101
    %1373 = vmatpush1.msra.mxu0 %v100
    %1374 = vmatprep.subr.mxu0 %v105
    %1375 = vmatpush1.msra.mxu0 %v104
    %1376 = vmatprep.subr.mxu0 %v109
    %1377 = vmatpush1.msra.mxu0 %v108
    %1378 = vmatprep.subr.mxu0 %v113
    %1379 = vmatpush1.msra.mxu0 %v112
    %1380 = vmatprep.subr.mxu0 %v117
    %1381 = vmatpush1.msra.mxu0 %v116
    %1382 = vmatprep.subr.mxu0 %v121
    %1383 = vmatpush1.msra.mxu0 %v120
    %1384 = vmatprep.subr.mxu0 %v125
    %1385 = vmatpush1.msra.mxu0 %v124
    %1386 = vmatprep.subr.mxu0 %v129
    %1387 = vmatpush1.msra.mxu0 %v128
    %1388 = vmatprep.subr.mxu0 %v133
    %1389 = vmatpush1.msra.mxu0 %v132
    %1390 = vmatprep.subr.mxu0 %v137
    %1391 = vmatpush1.msra.mxu0 %v136
    %1392 = vmatprep.subr.mxu0 %v141
    %1393 = vmatpush1.msra.mxu0 %v140
    %1394 = vmatprep.subr.mxu0 %v145
    %1395 = vmatpush1.msra.mxu0 %v144
    %1396 = vmatprep.subr.mxu0 %v149
    %1397 = vmatpush1.msra.mxu0 %v148
    %1398 = vmatprep.subr.mxu0 %v153
    %1399 = vmatpush1.msra.mxu0 %v152
    %1400 = vmatprep.subr.mxu0 %v157
    %1401 = vmatpush1.msra.mxu0 %v156
    %1402 = vmatprep.subr.mxu0 %v161
    %1403 = vmatpush1.msra.mxu0 %v160
    %1404 = vmatprep.subr.mxu0 0.0
    %1405 = vmatpush1.msra.mxu0 0.0
    %1406 = vmatprep.subr.mxu0 0.0
    %1407 = vmatpush1.msra.mxu0 0.0
    %1408 = vmatprep.subr.mxu0 0.0
    %1409 = vmatpush1.msra.mxu0 0.0
    %1410 = vmatprep.subr.mxu0 0.0
    %1411 = vmatpush1.msra.mxu0 0.0
    %1412 = vmatprep.subr.mxu0 0.0
    %1413 = vmatpush1.msra.mxu0 0.0
    %1414 = vmatprep.subr.mxu0 0.0
    %1415 = vmatpush1.msra.mxu0 0.0
    %1416 = vmatprep.subr.mxu0 0.0
    %1417 = vmatpush1.msra.mxu0 0.0
    %1418 = vmatprep.subr.mxu0 0.0
    %1419 = vmatpush1.msra.mxu0 0.0
    %1420 = vmatprep.subr.mxu0 0.0
    %1421 = vmatpush1.msra.mxu0 0.0
    %1422 = vmatprep.subr.mxu0 0.0
    %1423 = vmatpush1.msra.mxu0 0.0
    %1424 = vmatprep.subr.mxu0 0.0
    %1425 = vmatpush1.msra.mxu0 0.0
    %1426 = vmatprep.subr.mxu0 0.0
    %1427 = vmatpush1.msra.mxu0 0.0
    %1428 = vmatprep.subr.mxu0 0.0
    %1429 = vmatpush1.msra.mxu0 0.0
    %1430 = vmatprep.subr.mxu0 0.0
    %1431 = vmatpush1.msra.mxu0 0.0
    %1432 = vmatprep.subr.mxu0 0.0
    %1433 = vmatpush1.msra.mxu0 0.0
    %1434 = vmatprep.subr.mxu0 0.0
    %1435 = vmatpush1.msra.mxu0 0.0
    %1436 = vmatprep.mubr.f32.mxu0 0.0
    %1437 = vmatmul.mubr.f32.gmra.mrb[0].mxu0 %v1229
    %v1438 = vpop.f32.mrb[0].mxu0
    %v1439 = vadd.f32 %v1297, %v1438
    %v1440 = vpop.f32.mrb[0].mxu0
    %v1441 = vadd.f32 %v1299, %v1440
    %1442 = vdwg.mxu0
    %1443 = vmatprep.subr.mxu0 %v103
    %1444 = vmatpush1.msra.mxu0 %v102
    %1445 = vmatprep.subr.mxu0 %v107
    %1446 = vmatpush1.msra.mxu0 %v106
    %1447 = vmatprep.subr.mxu0 %v111
    %1448 = vmatpush1.msra.mxu0 %v110
    %1449 = vmatprep.subr.mxu0 %v115
    %1450 = vmatpush1.msra.mxu0 %v114
    %1451 = vmatprep.subr.mxu0 %v119
    %1452 = vmatpush1.msra.mxu0 %v118
    %1453 = vmatprep.subr.mxu0 %v123
    %1454 = vmatpush1.msra.mxu0 %v122
    %1455 = vmatprep.subr.mxu0 %v127
    %1456 = vmatpush1.msra.mxu0 %v126
    %1457 = vmatprep.subr.mxu0 %v131
    %1458 = vmatpush1.msra.mxu0 %v130
    %1459 = vmatprep.subr.mxu0 %v135
    %1460 = vmatpush1.msra.mxu0 %v134
    %1461 = vmatprep.subr.mxu0 %v139
    %1462 = vmatpush1.msra.mxu0 %v138
    %1463 = vmatprep.subr.mxu0 %v143
    %1464 = vmatpush1.msra.mxu0 %v142
    %1465 = vmatprep.subr.mxu0 %v147
    %1466 = vmatpush1.msra.mxu0 %v146
    %1467 = vmatprep.subr.mxu0 %v151
    %1468 = vmatpush1.msra.mxu0 %v150
    %1469 = vmatprep.subr.mxu0 %v155
    %1470 = vmatpush1.msra.mxu0 %v154
    %1471 = vmatprep.subr.mxu0 %v159
    %1472 = vmatpush1.msra.mxu0 %v158
    %1473 = vmatprep.subr.mxu0 %v163
    %1474 = vmatpush1.msra.mxu0 %v162
    %1475 = vmatprep.subr.mxu0 0.0
    %1476 = vmatpush1.msra.mxu0 0.0
    %1477 = vmatprep.subr.mxu0 0.0
    %1478 = vmatpush1.msra.mxu0 0.0
    %1479 = vmatprep.subr.mxu0 0.0
    %1480 = vmatpush1.msra.mxu0 0.0
    %1481 = vmatprep.subr.mxu0 0.0
    %1482 = vmatpush1.msra.mxu0 0.0
    %1483 = vmatprep.subr.mxu0 0.0
    %1484 = vmatpush1.msra.mxu0 0.0
    %1485 = vmatprep.subr.mxu0 0.0
    %1486 = vmatpush1.msra.mxu0 0.0
    %1487 = vmatprep.subr.mxu0 0.0
    %1488 = vmatpush1.msra.mxu0 0.0
    %1489 = vmatprep.subr.mxu0 0.0
    %1490 = vmatpush1.msra.mxu0 0.0
    %1491 = vmatprep.subr.mxu0 0.0
    %1492 = vmatpush1.msra.mxu0 0.0
    %1493 = vmatprep.subr.mxu0 0.0
    %1494 = vmatpush1.msra.mxu0 0.0
    %1495 = vmatprep.subr.mxu0 0.0
    %1496 = vmatpush1.msra.mxu0 0.0
    %1497 = vmatprep.subr.mxu0 0.0
    %1498 = vmatpush1.msra.mxu0 0.0
    %1499 = vmatprep.subr.mxu0 0.0
    %1500 = vmatpush1.msra.mxu0 0.0
    %1501 = vmatprep.subr.mxu0 0.0
    %1502 = vmatpush1.msra.mxu0 0.0
    %1503 = vmatprep.subr.mxu0 0.0
    %1504 = vmatpush1.msra.mxu0 0.0
    %1505 = vmatprep.subr.mxu0 0.0
    %1506 = vmatpush1.msra.mxu0 0.0
    %1507 = vmatprep.mubr.f32.mxu0 0.0
    %1508 = vmatmul.mubr.f32.gmra.mrb[0].mxu0 %v1229
    %v1509 = vpop.f32.mrb[0].mxu0
    %v1510 = vadd.f32 %v1368, %v1509
    %v1511 = vpop.f32.mrb[0].mxu0
    %v1512 = vadd.f32 %v1370, %v1511
    %1513 = vdwg.mxu0
    %v1514 = vadd.f32 %v1439, %v868
    %v1515 = vadd.f32 %v1441, %v872
    %v1516 = vadd.f32 %v1510, %v876
    %v1517 = vadd.f32 %v1512, %v880
    %v1518 = vxor.u32 %v1514, 2147483648
    %v1519 = vmul.f32 %v1518, 1.442695
    %v1520 = vpow.pop %v1519
    %v1521 = vadd.f32 %v1520, 1.0
    %v1522 = vrcp.pop %v1521
    %v1523 = vmul.f32 1.0, %v1522
    %v1524 = vxor.u32 %v1515, 2147483648
    %v1525 = vmul.f32 %v1524, 1.442695
    %v1526 = vpow.pop %v1525
    %v1527 = vadd.f32 %v1526, 1.0
    %v1528 = vrcp.pop %v1527
    %v1529 = vmul.f32 1.0, %v1528
    %v1530 = vtanh.pop %v1516
    %v1531 = vxor.u32 %v1517, 2147483648
    %v1532 = vmul.f32 %v1531, 1.442695
    %v1533 = vpow.pop %v1532
    %v1534 = vadd.f32 %v1533, 1.0
    %v1535 = vrcp.pop %v1534
    %v1536 = vmul.f32 1.0, %v1535
    %v1537 = vmul.f32 %v1529, %v910
    %v1538 = vmul.f32 %v1523, %v1530
    %v1539 = vadd.f32 %v1537, %v1538
    %v1540 = vtanh.pop %v1539
    %v1541 = vmul.f32 %v1536, %v1540
    %s1542 = scalar_lea.vmem %s0, 4
    %v1543 = vld [vmem:[%s1542] sm:$0x3]
    %1544 = vmatprep.subr.mxu0 %v36
    %1545 = vmatpush1.msra.mxu0 %v35
    %1546 = vmatprep.subr.mxu0 %v40
    %1547 = vmatpush1.msra.mxu0 %v39
    %1548 = vmatprep.subr.mxu0 %v44
    %1549 = vmatpush1.msra.mxu0 %v43
    %1550 = vmatprep.subr.mxu0 %v48
    %1551 = vmatpush1.msra.mxu0 %v47
    %1552 = vmatprep.subr.mxu0 %v52
    %1553 = vmatpush1.msra.mxu0 %v51
    %1554 = vmatprep.subr.mxu0 %v56
    %1555 = vmatpush1.msra.mxu0 %v55
    %1556 = vmatprep.subr.mxu0 %v60
    %1557 = vmatpush1.msra.mxu0 %v59
    %1558 = vmatprep.subr.mxu0 %v64
    %1559 = vmatpush1.msra.mxu0 %v63
    %1560 = vmatprep.subr.mxu0 %v68
    %1561 = vmatpush1.msra.mxu0 %v67
    %1562 = vmatprep.subr.mxu0 %v72
    %1563 = vmatpush1.msra.mxu0 %v71
    %1564 = vmatprep.subr.mxu0 %v76
    %1565 = vmatpush1.msra.mxu0 %v75
    %1566 = vmatprep.subr.mxu0 %v80
    %1567 = vmatpush1.msra.mxu0 %v79
    %1568 = vmatprep.subr.mxu0 %v84
    %1569 = vmatpush1.msra.mxu0 %v83
    %1570 = vmatprep.subr.mxu0 %v88
    %1571 = vmatpush1.msra.mxu0 %v87
    %1572 = vmatprep.subr.mxu0 %v92
    %1573 = vmatpush1.msra.mxu0 %v91
    %1574 = vmatprep.subr.mxu0 %v96
    %1575 = vmatpush1.msra.mxu0 %v95
    %1576 = vmatprep.subr.mxu0 0.0
    %1577 = vmatpush1.msra.mxu0 0.0
    %1578 = vmatprep.subr.mxu0 0.0
    %1579 = vmatpush1.msra.mxu0 0.0
    %1580 = vmatprep.subr.mxu0 0.0
    %1581 = vmatpush1.msra.mxu0 0.0
    %1582 = vmatprep.subr.mxu0 0.0
    %1583 = vmatpush1.msra.mxu0 0.0
    %1584 = vmatprep.subr.mxu0 0.0
    %1585 = vmatpush1.msra.mxu0 0.0
    %1586 = vmatprep.subr.mxu0 0.0
    %1587 = vmatpush1.msra.mxu0 0.0
    %1588 = vmatprep.subr.mxu0 0.0
    %1589 = vmatpush1.msra.mxu0 0.0
    %1590 = vmatprep.subr.mxu0 0.0
    %1591 = vmatpush1.msra.mxu0 0.0
    %1592 = vmatprep.subr.mxu0 0.0
    %1593 = vmatpush1.msra.mxu0 0.0
    %1594 = vmatprep.subr.mxu0 0.0
    %1595 = vmatpush1.msra.mxu0 0.0
    %1596 = vmatprep.subr.mxu0 0.0
    %1597 = vmatpush1.msra.mxu0 0.0
    %1598 = vmatprep.subr.mxu0 0.0
    %1599 = vmatpush1.msra.mxu0 0.0
    %1600 = vmatprep.subr.mxu0 0.0
    %1601 = vmatpush1.msra.mxu0 0.0
    %1602 = vmatprep.subr.mxu0 0.0
    %1603 = vmatpush1.msra.mxu0 0.0
    %1604 = vmatprep.subr.mxu0 0.0
    %1605 = vmatpush1.msra.mxu0 0.0
    %1606 = vmatprep.subr.mxu0 0.0
    %1607 = vmatpush1.msra.mxu0 0.0
    %1608 = vmatprep.mubr.f32.mxu0 0.0
    %1609 = vmatmul.mubr.f32.gmra.mrb[0].mxu0 %v1229
    %v1610 = vpop.f32.mrb[0].mxu0
    %v1611 = vadd.f32 0.0, %v1610
    %v1612 = vpop.f32.mrb[0].mxu0
    %v1613 = vadd.f32 0.0, %v1612
    %1614 = vdwg.mxu0
    %1615 = vmatprep.subr.mxu0 %v38
    %1616 = vmatpush1.msra.mxu0 %v37
    %1617 = vmatprep.subr.mxu0 %v42
    %1618 = vmatpush1.msra.mxu0 %v41
    %1619 = vmatprep.subr.mxu0 %v46
    %1620 = vmatpush1.msra.mxu0 %v45
    %1621 = vmatprep.subr.mxu0 %v50
    %1622 = vmatpush1.msra.mxu0 %v49
    %1623 = vmatprep.subr.mxu0 %v54
    %1624 = vmatpush1.msra.mxu0 %v53
    %1625 = vmatprep.subr.mxu0 %v58
    %1626 = vmatpush1.msra.mxu0 %v57
    %1627 = vmatprep.subr.mxu0 %v62
    %1628 = vmatpush1.msra.mxu0 %v61
    %1629 = vmatprep.subr.mxu0 %v66
    %1630 = vmatpush1.msra.mxu0 %v65
    %1631 = vmatprep.subr.mxu0 %v70
    %1632 = vmatpush1.msra.mxu0 %v69
    %1633 = vmatprep.subr.mxu0 %v74
    %1634 = vmatpush1.msra.mxu0 %v73
    %1635 = vmatprep.subr.mxu0 %v78
    %1636 = vmatpush1.msra.mxu0 %v77
    %1637 = vmatprep.subr.mxu0 %v82
    %1638 = vmatpush1.msra.mxu0 %v81
    %1639 = vmatprep.subr.mxu0 %v86
    %1640 = vmatpush1.msra.mxu0 %v85
    %1641 = vmatprep.subr.mxu0 %v90
    %1642 = vmatpush1.msra.mxu0 %v89
    %1643 = vmatprep.subr.mxu0 %v94
    %1644 = vmatpush1.msra.mxu0 %v93
    %1645 = vmatprep.subr.mxu0 %v98
    %1646 = vmatpush1.msra.mxu0 %v97
    %1647 = vmatprep.subr.mxu0 0.0
    %1648 = vmatpush1.msra.mxu0 0.0
    %1649 = vmatprep.subr.mxu0 0.0
    %1650 = vmatpush1.msra.mxu0 0.0
    %1651 = vmatprep.subr.mxu0 0.0
    %1652 = vmatpush1.msra.mxu0 0.0
    %1653 = vmatprep.subr.mxu0 0.0
    %1654 = vmatpush1.msra.mxu0 0.0
    %1655 = vmatprep.subr.mxu0 0.0
    %1656 = vmatpush1.msra.mxu0 0.0
    %1657 = vmatprep.subr.mxu0 0.0
    %1658 = vmatpush1.msra.mxu0 0.0
    %1659 = vmatprep.subr.mxu0 0.0
    %1660 = vmatpush1.msra.mxu0 0.0
    %1661 = vmatprep.subr.mxu0 0.0
    %1662 = vmatpush1.msra.mxu0 0.0
    %1663 = vmatprep.subr.mxu0 0.0
    %1664 = vmatpush1.msra.mxu0 0.0
    %1665 = vmatprep.subr.mxu0 0.0
    %1666 = vmatpush1.msra.mxu0 0.0
    %1667 = vmatprep.subr.mxu0 0.0
    %1668 = vmatpush1.msra.mxu0 0.0
    %1669 = vmatprep.subr.mxu0 0.0
    %1670 = vmatpush1.msra.mxu0 0.0
    %1671 = vmatprep.subr.mxu0 0.0
    %1672 = vmatpush1.msra.mxu0 0.0
    %1673 = vmatprep.subr.mxu0 0.0
    %1674 = vmatpush1.msra.mxu0 0.0
    %1675 = vmatprep.subr.mxu0 0.0
    %1676 = vmatpush1.msra.mxu0 0.0
    %1677 = vmatprep.subr.mxu0 0.0
    %1678 = vmatpush1.msra.mxu0 0.0
    %1679 = vmatprep.mubr.f32.mxu0 0.0
    %1680 = vmatmul.mubr.f32.gmra.mrb[0].mxu0 %v1229
    %v1681 = vpop.f32.mrb[0].mxu0
    %v1682 = vadd.f32 0.0, %v1681
    %v1683 = vpop.f32.mrb[0].mxu0
    %v1684 = vadd.f32 0.0, %v1683
    %1685 = vdwg.mxu0
    %v1687 = vsel %vm376, %v1543, 0
    %1689 = vmatprep.subr.mxu0 %v383
    %1690 = vmatpush1.msra.mxu0 %v381
    %1691 = vmatprep.subr.mxu0 0.0
    %1692 = vmatpush1.msra.mxu0 0.0
    %1693 = vmatprep.subr.mxu0 0.0
    %1694 = vmatpush1.msra.mxu0 0.0
    %1695 = vmatprep.subr.mxu0 0.0
    %1696 = vmatpush1.msra.mxu0 0.0
    %1697 = vmatprep.subr.mxu0 0.0
    %1698 = vmatpush1.msra.mxu0 0.0
    %1699 = vmatprep.subr.mxu0 0.0
    %1700 = vmatpush1.msra.mxu0 0.0
    %1701 = vmatprep.subr.mxu0 0.0
    %1702 = vmatpush1.msra.mxu0 0.0
    %1703 = vmatprep.subr.mxu0 0.0
    %1704 = vmatpush1.msra.mxu0 0.0
    %1705 = vmatprep.subr.mxu0 0.0
    %1706 = vmatpush1.msra.mxu0 0.0
    %1707 = vmatprep.subr.mxu0 0.0
    %1708 = vmatpush1.msra.mxu0 0.0
    %1709 = vmatprep.subr.mxu0 0.0
    %1710 = vmatpush1.msra.mxu0 0.0
    %1711 = vmatprep.subr.mxu0 0.0
    %1712 = vmatpush1.msra.mxu0 0.0
    %1713 = vmatprep.subr.mxu0 0.0
    %1714 = vmatpush1.msra.mxu0 0.0
    %1715 = vmatprep.subr.mxu0 0.0
    %1716 = vmatpush1.msra.mxu0 0.0
    %1717 = vmatprep.subr.mxu0 0.0
    %1718 = vmatpush1.msra.mxu0 0.0
    %1719 = vmatprep.subr.mxu0 0.0
    %1720 = vmatpush1.msra.mxu0 0.0
    %1721 = vmatprep.subr.mxu0 0.0
    %1722 = vmatpush1.msra.mxu0 0.0
    %1723 = vmatprep.subr.mxu0 0.0
    %1724 = vmatpush1.msra.mxu0 0.0
    %1725 = vmatprep.subr.mxu0 0.0
    %1726 = vmatpush1.msra.mxu0 0.0
    %1727 = vmatprep.subr.mxu0 0.0
    %1728 = vmatpush1.msra.mxu0 0.0
    %1729 = vmatprep.subr.mxu0 0.0
    %1730 = vmatpush1.msra.mxu0 0.0
    %1731 = vmatprep.subr.mxu0 0.0
    %1732 = vmatpush1.msra.mxu0 0.0
    %1733 = vmatprep.subr.mxu0 0.0
    %1734 = vmatpush1.msra.mxu0 0.0
    %1735 = vmatprep.subr.mxu0 0.0
    %1736 = vmatpush1.msra.mxu0 0.0
    %1737 = vmatprep.subr.mxu0 0.0
    %1738 = vmatpush1.msra.mxu0 0.0
    %1739 = vmatprep.subr.mxu0 0.0
    %1740 = vmatpush1.msra.mxu0 0.0
    %1741 = vmatprep.subr.mxu0 0.0
    %1742 = vmatpush1.msra.mxu0 0.0
    %1743 = vmatprep.subr.mxu0 0.0
    %1744 = vmatpush1.msra.mxu0 0.0
    %1745 = vmatprep.subr.mxu0 0.0
    %1746 = vmatpush1.msra.mxu0 0.0
    %1747 = vmatprep.subr.mxu0 0.0
    %1748 = vmatpush1.msra.mxu0 0.0
    %1749 = vmatprep.subr.mxu0 0.0
    %1750 = vmatpush1.msra.mxu0 0.0
    %1751 = vmatprep.subr.mxu0 0.0
    %1752 = vmatpush1.msra.mxu0 0.0
    %1753 = vmatprep.mubr.f32.mxu0 0.0
    %1754 = vmatmul.mubr.f32.gmra.mrb[0].mxu0 %v1687
    %v1755 = vpop.f32.mrb[0].mxu0
    %v1756 = vadd.f32 %v1611, %v1755
    %v1757 = vpop.f32.mrb[0].mxu0
    %v1758 = vadd.f32 %v1613, %v1757
    %1759 = vdwg.mxu0
    %1760 = vmatprep.subr.mxu0 %v387
    %1761 = vmatpush1.msra.mxu0 %v385
    %1762 = vmatprep.subr.mxu0 0.0
    %1763 = vmatpush1.msra.mxu0 0.0
    %1764 = vmatprep.subr.mxu0 0.0
    %1765 = vmatpush1.msra.mxu0 0.0
    %1766 = vmatprep.subr.mxu0 0.0
    %1767 = vmatpush1.msra.mxu0 0.0
    %1768 = vmatprep.subr.mxu0 0.0
    %1769 = vmatpush1.msra.mxu0 0.0
    %1770 = vmatprep.subr.mxu0 0.0
    %1771 = vmatpush1.msra.mxu0 0.0
    %1772 = vmatprep.subr.mxu0 0.0
    %1773 = vmatpush1.msra.mxu0 0.0
    %1774 = vmatprep.subr.mxu0 0.0
    %1775 = vmatpush1.msra.mxu0 0.0
    %1776 = vmatprep.subr.mxu0 0.0
    %1777 = vmatpush1.msra.mxu0 0.0
    %1778 = vmatprep.subr.mxu0 0.0
    %1779 = vmatpush1.msra.mxu0 0.0
    %1780 = vmatprep.subr.mxu0 0.0
    %1781 = vmatpush1.msra.mxu0 0.0
    %1782 = vmatprep.subr.mxu0 0.0
    %1783 = vmatpush1.msra.mxu0 0.0
    %1784 = vmatprep.subr.mxu0 0.0
    %1785 = vmatpush1.msra.mxu0 0.0
    %1786 = vmatprep.subr.mxu0 0.0
    %1787 = vmatpush1.msra.mxu0 0.0
    %1788 = vmatprep.subr.mxu0 0.0
    %1789 = vmatpush1.msra.mxu0 0.0
    %1790 = vmatprep.subr.mxu0 0.0
    %1791 = vmatpush1.msra.mxu0 0.0
    %1792 = vmatprep.subr.mxu0 0.0
    %1793 = vmatpush1.msra.mxu0 0.0
    %1794 = vmatprep.subr.mxu0 0.0
    %1795 = vmatpush1.msra.mxu0 0.0
    %1796 = vmatprep.subr.mxu0 0.0
    %1797 = vmatpush1.msra.mxu0 0.0
    %1798 = vmatprep.subr.mxu0 0.0
    %1799 = vmatpush1.msra.mxu0 0.0
    %1800 = vmatprep.subr.mxu0 0.0
    %1801 = vmatpush1.msra.mxu0 0.0
    %1802 = vmatprep.subr.mxu0 0.0
    %1803 = vmatpush1.msra.mxu0 0.0
    %1804 = vmatprep.subr.mxu0 0.0
    %1805 = vmatpush1.msra.mxu0 0.0
    %1806 = vmatprep.subr.mxu0 0.0
    %1807 = vmatpush1.msra.mxu0 0.0
    %1808 = vmatprep.subr.mxu0 0.0
    %1809 = vmatpush1.msra.mxu0 0.0
    %1810 = vmatprep.subr.mxu0 0.0
    %1811 = vmatpush1.msra.mxu0 0.0
    %1812 = vmatprep.subr.mxu0 0.0
    %1813 = vmatpush1.msra.mxu0 0.0
    %1814 = vmatprep.subr.mxu0 0.0
    %1815 = vmatpush1.msra.mxu0 0.0
    %1816 = vmatprep.subr.mxu0 0.0
    %1817 = vmatpush1.msra.mxu0 0.0
    %1818 = vmatprep.subr.mxu0 0.0
    %1819 = vmatpush1.msra.mxu0 0.0
    %1820 = vmatprep.subr.mxu0 0.0
    %1821 = vmatpush1.msra.mxu0 0.0
    %1822 = vmatprep.subr.mxu0 0.0
    %1823 = vmatpush1.msra.mxu0 0.0
    %1824 = vmatprep.mubr.f32.mxu0 0.0
    %1825 = vmatmul.mubr.f32.gmra.mrb[0].mxu0 %v1687
    %v1826 = vpop.f32.mrb[0].mxu0
    %v1827 = vadd.f32 %v1682, %v1826
    %v1828 = vpop.f32.mrb[0].mxu0
    %v1829 = vadd.f32 %v1684, %v1828
    %1830 = vdwg.mxu0
    %v1831 = vadd.f32 %v1756, %v535
    %v1832 = vadd.f32 %v1758, %v539
    %v1833 = vadd.f32 %v1827, %v543
    %v1834 = vadd.f32 %v1829, %v547
    %v1835 = vxor.u32 %v1831, 2147483648
    %v1836 = vmul.f32 %v1835, 1.442695
    %v1837 = vpow.pop %v1836
    %v1838 = vadd.f32 %v1837, 1.0
    %v1839 = vrcp.pop %v1838
    %v1840 = vmul.f32 1.0, %v1839
    %v1841 = vxor.u32 %v1832, 2147483648
    %v1842 = vmul.f32 %v1841, 1.442695
    %v1843 = vpow.pop %v1842
    %v1844 = vadd.f32 %v1843, 1.0
    %v1845 = vrcp.pop %v1844
    %v1846 = vmul.f32 1.0, %v1845
    %v1847 = vtanh.pop %v1833
    %v1848 = vxor.u32 %v1834, 2147483648
    %v1849 = vmul.f32 %v1848, 1.442695
    %v1850 = vpow.pop %v1849
    %v1851 = vadd.f32 %v1850, 1.0
    %v1852 = vrcp.pop %v1851
    %v1853 = vmul.f32 1.0, %v1852
    %v1854 = vmul.f32 %v1846, %v1227
    %v1855 = vmul.f32 %v1840, %v1847
    %v1856 = vadd.f32 %v1854, %v1855
    %v1857 = vtanh.pop %v1856
    %v1858 = vmul.f32 %v1853, %v1857
    %1859 = vmatprep.subr.mxu0 %v165
    %1860 = vmatpush1.msra.mxu0 %v164
    %1861 = vmatprep.subr.mxu0 %v169
    %1862 = vmatpush1.msra.mxu0 %v168
    %1863 = vmatprep.subr.mxu0 %v173
    %1864 = vmatpush1.msra.mxu0 %v172
    %1865 = vmatprep.subr.mxu0 %v177
    %1866 = vmatpush1.msra.mxu0 %v176
    %1867 = vmatprep.subr.mxu0 %v181
    %1868 = vmatpush1.msra.mxu0 %v180
    %1869 = vmatprep.subr.mxu0 %v185
    %1870 = vmatpush1.msra.mxu0 %v184
    %1871 = vmatprep.subr.mxu0 %v189
    %1872 = vmatpush1.msra.mxu0 %v188
    %1873 = vmatprep.subr.mxu0 %v193
    %1874 = vmatpush1.msra.mxu0 %v192
    %1875 = vmatprep.subr.mxu0 %v197
    %1876 = vmatpush1.msra.mxu0 %v196
    %1877 = vmatprep.subr.mxu0 %v201
    %1878 = vmatpush1.msra.mxu0 %v200
    %1879 = vmatprep.subr.mxu0 %v205
    %1880 = vmatpush1.msra.mxu0 %v204
    %1881 = vmatprep.subr.mxu0 %v209
    %1882 = vmatpush1.msra.mxu0 %v208
    %1883 = vmatprep.subr.mxu0 %v213
    %1884 = vmatpush1.msra.mxu0 %v212
    %1885 = vmatprep.subr.mxu0 %v217
    %1886 = vmatpush1.msra.mxu0 %v216
    %1887 = vmatprep.subr.mxu0 %v221
    %1888 = vmatpush1.msra.mxu0 %v220
    %1889 = vmatprep.subr.mxu0 %v225
    %1890 = vmatpush1.msra.mxu0 %v224
    %1891 = vmatprep.subr.mxu0 0.0
    %1892 = vmatpush1.msra.mxu0 0.0
    %1893 = vmatprep.subr.mxu0 0.0
    %1894 = vmatpush1.msra.mxu0 0.0
    %1895 = vmatprep.subr.mxu0 0.0
    %1896 = vmatpush1.msra.mxu0 0.0
    %1897 = vmatprep.subr.mxu0 0.0
    %1898 = vmatpush1.msra.mxu0 0.0
    %1899 = vmatprep.subr.mxu0 0.0
    %1900 = vmatpush1.msra.mxu0 0.0
    %1901 = vmatprep.subr.mxu0 0.0
    %1902 = vmatpush1.msra.mxu0 0.0
    %1903 = vmatprep.subr.mxu0 0.0
    %1904 = vmatpush1.msra.mxu0 0.0
    %1905 = vmatprep.subr.mxu0 0.0
    %1906 = vmatpush1.msra.mxu0 0.0
    %1907 = vmatprep.subr.mxu0 0.0
    %1908 = vmatpush1.msra.mxu0 0.0
    %1909 = vmatprep.subr.mxu0 0.0
    %1910 = vmatpush1.msra.mxu0 0.0
    %1911 = vmatprep.subr.mxu0 0.0
    %1912 = vmatpush1.msra.mxu0 0.0
    %1913 = vmatprep.subr.mxu0 0.0
    %1914 = vmatpush1.msra.mxu0 0.0
    %1915 = vmatprep.subr.mxu0 0.0
    %1916 = vmatpush1.msra.mxu0 0.0
    %1917 = vmatprep.subr.mxu0 0.0
    %1918 = vmatpush1.msra.mxu0 0.0
    %1919 = vmatprep.subr.mxu0 0.0
    %1920 = vmatpush1.msra.mxu0 0.0
    %1921 = vmatprep.subr.mxu0 0.0
    %1922 = vmatpush1.msra.mxu0 0.0
    %1923 = vmatprep.mubr.f32.mxu0 0.0
    %1924 = vmatmul.mubr.f32.gmra.mrb[0].mxu0 %v1541
    %v1925 = vpop.f32.mrb[0].mxu0
    %v1926 = vadd.f32 0.0, %v1925
    %v1927 = vpop.f32.mrb[0].mxu0
    %v1928 = vadd.f32 0.0, %v1927
    %1929 = vdwg.mxu0
    %1930 = vmatprep.subr.mxu0 %v167
    %1931 = vmatpush1.msra.mxu0 %v166
    %1932 = vmatprep.subr.mxu0 %v171
    %1933 = vmatpush1.msra.mxu0 %v170
    %1934 = vmatprep.subr.mxu0 %v175
    %1935 = vmatpush1.msra.mxu0 %v174
    %1936 = vmatprep.subr.mxu0 %v179
    %1937 = vmatpush1.msra.mxu0 %v178
    %1938 = vmatprep.subr.mxu0 %v183
    %1939 = vmatpush1.msra.mxu0 %v182
    %1940 = vmatprep.subr.mxu0 %v187
    %1941 = vmatpush1.msra.mxu0 %v186
    %1942 = vmatprep.subr.mxu0 %v191
    %1943 = vmatpush1.msra.mxu0 %v190
    %1944 = vmatprep.subr.mxu0 %v195
    %1945 = vmatpush1.msra.mxu0 %v194
    %1946 = vmatprep.subr.mxu0 %v199
    %1947 = vmatpush1.msra.mxu0 %v198
    %1948 = vmatprep.subr.mxu0 %v203
    %1949 = vmatpush1.msra.mxu0 %v202
    %1950 = vmatprep.subr.mxu0 %v207
    %1951 = vmatpush1.msra.mxu0 %v206
    %1952 = vmatprep.subr.mxu0 %v211
    %1953 = vmatpush1.msra.mxu0 %v210
    %1954 = vmatprep.subr.mxu0 %v215
    %1955 = vmatpush1.msra.mxu0 %v214
    %1956 = vmatprep.subr.mxu0 %v219
    %1957 = vmatpush1.msra.mxu0 %v218
    %1958 = vmatprep.subr.mxu0 %v223
    %1959 = vmatpush1.msra.mxu0 %v222
    %1960 = vmatprep.subr.mxu0 %v227
    %1961 = vmatpush1.msra.mxu0 %v226
    %1962 = vmatprep.subr.mxu0 0.0
    %1963 = vmatpush1.msra.mxu0 0.0
    %1964 = vmatprep.subr.mxu0 0.0
    %1965 = vmatpush1.msra.mxu0 0.0
    %1966 = vmatprep.subr.mxu0 0.0
    %1967 = vmatpush1.msra.mxu0 0.0
    %1968 = vmatprep.subr.mxu0 0.0
    %1969 = vmatpush1.msra.mxu0 0.0
    %1970 = vmatprep.subr.mxu0 0.0
    %1971 = vmatpush1.msra.mxu0 0.0
    %1972 = vmatprep.subr.mxu0 0.0
    %1973 = vmatpush1.msra.mxu0 0.0
    %1974 = vmatprep.subr.mxu0 0.0
    %1975 = vmatpush1.msra.mxu0 0.0
    %1976 = vmatprep.subr.mxu0 0.0
    %1977 = vmatpush1.msra.mxu0 0.0
    %1978 = vmatprep.subr.mxu0 0.0
    %1979 = vmatpush1.msra.mxu0 0.0
    %1980 = vmatprep.subr.mxu0 0.0
    %1981 = vmatpush1.msra.mxu0 0.0
    %1982 = vmatprep.subr.mxu0 0.0
    %1983 = vmatpush1.msra.mxu0 0.0
    %1984 = vmatprep.subr.mxu0 0.0
    %1985 = vmatpush1.msra.mxu0 0.0
    %1986 = vmatprep.subr.mxu0 0.0
    %1987 = vmatpush1.msra.mxu0 0.0
    %1988 = vmatprep.subr.mxu0 0.0
    %1989 = vmatpush1.msra.mxu0 0.0
    %1990 = vmatprep.subr.mxu0 0.0
    %1991 = vmatpush1.msra.mxu0 0.0
    %1992 = vmatprep.subr.mxu0 0.0
    %1993 = vmatpush1.msra.mxu0 0.0
    %1994 = vmatprep.mubr.f32.mxu0 0.0
    %1995 = vmatmul.mubr.f32.gmra.mrb[0].mxu0 %v1541
    %v1996 = vpop.f32.mrb[0].mxu0
    %v1997 = vadd.f32 0.0, %v1996
    %v1998 = vpop.f32.mrb[0].mxu0
    %v1999 = vadd.f32 0.0, %v1998
    %2000 = vdwg.mxu0
    %2001 = vmatprep.subr.mxu0 %v101
    %2002 = vmatpush1.msra.mxu0 %v100
    %2003 = vmatprep.subr.mxu0 %v105
    %2004 = vmatpush1.msra.mxu0 %v104
    %2005 = vmatprep.subr.mxu0 %v109
    %2006 = vmatpush1.msra.mxu0 %v108
    %2007 = vmatprep.subr.mxu0 %v113
    %2008 = vmatpush1.msra.mxu0 %v112
    %2009 = vmatprep.subr.mxu0 %v117
    %2010 = vmatpush1.msra.mxu0 %v116
    %2011 = vmatprep.subr.mxu0 %v121
    %2012 = vmatpush1.msra.mxu0 %v120
    %2013 = vmatprep.subr.mxu0 %v125
    %2014 = vmatpush1.msra.mxu0 %v124
    %2015 = vmatprep.subr.mxu0 %v129
    %2016 = vmatpush1.msra.mxu0 %v128
    %2017 = vmatprep.subr.mxu0 %v133
    %2018 = vmatpush1.msra.mxu0 %v132
    %2019 = vmatprep.subr.mxu0 %v137
    %2020 = vmatpush1.msra.mxu0 %v136
    %2021 = vmatprep.subr.mxu0 %v141
    %2022 = vmatpush1.msra.mxu0 %v140
    %2023 = vmatprep.subr.mxu0 %v145
    %2024 = vmatpush1.msra.mxu0 %v144
    %2025 = vmatprep.subr.mxu0 %v149
    %2026 = vmatpush1.msra.mxu0 %v148
    %2027 = vmatprep.subr.mxu0 %v153
    %2028 = vmatpush1.msra.mxu0 %v152
    %2029 = vmatprep.subr.mxu0 %v157
    %2030 = vmatpush1.msra.mxu0 %v156
    %2031 = vmatprep.subr.mxu0 %v161
    %2032 = vmatpush1.msra.mxu0 %v160
    %2033 = vmatprep.subr.mxu0 0.0
    %2034 = vmatpush1.msra.mxu0 0.0
    %2035 = vmatprep.subr.mxu0 0.0
    %2036 = vmatpush1.msra.mxu0 0.0
    %2037 = vmatprep.subr.mxu0 0.0
    %2038 = vmatpush1.msra.mxu0 0.0
    %2039 = vmatprep.subr.mxu0 0.0
    %2040 = vmatpush1.msra.mxu0 0.0
    %2041 = vmatprep.subr.mxu0 0.0
    %2042 = vmatpush1.msra.mxu0 0.0
    %2043 = vmatprep.subr.mxu0 0.0
    %2044 = vmatpush1.msra.mxu0 0.0
    %2045 = vmatprep.subr.mxu0 0.0
    %2046 = vmatpush1.msra.mxu0 0.0
    %2047 = vmatprep.subr.mxu0 0.0
    %2048 = vmatpush1.msra.mxu0 0.0
    %2049 = vmatprep.subr.mxu0 0.0
    %2050 = vmatpush1.msra.mxu0 0.0
    %2051 = vmatprep.subr.mxu0 0.0
    %2052 = vmatpush1.msra.mxu0 0.0
    %2053 = vmatprep.subr.mxu0 0.0
    %2054 = vmatpush1.msra.mxu0 0.0
    %2055 = vmatprep.subr.mxu0 0.0
    %2056 = vmatpush1.msra.mxu0 0.0
    %2057 = vmatprep.subr.mxu0 0.0
    %2058 = vmatpush1.msra.mxu0 0.0
    %2059 = vmatprep.subr.mxu0 0.0
    %2060 = vmatpush1.msra.mxu0 0.0
    %2061 = vmatprep.subr.mxu0 0.0
    %2062 = vmatpush1.msra.mxu0 0.0
    %2063 = vmatprep.subr.mxu0 0.0
    %2064 = vmatpush1.msra.mxu0 0.0
    %2065 = vmatprep.mubr.f32.mxu0 0.0
    %2066 = vmatmul.mubr.f32.gmra.mrb[0].mxu0 %v1858
    %v2067 = vpop.f32.mrb[0].mxu0
    %v2068 = vadd.f32 %v1926, %v2067
    %v2069 = vpop.f32.mrb[0].mxu0
    %v2070 = vadd.f32 %v1928, %v2069
    %2071 = vdwg.mxu0
    %2072 = vmatprep.subr.mxu0 %v103
    %2073 = vmatpush1.msra.mxu0 %v102
    %2074 = vmatprep.subr.mxu0 %v107
    %2075 = vmatpush1.msra.mxu0 %v106
    %2076 = vmatprep.subr.mxu0 %v111
    %2077 = vmatpush1.msra.mxu0 %v110
    %2078 = vmatprep.subr.mxu0 %v115
    %2079 = vmatpush1.msra.mxu0 %v114
    %2080 = vmatprep.subr.mxu0 %v119
    %2081 = vmatpush1.msra.mxu0 %v118
    %2082 = vmatprep.subr.mxu0 %v123
    %2083 = vmatpush1.msra.mxu0 %v122
    %2084 = vmatprep.subr.mxu0 %v127
    %2085 = vmatpush1.msra.mxu0 %v126
    %2086 = vmatprep.subr.mxu0 %v131
    %2087 = vmatpush1.msra.mxu0 %v130
    %2088 = vmatprep.subr.mxu0 %v135
    %2089 = vmatpush1.msra.mxu0 %v134
    %2090 = vmatprep.subr.mxu0 %v139
    %2091 = vmatpush1.msra.mxu0 %v138
    %2092 = vmatprep.subr.mxu0 %v143
    %2093 = vmatpush1.msra.mxu0 %v142
    %2094 = vmatprep.subr.mxu0 %v147
    %2095 = vmatpush1.msra.mxu0 %v146
    %2096 = vmatprep.subr.mxu0 %v151
    %2097 = vmatpush1.msra.mxu0 %v150
    %2098 = vmatprep.subr.mxu0 %v155
    %2099 = vmatpush1.msra.mxu0 %v154
    %2100 = vmatprep.subr.mxu0 %v159
    %2101 = vmatpush1.msra.mxu0 %v158
    %2102 = vmatprep.subr.mxu0 %v163
    %2103 = vmatpush1.msra.mxu0 %v162
    %2104 = vmatprep.subr.mxu0 0.0
    %2105 = vmatpush1.msra.mxu0 0.0
    %2106 = vmatprep.subr.mxu0 0.0
    %2107 = vmatpush1.msra.mxu0 0.0
    %2108 = vmatprep.subr.mxu0 0.0
    %2109 = vmatpush1.msra.mxu0 0.0
    %2110 = vmatprep.subr.mxu0 0.0
    %2111 = vmatpush1.msra.mxu0 0.0
    %2112 = vmatprep.subr.mxu0 0.0
    %2113 = vmatpush1.msra.mxu0 0.0
    %2114 = vmatprep.subr.mxu0 0.0
    %2115 = vmatpush1.msra.mxu0 0.0
    %2116 = vmatprep.subr.mxu0 0.0
    %2117 = vmatpush1.msra.mxu0 0.0
    %2118 = vmatprep.subr.mxu0 0.0
    %2119 = vmatpush1.msra.mxu0 0.0
    %2120 = vmatprep.subr.mxu0 0.0
    %2121 = vmatpush1.msra.mxu0 0.0
    %2122 = vmatprep.subr.mxu0 0.0
    %2123 = vmatpush1.msra.mxu0 0.0
    %2124 = vmatprep.subr.mxu0 0.0
    %2125 = vmatpush1.msra.mxu0 0.0
    %2126 = vmatprep.subr.mxu0 0.0
    %2127 = vmatpush1.msra.mxu0 0.0
    %2128 = vmatprep.subr.mxu0 0.0
    %2129 = vmatpush1.msra.mxu0 0.0
    %2130 = vmatprep.subr.mxu0 0.0
    %2131 = vmatpush1.msra.mxu0 0.0
    %2132 = vmatprep.subr.mxu0 0.0
    %2133 = vmatpush1.msra.mxu0 0.0
    %2134 = vmatprep.subr.mxu0 0.0
    %2135 = vmatpush1.msra.mxu0 0.0
    %2136 = vmatprep.mubr.f32.mxu0 0.0
    %2137 = vmatmul.mubr.f32.gmra.mrb[0].mxu0 %v1858
    %v2138 = vpop.f32.mrb[0].mxu0
    %v2139 = vadd.f32 %v1997, %v2138
    %v2140 = vpop.f32.mrb[0].mxu0
    %v2141 = vadd.f32 %v1999, %v2140
    %2142 = vdwg.mxu0
    %v2143 = vadd.f32 %v2068, %v868
    %v2144 = vadd.f32 %v2070, %v872
    %v2145 = vadd.f32 %v2139, %v876
    %v2146 = vadd.f32 %v2141, %v880
    %v2147 = vxor.u32 %v2143, 2147483648
    %v2148 = vmul.f32 %v2147, 1.442695
    %v2149 = vpow.pop %v2148
    %v2150 = vadd.f32 %v2149, 1.0
    %v2151 = vrcp.pop %v2150
    %v2152 = vmul.f32 1.0, %v2151
    %v2153 = vxor.u32 %v2144, 2147483648
    %v2154 = vmul.f32 %v2153, 1.442695
    %v2155 = vpow.pop %v2154
    %v2156 = vadd.f32 %v2155, 1.0
    %v2157 = vrcp.pop %v2156
    %v2158 = vmul.f32 1.0, %v2157
    %v2159 = vtanh.pop %v2145
    %v2160 = vxor.u32 %v2146, 2147483648
    %v2161 = vmul.f32 %v2160, 1.442695
    %v2162 = vpow.pop %v2161
    %v2163 = vadd.f32 %v2162, 1.0
    %v2164 = vrcp.pop %v2163
    %v2165 = vmul.f32 1.0, %v2164
    %v2166 = vmul.f32 %v2158, %v1539
    %v2167 = vmul.f32 %v2152, %v2159
    %v2168 = vadd.f32 %v2166, %v2167
    %v2169 = vtanh.pop %v2168
    %v2170 = vmul.f32 %v2165, %v2169
    %s2171 = scalar_lea.vmem %s0, 6
    %v2172 = vld [vmem:[%s2171] sm:$0x3]
    %2173 = vmatprep.subr.mxu0 %v36
    %2174 = vmatpush1.msra.mxu0 %v35
    %2175 = vmatprep.subr.mxu0 %v40
    %2176 = vmatpush1.msra.mxu0 %v39
    %2177 = vmatprep.subr.mxu0 %v44
    %2178 = vmatpush1.msra.mxu0 %v43
    %2179 = vmatprep.subr.mxu0 %v48
    %2180 = vmatpush1.msra.mxu0 %v47
    %2181 = vmatprep.subr.mxu0 %v52
    %2182 = vmatpush1.msra.mxu0 %v51
    %2183 = vmatprep.subr.mxu0 %v56
    %2184 = vmatpush1.msra.mxu0 %v55
    %2185 = vmatprep.subr.mxu0 %v60
    %2186 = vmatpush1.msra.mxu0 %v59
    %2187 = vmatprep.subr.mxu0 %v64
    %2188 = vmatpush1.msra.mxu0 %v63
    %2189 = vmatprep.subr.mxu0 %v68
    %2190 = vmatpush1.msra.mxu0 %v67
    %2191 = vmatprep.subr.mxu0 %v72
    %2192 = vmatpush1.msra.mxu0 %v71
    %2193 = vmatprep.subr.mxu0 %v76
    %2194 = vmatpush1.msra.mxu0 %v75
    %2195 = vmatprep.subr.mxu0 %v80
    %2196 = vmatpush1.msra.mxu0 %v79
    %2197 = vmatprep.subr.mxu0 %v84
    %2198 = vmatpush1.msra.mxu0 %v83
    %2199 = vmatprep.subr.mxu0 %v88
    %2200 = vmatpush1.msra.mxu0 %v87
    %2201 = vmatprep.subr.mxu0 %v92
    %2202 = vmatpush1.msra.mxu0 %v91
    %2203 = vmatprep.subr.mxu0 %v96
    %2204 = vmatpush1.msra.mxu0 %v95
    %2205 = vmatprep.subr.mxu0 0.0
    %2206 = vmatpush1.msra.mxu0 0.0
    %2207 = vmatprep.subr.mxu0 0.0
    %2208 = vmatpush1.msra.mxu0 0.0
    %2209 = vmatprep.subr.mxu0 0.0
    %2210 = vmatpush1.msra.mxu0 0.0
    %2211 = vmatprep.subr.mxu0 0.0
    %2212 = vmatpush1.msra.mxu0 0.0
    %2213 = vmatprep.subr.mxu0 0.0
    %2214 = vmatpush1.msra.mxu0 0.0
    %2215 = vmatprep.subr.mxu0 0.0
    %2216 = vmatpush1.msra.mxu0 0.0
    %2217 = vmatprep.subr.mxu0 0.0
    %2218 = vmatpush1.msra.mxu0 0.0
    %2219 = vmatprep.subr.mxu0 0.0
    %2220 = vmatpush1.msra.mxu0 0.0
    %2221 = vmatprep.subr.mxu0 0.0
    %2222 = vmatpush1.msra.mxu0 0.0
    %2223 = vmatprep.subr.mxu0 0.0
    %2224 = vmatpush1.msra.mxu0 0.0
    %2225 = vmatprep.subr.mxu0 0.0
    %2226 = vmatpush1.msra.mxu0 0.0
    %2227 = vmatprep.subr.mxu0 0.0
    %2228 = vmatpush1.msra.mxu0 0.0
    %2229 = vmatprep.subr.mxu0 0.0
    %2230 = vmatpush1.msra.mxu0 0.0
    %2231 = vmatprep.subr.mxu0 0.0
    %2232 = vmatpush1.msra.mxu0 0.0
    %2233 = vmatprep.subr.mxu0 0.0
    %2234 = vmatpush1.msra.mxu0 0.0
    %2235 = vmatprep.subr.mxu0 0.0
    %2236 = vmatpush1.msra.mxu0 0.0
    %2237 = vmatprep.mubr.f32.mxu0 0.0
    %2238 = vmatmul.mubr.f32.gmra.mrb[0].mxu0 %v1858
    %v2239 = vpop.f32.mrb[0].mxu0
    %v2240 = vadd.f32 0.0, %v2239
    %v2241 = vpop.f32.mrb[0].mxu0
    %v2242 = vadd.f32 0.0, %v2241
    %2243 = vdwg.mxu0
    %2244 = vmatprep.subr.mxu0 %v38
    %2245 = vmatpush1.msra.mxu0 %v37
    %2246 = vmatprep.subr.mxu0 %v42
    %2247 = vmatpush1.msra.mxu0 %v41
    %2248 = vmatprep.subr.mxu0 %v46
    %2249 = vmatpush1.msra.mxu0 %v45
    %2250 = vmatprep.subr.mxu0 %v50
    %2251 = vmatpush1.msra.mxu0 %v49
    %2252 = vmatprep.subr.mxu0 %v54
    %2253 = vmatpush1.msra.mxu0 %v53
    %2254 = vmatprep.subr.mxu0 %v58
    %2255 = vmatpush1.msra.mxu0 %v57
    %2256 = vmatprep.subr.mxu0 %v62
    %2257 = vmatpush1.msra.mxu0 %v61
    %2258 = vmatprep.subr.mxu0 %v66
    %2259 = vmatpush1.msra.mxu0 %v65
    %2260 = vmatprep.subr.mxu0 %v70
    %2261 = vmatpush1.msra.mxu0 %v69
    %2262 = vmatprep.subr.mxu0 %v74
    %2263 = vmatpush1.msra.mxu0 %v73
    %2264 = vmatprep.subr.mxu0 %v78
    %2265 = vmatpush1.msra.mxu0 %v77
    %2266 = vmatprep.subr.mxu0 %v82
    %2267 = vmatpush1.msra.mxu0 %v81
    %2268 = vmatprep.subr.mxu0 %v86
    %2269 = vmatpush1.msra.mxu0 %v85
    %2270 = vmatprep.subr.mxu0 %v90
    %2271 = vmatpush1.msra.mxu0 %v89
    %2272 = vmatprep.subr.mxu0 %v94
    %2273 = vmatpush1.msra.mxu0 %v93
    %2274 = vmatprep.subr.mxu0 %v98
    %2275 = vmatpush1.msra.mxu0 %v97
    %2276 = vmatprep.subr.mxu0 0.0
    %2277 = vmatpush1.msra.mxu0 0.0
    %2278 = vmatprep.subr.mxu0 0.0
    %2279 = vmatpush1.msra.mxu0 0.0
    %2280 = vmatprep.subr.mxu0 0.0
    %2281 = vmatpush1.msra.mxu0 0.0
    %2282 = vmatprep.subr.mxu0 0.0
    %2283 = vmatpush1.msra.mxu0 0.0
    %2284 = vmatprep.subr.mxu0 0.0
    %2285 = vmatpush1.msra.mxu0 0.0
    %2286 = vmatprep.subr.mxu0 0.0
    %2287 = vmatpush1.msra.mxu0 0.0
    %2288 = vmatprep.subr.mxu0 0.0
    %2289 = vmatpush1.msra.mxu0 0.0
    %2290 = vmatprep.subr.mxu0 0.0
    %2291 = vmatpush1.msra.mxu0 0.0
    %2292 = vmatprep.subr.mxu0 0.0
    %2293 = vmatpush1.msra.mxu0 0.0
    %2294 = vmatprep.subr.mxu0 0.0
    %2295 = vmatpush1.msra.mxu0 0.0
    %2296 = vmatprep.subr.mxu0 0.0
    %2297 = vmatpush1.msra.mxu0 0.0
    %2298 = vmatprep.subr.mxu0 0.0
    %2299 = vmatpush1.msra.mxu0 0.0
    %2300 = vmatprep.subr.mxu0 0.0
    %2301 = vmatpush1.msra.mxu0 0.0
    %2302 = vmatprep.subr.mxu0 0.0
    %2303 = vmatpush1.msra.mxu0 0.0
    %2304 = vmatprep.subr.mxu0 0.0
    %2305 = vmatpush1.msra.mxu0 0.0
    %2306 = vmatprep.subr.mxu0 0.0
    %2307 = vmatpush1.msra.mxu0 0.0
    %2308 = vmatprep.mubr.f32.mxu0 0.0
    %2309 = vmatmul.mubr.f32.gmra.mrb[0].mxu0 %v1858
    %v2310 = vpop.f32.mrb[0].mxu0
    %v2311 = vadd.f32 0.0, %v2310
    %v2312 = vpop.f32.mrb[0].mxu0
    %v2313 = vadd.f32 0.0, %v2312
    %2314 = vdwg.mxu0
    %v2316 = vsel %vm376, %v2172, 0
    %2318 = vmatprep.subr.mxu0 %v383
    %2319 = vmatpush1.msra.mxu0 %v381
    %2320 = vmatprep.subr.mxu0 0.0
    %2321 = vmatpush1.msra.mxu0 0.0
    %2322 = vmatprep.subr.mxu0 0.0
    %2323 = vmatpush1.msra.mxu0 0.0
    %2324 = vmatprep.subr.mxu0 0.0
    %2325 = vmatpush1.msra.mxu0 0.0
    %2326 = vmatprep.subr.mxu0 0.0
    %2327 = vmatpush1.msra.mxu0 0.0
    %2328 = vmatprep.subr.mxu0 0.0
    %2329 = vmatpush1.msra.mxu0 0.0
    %2330 = vmatprep.subr.mxu0 0.0
    %2331 = vmatpush1.msra.mxu0 0.0
    %2332 = vmatprep.subr.mxu0 0.0
    %2333 = vmatpush1.msra.mxu0 0.0
    %2334 = vmatprep.subr.mxu0 0.0
    %2335 = vmatpush1.msra.mxu0 0.0
    %2336 = vmatprep.subr.mxu0 0.0
    %2337 = vmatpush1.msra.mxu0 0.0
    %2338 = vmatprep.subr.mxu0 0.0
    %2339 = vmatpush1.msra.mxu0 0.0
    %2340 = vmatprep.subr.mxu0 0.0
    %2341 = vmatpush1.msra.mxu0 0.0
    %2342 = vmatprep.subr.mxu0 0.0
    %2343 = vmatpush1.msra.mxu0 0.0
    %2344 = vmatprep.subr.mxu0 0.0
    %2345 = vmatpush1.msra.mxu0 0.0
    %2346 = vmatprep.subr.mxu0 0.0
    %2347 = vmatpush1.msra.mxu0 0.0
    %2348 = vmatprep.subr.mxu0 0.0
    %2349 = vmatpush1.msra.mxu0 0.0
    %2350 = vmatprep.subr.mxu0 0.0
    %2351 = vmatpush1.msra.mxu0 0.0
    %2352 = vmatprep.subr.mxu0 0.0
    %2353 = vmatpush1.msra.mxu0 0.0
    %2354 = vmatprep.subr.mxu0 0.0
    %2355 = vmatpush1.msra.mxu0 0.0
    %2356 = vmatprep.subr.mxu0 0.0
    %2357 = vmatpush1.msra.mxu0 0.0
    %2358 = vmatprep.subr.mxu0 0.0
    %2359 = vmatpush1.msra.mxu0 0.0
    %2360 = vmatprep.subr.mxu0 0.0
    %2361 = vmatpush1.msra.mxu0 0.0
    %2362 = vmatprep.subr.mxu0 0.0
    %2363 = vmatpush1.msra.mxu0 0.0
    %2364 = vmatprep.subr.mxu0 0.0
    %2365 = vmatpush1.msra.mxu0 0.0
    %2366 = vmatprep.subr.mxu0 0.0
    %2367 = vmatpush1.msra.mxu0 0.0
    %2368 = vmatprep.subr.mxu0 0.0
    %2369 = vmatpush1.msra.mxu0 0.0
    %2370 = vmatprep.subr.mxu0 0.0
    %2371 = vmatpush1.msra.mxu0 0.0
    %2372 = vmatprep.subr.mxu0 0.0
    %2373 = vmatpush1.msra.mxu0 0.0
    %2374 = vmatprep.subr.mxu0 0.0
    %2375 = vmatpush1.msra.mxu0 0.0
    %2376 = vmatprep.subr.mxu0 0.0
    %2377 = vmatpush1.msra.mxu0 0.0
    %2378 = vmatprep.subr.mxu0 0.0
    %2379 = vmatpush1.msra.mxu0 0.0
    %2380 = vmatprep.subr.mxu0 0.0
    %2381 = vmatpush1.msra.mxu0 0.0
    %2382 = vmatprep.mubr.f32.mxu0 0.0
    %2383 = vmatmul.mubr.f32.gmra.mrb[0].mxu0 %v2316
    %v2384 = vpop.f32.mrb[0].mxu0
    %v2385 = vadd.f32 %v2240, %v2384
    %v2386 = vpop.f32.mrb[0].mxu0
    %v2387 = vadd.f32 %v2242, %v2386
    %2388 = vdwg.mxu0
    %2389 = vmatprep.subr.mxu0 %v387
    %2390 = vmatpush1.msra.mxu0 %v385
    %2391 = vmatprep.subr.mxu0 0.0
    %2392 = vmatpush1.msra.mxu0 0.0
    %2393 = vmatprep.subr.mxu0 0.0
    %2394 = vmatpush1.msra.mxu0 0.0
    %2395 = vmatprep.subr.mxu0 0.0
    %2396 = vmatpush1.msra.mxu0 0.0
    %2397 = vmatprep.subr.mxu0 0.0
    %2398 = vmatpush1.msra.mxu0 0.0
    %2399 = vmatprep.subr.mxu0 0.0
    %2400 = vmatpush1.msra.mxu0 0.0
    %2401 = vmatprep.subr.mxu0 0.0
    %2402 = vmatpush1.msra.mxu0 0.0
    %2403 = vmatprep.subr.mxu0 0.0
    %2404 = vmatpush1.msra.mxu0 0.0
    %2405 = vmatprep.subr.mxu0 0.0
    %2406 = vmatpush1.msra.mxu0 0.0
    %2407 = vmatprep.subr.mxu0 0.0
    %2408 = vmatpush1.msra.mxu0 0.0
    %2409 = vmatprep.subr.mxu0 0.0
    %2410 = vmatpush1.msra.mxu0 0.0
    %2411 = vmatprep.subr.mxu0 0.0
    %2412 = vmatpush1.msra.mxu0 0.0
    %2413 = vmatprep.subr.mxu0 0.0
    %2414 = vmatpush1.msra.mxu0 0.0
    %2415 = vmatprep.subr.mxu0 0.0
    %2416 = vmatpush1.msra.mxu0 0.0
    %2417 = vmatprep.subr.mxu0 0.0
    %2418 = vmatpush1.msra.mxu0 0.0
    %2419 = vmatprep.subr.mxu0 0.0
    %2420 = vmatpush1.msra.mxu0 0.0
    %2421 = vmatprep.subr.mxu0 0.0
    %2422 = vmatpush1.msra.mxu0 0.0
    %2423 = vmatprep.subr.mxu0 0.0
    %2424 = vmatpush1.msra.mxu0 0.0
    %2425 = vmatprep.subr.mxu0 0.0
    %2426 = vmatpush1.msra.mxu0 0.0
    %2427 = vmatprep.subr.mxu0 0.0
    %2428 = vmatpush1.msra.mxu0 0.0
    %2429 = vmatprep.subr.mxu0 0.0
    %2430 = vmatpush1.msra.mxu0 0.0
    %2431 = vmatprep.subr.mxu0 0.0
    %2432 = vmatpush1.msra.mxu0 0.0
    %2433 = vmatprep.subr.mxu0 0.0
    %2434 = vmatpush1.msra.mxu0 0.0
    %2435 = vmatprep.subr.mxu0 0.0
    %2436 = vmatpush1.msra.mxu0 0.0
    %2437 = vmatprep.subr.mxu0 0.0
    %2438 = vmatpush1.msra.mxu0 0.0
    %2439 = vmatprep.subr.mxu0 0.0
    %2440 = vmatpush1.msra.mxu0 0.0
    %2441 = vmatprep.subr.mxu0 0.0
    %2442 = vmatpush1.msra.mxu0 0.0
    %2443 = vmatprep.subr.mxu0 0.0
    %2444 = vmatpush1.msra.mxu0 0.0
    %2445 = vmatprep.subr.mxu0 0.0
    %2446 = vmatpush1.msra.mxu0 0.0
    %2447 = vmatprep.subr.mxu0 0.0
    %2448 = vmatpush1.msra.mxu0 0.0
    %2449 = vmatprep.subr.mxu0 0.0
    %2450 = vmatpush1.msra.mxu0 0.0
    %2451 = vmatprep.subr.mxu0 0.0
    %2452 = vmatpush1.msra.mxu0 0.0
    %2453 = vmatprep.mubr.f32.mxu0 0.0
    %2454 = vmatmul.mubr.f32.gmra.mrb[0].mxu0 %v2316
    %v2455 = vpop.f32.mrb[0].mxu0
    %v2456 = vadd.f32 %v2311, %v2455
    %v2457 = vpop.f32.mrb[0].mxu0
    %v2458 = vadd.f32 %v2313, %v2457
    %2459 = vdwg.mxu0
    %v2460 = vadd.f32 %v2385, %v535
    %v2461 = vadd.f32 %v2387, %v539
    %v2462 = vadd.f32 %v2456, %v543
    %v2463 = vadd.f32 %v2458, %v547
    %v2464 = vxor.u32 %v2460, 2147483648
    %v2465 = vmul.f32 %v2464, 1.442695
    %v2466 = vpow.pop %v2465
    %v2467 = vadd.f32 %v2466, 1.0
    %v2468 = vrcp.pop %v2467
    %v2469 = vmul.f32 1.0, %v2468
    %v2470 = vxor.u32 %v2461, 2147483648
    %v2471 = vmul.f32 %v2470, 1.442695
    %v2472 = vpow.pop %v2471
    %v2473 = vadd.f32 %v2472, 1.0
    %v2474 = vrcp.pop %v2473
    %v2475 = vmul.f32 1.0, %v2474
    %v2476 = vtanh.pop %v2462
    %v2477 = vxor.u32 %v2463, 2147483648
    %v2478 = vmul.f32 %v2477, 1.442695
    %v2479 = vpow.pop %v2478
    %v2480 = vadd.f32 %v2479, 1.0
    %v2481 = vrcp.pop %v2480
    %v2482 = vmul.f32 1.0, %v2481
    %v2483 = vmul.f32 %v2475, %v1856
    %v2484 = vmul.f32 %v2469, %v2476
    %v2485 = vadd.f32 %v2483, %v2484
    %v2486 = vtanh.pop %v2485
    %v2487 = vmul.f32 %v2482, %v2486
    %2488 = vmatprep.subr.mxu0 %v165
    %2489 = vmatpush1.msra.mxu0 %v164
    %2490 = vmatprep.subr.mxu0 %v169
    %2491 = vmatpush1.msra.mxu0 %v168
    %2492 = vmatprep.subr.mxu0 %v173
    %2493 = vmatpush1.msra.mxu0 %v172
    %2494 = vmatprep.subr.mxu0 %v177
    %2495 = vmatpush1.msra.mxu0 %v176
    %2496 = vmatprep.subr.mxu0 %v181
    %2497 = vmatpush1.msra.mxu0 %v180
    %2498 = vmatprep.subr.mxu0 %v185
    %2499 = vmatpush1.msra.mxu0 %v184
    %2500 = vmatprep.subr.mxu0 %v189
    %2501 = vmatpush1.msra.mxu0 %v188
    %2502 = vmatprep.subr.mxu0 %v193
    %2503 = vmatpush1.msra.mxu0 %v192
    %2504 = vmatprep.subr.mxu0 %v197
    %2505 = vmatpush1.msra.mxu0 %v196
    %2506 = vmatprep.subr.mxu0 %v201
    %2507 = vmatpush1.msra.mxu0 %v200
    %2508 = vmatprep.subr.mxu0 %v205
    %2509 = vmatpush1.msra.mxu0 %v204
    %2510 = vmatprep.subr.mxu0 %v209
    %2511 = vmatpush1.msra.mxu0 %v208
    %2512 = vmatprep.subr.mxu0 %v213
    %2513 = vmatpush1.msra.mxu0 %v212
    %2514 = vmatprep.subr.mxu0 %v217
    %2515 = vmatpush1.msra.mxu0 %v216
    %2516 = vmatprep.subr.mxu0 %v221
    %2517 = vmatpush1.msra.mxu0 %v220
    %2518 = vmatprep.subr.mxu0 %v225
    %2519 = vmatpush1.msra.mxu0 %v224
    %2520 = vmatprep.subr.mxu0 0.0
    %2521 = vmatpush1.msra.mxu0 0.0
    %2522 = vmatprep.subr.mxu0 0.0
    %2523 = vmatpush1.msra.mxu0 0.0
    %2524 = vmatprep.subr.mxu0 0.0
    %2525 = vmatpush1.msra.mxu0 0.0
    %2526 = vmatprep.subr.mxu0 0.0
    %2527 = vmatpush1.msra.mxu0 0.0
    %2528 = vmatprep.subr.mxu0 0.0
    %2529 = vmatpush1.msra.mxu0 0.0
    %2530 = vmatprep.subr.mxu0 0.0
    %2531 = vmatpush1.msra.mxu0 0.0
    %2532 = vmatprep.subr.mxu0 0.0
    %2533 = vmatpush1.msra.mxu0 0.0
    %2534 = vmatprep.subr.mxu0 0.0
    %2535 = vmatpush1.msra.mxu0 0.0
    %2536 = vmatprep.subr.mxu0 0.0
    %2537 = vmatpush1.msra.mxu0 0.0
    %2538 = vmatprep.subr.mxu0 0.0
    %2539 = vmatpush1.msra.mxu0 0.0
    %2540 = vmatprep.subr.mxu0 0.0
    %2541 = vmatpush1.msra.mxu0 0.0
    %2542 = vmatprep.subr.mxu0 0.0
    %2543 = vmatpush1.msra.mxu0 0.0
    %2544 = vmatprep.subr.mxu0 0.0
    %2545 = vmatpush1.msra.mxu0 0.0
    %2546 = vmatprep.subr.mxu0 0.0
    %2547 = vmatpush1.msra.mxu0 0.0
    %2548 = vmatprep.subr.mxu0 0.0
    %2549 = vmatpush1.msra.mxu0 0.0
    %2550 = vmatprep.subr.mxu0 0.0
    %2551 = vmatpush1.msra.mxu0 0.0
    %2552 = vmatprep.mubr.f32.mxu0 0.0
    %2553 = vmatmul.mubr.f32.gmra.mrb[0].mxu0 %v2170
    %v2554 = vpop.f32.mrb[0].mxu0
    %v2555 = vadd.f32 0.0, %v2554
    %v2556 = vpop.f32.mrb[0].mxu0
    %v2557 = vadd.f32 0.0, %v2556
    %2558 = vdwg.mxu0
    %2559 = vmatprep.subr.mxu0 %v167
    %2560 = vmatpush1.msra.mxu0 %v166
    %2561 = vmatprep.subr.mxu0 %v171
    %2562 = vmatpush1.msra.mxu0 %v170
    %2563 = vmatprep.subr.mxu0 %v175
    %2564 = vmatpush1.msra.mxu0 %v174
    %2565 = vmatprep.subr.mxu0 %v179
    %2566 = vmatpush1.msra.mxu0 %v178
    %2567 = vmatprep.subr.mxu0 %v183
    %2568 = vmatpush1.msra.mxu0 %v182
    %2569 = vmatprep.subr.mxu0 %v187
    %2570 = vmatpush1.msra.mxu0 %v186
    %2571 = vmatprep.subr.mxu0 %v191
    %2572 = vmatpush1.msra.mxu0 %v190
    %2573 = vmatprep.subr.mxu0 %v195
    %2574 = vmatpush1.msra.mxu0 %v194
    %2575 = vmatprep.subr.mxu0 %v199
    %2576 = vmatpush1.msra.mxu0 %v198
    %2577 = vmatprep.subr.mxu0 %v203
    %2578 = vmatpush1.msra.mxu0 %v202
    %2579 = vmatprep.subr.mxu0 %v207
    %2580 = vmatpush1.msra.mxu0 %v206
    %2581 = vmatprep.subr.mxu0 %v211
    %2582 = vmatpush1.msra.mxu0 %v210
    %2583 = vmatprep.subr.mxu0 %v215
    %2584 = vmatpush1.msra.mxu0 %v214
    %2585 = vmatprep.subr.mxu0 %v219
    %2586 = vmatpush1.msra.mxu0 %v218
    %2587 = vmatprep.subr.mxu0 %v223
    %2588 = vmatpush1.msra.mxu0 %v222
    %2589 = vmatprep.subr.mxu0 %v227
    %2590 = vmatpush1.msra.mxu0 %v226
    %2591 = vmatprep.subr.mxu0 0.0
    %2592 = vmatpush1.msra.mxu0 0.0
    %2593 = vmatprep.subr.mxu0 0.0
    %2594 = vmatpush1.msra.mxu0 0.0
    %2595 = vmatprep.subr.mxu0 0.0
    %2596 = vmatpush1.msra.mxu0 0.0
    %2597 = vmatprep.subr.mxu0 0.0
    %2598 = vmatpush1.msra.mxu0 0.0
    %2599 = vmatprep.subr.mxu0 0.0
    %2600 = vmatpush1.msra.mxu0 0.0
    %2601 = vmatprep.subr.mxu0 0.0
    %2602 = vmatpush1.msra.mxu0 0.0
    %2603 = vmatprep.subr.mxu0 0.0
    %2604 = vmatpush1.msra.mxu0 0.0
    %2605 = vmatprep.subr.mxu0 0.0
    %2606 = vmatpush1.msra.mxu0 0.0
    %2607 = vmatprep.subr.mxu0 0.0
    %2608 = vmatpush1.msra.mxu0 0.0
    %2609 = vmatprep.subr.mxu0 0.0
    %2610 = vmatpush1.msra.mxu0 0.0
    %2611 = vmatprep.subr.mxu0 0.0
    %2612 = vmatpush1.msra.mxu0 0.0
    %2613 = vmatprep.subr.mxu0 0.0
    %2614 = vmatpush1.msra.mxu0 0.0
    %2615 = vmatprep.subr.mxu0 0.0
    %2616 = vmatpush1.msra.mxu0 0.0
    %2617 = vmatprep.subr.mxu0 0.0
    %2618 = vmatpush1.msra.mxu0 0.0
    %2619 = vmatprep.subr.mxu0 0.0
    %2620 = vmatpush1.msra.mxu0 0.0
    %2621 = vmatprep.subr.mxu0 0.0
    %2622 = vmatpush1.msra.mxu0 0.0
    %2623 = vmatprep.mubr.f32.mxu0 0.0
    %2624 = vmatmul.mubr.f32.gmra.mrb[0].mxu0 %v2170
    %v2625 = vpop.f32.mrb[0].mxu0
    %v2626 = vadd.f32 0.0, %v2625
    %v2627 = vpop.f32.mrb[0].mxu0
    %v2628 = vadd.f32 0.0, %v2627
    %2629 = vdwg.mxu0
    %2630 = vmatprep.subr.mxu0 %v101
    %2631 = vmatpush1.msra.mxu0 %v100
    %2632 = vmatprep.subr.mxu0 %v105
    %2633 = vmatpush1.msra.mxu0 %v104
    %2634 = vmatprep.subr.mxu0 %v109
    %2635 = vmatpush1.msra.mxu0 %v108
    %2636 = vmatprep.subr.mxu0 %v113
    %2637 = vmatpush1.msra.mxu0 %v112
    %2638 = vmatprep.subr.mxu0 %v117
    %2639 = vmatpush1.msra.mxu0 %v116
    %2640 = vmatprep.subr.mxu0 %v121
    %2641 = vmatpush1.msra.mxu0 %v120
    %2642 = vmatprep.subr.mxu0 %v125
    %2643 = vmatpush1.msra.mxu0 %v124
    %2644 = vmatprep.subr.mxu0 %v129
    %2645 = vmatpush1.msra.mxu0 %v128
    %2646 = vmatprep.subr.mxu0 %v133
    %2647 = vmatpush1.msra.mxu0 %v132
    %2648 = vmatprep.subr.mxu0 %v137
    %2649 = vmatpush1.msra.mxu0 %v136
    %2650 = vmatprep.subr.mxu0 %v141
    %2651 = vmatpush1.msra.mxu0 %v140
    %2652 = vmatprep.subr.mxu0 %v145
    %2653 = vmatpush1.msra.mxu0 %v144
    %2654 = vmatprep.subr.mxu0 %v149
    %2655 = vmatpush1.msra.mxu0 %v148
    %2656 = vmatprep.subr.mxu0 %v153
    %2657 = vmatpush1.msra.mxu0 %v152
    %2658 = vmatprep.subr.mxu0 %v157
    %2659 = vmatpush1.msra.mxu0 %v156
    %2660 = vmatprep.subr.mxu0 %v161
    %2661 = vmatpush1.msra.mxu0 %v160
    %2662 = vmatprep.subr.mxu0 0.0
    %2663 = vmatpush1.msra.mxu0 0.0
    %2664 = vmatprep.subr.mxu0 0.0
    %2665 = vmatpush1.msra.mxu0 0.0
    %2666 = vmatprep.subr.mxu0 0.0
    %2667 = vmatpush1.msra.mxu0 0.0
    %2668 = vmatprep.subr.mxu0 0.0
    %2669 = vmatpush1.msra.mxu0 0.0
    %2670 = vmatprep.subr.mxu0 0.0
    %2671 = vmatpush1.msra.mxu0 0.0
    %2672 = vmatprep.subr.mxu0 0.0
    %2673 = vmatpush1.msra.mxu0 0.0
    %2674 = vmatprep.subr.mxu0 0.0
    %2675 = vmatpush1.msra.mxu0 0.0
    %2676 = vmatprep.subr.mxu0 0.0
    %2677 = vmatpush1.msra.mxu0 0.0
    %2678 = vmatprep.subr.mxu0 0.0
    %2679 = vmatpush1.msra.mxu0 0.0
    %2680 = vmatprep.subr.mxu0 0.0
    %2681 = vmatpush1.msra.mxu0 0.0
    %2682 = vmatprep.subr.mxu0 0.0
    %2683 = vmatpush1.msra.mxu0 0.0
    %2684 = vmatprep.subr.mxu0 0.0
    %2685 = vmatpush1.msra.mxu0 0.0
    %2686 = vmatprep.subr.mxu0 0.0
    %2687 = vmatpush1.msra.mxu0 0.0
    %2688 = vmatprep.subr.mxu0 0.0
    %2689 = vmatpush1.msra.mxu0 0.0
    %2690 = vmatprep.subr.mxu0 0.0
    %2691 = vmatpush1.msra.mxu0 0.0
    %2692 = vmatprep.subr.mxu0 0.0
    %2693 = vmatpush1.msra.mxu0 0.0
    %2694 = vmatprep.mubr.f32.mxu0 0.0
    %2695 = vmatmul.mubr.f32.gmra.mrb[0].mxu0 %v2487
    %v2696 = vpop.f32.mrb[0].mxu0
    %v2697 = vadd.f32 %v2555, %v2696
    %v2698 = vpop.f32.mrb[0].mxu0
    %v2699 = vadd.f32 %v2557, %v2698
    %2700 = vdwg.mxu0
    %2701 = vmatprep.subr.mxu0 %v103
    %2702 = vmatpush1.msra.mxu0 %v102
    %2703 = vmatprep.subr.mxu0 %v107
    %2704 = vmatpush1.msra.mxu0 %v106
    %2705 = vmatprep.subr.mxu0 %v111
    %2706 = vmatpush1.msra.mxu0 %v110
    %2707 = vmatprep.subr.mxu0 %v115
    %2708 = vmatpush1.msra.mxu0 %v114
    %2709 = vmatprep.subr.mxu0 %v119
    %2710 = vmatpush1.msra.mxu0 %v118
    %2711 = vmatprep.subr.mxu0 %v123
    %2712 = vmatpush1.msra.mxu0 %v122
    %2713 = vmatprep.subr.mxu0 %v127
    %2714 = vmatpush1.msra.mxu0 %v126
    %2715 = vmatprep.subr.mxu0 %v131
    %2716 = vmatpush1.msra.mxu0 %v130
    %2717 = vmatprep.subr.mxu0 %v135
    %2718 = vmatpush1.msra.mxu0 %v134
    %2719 = vmatprep.subr.mxu0 %v139
    %2720 = vmatpush1.msra.mxu0 %v138
    %2721 = vmatprep.subr.mxu0 %v143
    %2722 = vmatpush1.msra.mxu0 %v142
    %2723 = vmatprep.subr.mxu0 %v147
    %2724 = vmatpush1.msra.mxu0 %v146
    %2725 = vmatprep.subr.mxu0 %v151
    %2726 = vmatpush1.msra.mxu0 %v150
    %2727 = vmatprep.subr.mxu0 %v155
    %2728 = vmatpush1.msra.mxu0 %v154
    %2729 = vmatprep.subr.mxu0 %v159
    %2730 = vmatpush1.msra.mxu0 %v158
    %2731 = vmatprep.subr.mxu0 %v163
    %2732 = vmatpush1.msra.mxu0 %v162
    %2733 = vmatprep.subr.mxu0 0.0
    %2734 = vmatpush1.msra.mxu0 0.0
    %2735 = vmatprep.subr.mxu0 0.0
    %2736 = vmatpush1.msra.mxu0 0.0
    %2737 = vmatprep.subr.mxu0 0.0
    %2738 = vmatpush1.msra.mxu0 0.0
    %2739 = vmatprep.subr.mxu0 0.0
    %2740 = vmatpush1.msra.mxu0 0.0
    %2741 = vmatprep.subr.mxu0 0.0
    %2742 = vmatpush1.msra.mxu0 0.0
    %2743 = vmatprep.subr.mxu0 0.0
    %2744 = vmatpush1.msra.mxu0 0.0
    %2745 = vmatprep.subr.mxu0 0.0
    %2746 = vmatpush1.msra.mxu0 0.0
    %2747 = vmatprep.subr.mxu0 0.0
    %2748 = vmatpush1.msra.mxu0 0.0
    %2749 = vmatprep.subr.mxu0 0.0
    %2750 = vmatpush1.msra.mxu0 0.0
    %2751 = vmatprep.subr.mxu0 0.0
    %2752 = vmatpush1.msra.mxu0 0.0
    %2753 = vmatprep.subr.mxu0 0.0
    %2754 = vmatpush1.msra.mxu0 0.0
    %2755 = vmatprep.subr.mxu0 0.0
    %2756 = vmatpush1.msra.mxu0 0.0
    %2757 = vmatprep.subr.mxu0 0.0
    %2758 = vmatpush1.msra.mxu0 0.0
    %2759 = vmatprep.subr.mxu0 0.0
    %2760 = vmatpush1.msra.mxu0 0.0
    %2761 = vmatprep.subr.mxu0 0.0
    %2762 = vmatpush1.msra.mxu0 0.0
    %2763 = vmatprep.subr.mxu0 0.0
    %2764 = vmatpush1.msra.mxu0 0.0
    %2765 = vmatprep.mubr.f32.mxu0 0.0
    %2766 = vmatmul.mubr.f32.gmra.mrb[0].mxu0 %v2487
    %v2767 = vpop.f32.mrb[0].mxu0
    %v2768 = vadd.f32 %v2626, %v2767
    %v2769 = vpop.f32.mrb[0].mxu0
    %v2770 = vadd.f32 %v2628, %v2769
    %2771 = vdwg.mxu0
    %v2772 = vadd.f32 %v2697, %v868
    %v2773 = vadd.f32 %v2699, %v872
    %v2774 = vadd.f32 %v2768, %v876
    %v2775 = vadd.f32 %v2770, %v880
    %v2776 = vxor.u32 %v2772, 2147483648
    %v2777 = vmul.f32 %v2776, 1.442695
    %v2778 = vpow.pop %v2777
    %v2779 = vadd.f32 %v2778, 1.0
    %v2780 = vrcp.pop %v2779
    %v2781 = vmul.f32 1.0, %v2780
    %v2782 = vxor.u32 %v2773, 2147483648
    %v2783 = vmul.f32 %v2782, 1.442695
    %v2784 = vpow.pop %v2783
    %v2785 = vadd.f32 %v2784, 1.0
    %v2786 = vrcp.pop %v2785
    %v2787 = vmul.f32 1.0, %v2786
    %v2788 = vtanh.pop %v2774
    %v2789 = vxor.u32 %v2775, 2147483648
    %v2790 = vmul.f32 %v2789, 1.442695
    %v2791 = vpow.pop %v2790
    %v2792 = vadd.f32 %v2791, 1.0
    %v2793 = vrcp.pop %v2792
    %v2794 = vmul.f32 1.0, %v2793
    %v2795 = vmul.f32 %v2787, %v2168
    %v2796 = vmul.f32 %v2781, %v2788
    %v2797 = vadd.f32 %v2795, %v2796
    %v2798 = vtanh.pop %v2797
    %v2799 = vmul.f32 %v2794, %v2798
    %s2800 = scalar_lea.vmem %s0, 8
    %v2801 = vld [vmem:[%s2800] sm:$0x3]
    %2802 = vmatprep.subr.mxu0 %v36
    %2803 = vmatpush1.msra.mxu0 %v35
    %2804 = vmatprep.subr.mxu0 %v40
    %2805 = vmatpush1.msra.mxu0 %v39
    %2806 = vmatprep.subr.mxu0 %v44
    %2807 = vmatpush1.msra.mxu0 %v43
    %2808 = vmatprep.subr.mxu0 %v48
    %2809 = vmatpush1.msra.mxu0 %v47
    %2810 = vmatprep.subr.mxu0 %v52
    %2811 = vmatpush1.msra.mxu0 %v51
    %2812 = vmatprep.subr.mxu0 %v56
    %2813 = vmatpush1.msra.mxu0 %v55
    %2814 = vmatprep.subr.mxu0 %v60
    %2815 = vmatpush1.msra.mxu0 %v59
    %2816 = vmatprep.subr.mxu0 %v64
    %2817 = vmatpush1.msra.mxu0 %v63
    %2818 = vmatprep.subr.mxu0 %v68
    %2819 = vmatpush1.msra.mxu0 %v67
    %2820 = vmatprep.subr.mxu0 %v72
    %2821 = vmatpush1.msra.mxu0 %v71
    %2822 = vmatprep.subr.mxu0 %v76
    %2823 = vmatpush1.msra.mxu0 %v75
    %2824 = vmatprep.subr.mxu0 %v80
    %2825 = vmatpush1.msra.mxu0 %v79
    %2826 = vmatprep.subr.mxu0 %v84
    %2827 = vmatpush1.msra.mxu0 %v83
    %2828 = vmatprep.subr.mxu0 %v88
    %2829 = vmatpush1.msra.mxu0 %v87
    %2830 = vmatprep.subr.mxu0 %v92
    %2831 = vmatpush1.msra.mxu0 %v91
    %2832 = vmatprep.subr.mxu0 %v96
    %2833 = vmatpush1.msra.mxu0 %v95
    %2834 = vmatprep.subr.mxu0 0.0
    %2835 = vmatpush1.msra.mxu0 0.0
    %2836 = vmatprep.subr.mxu0 0.0
    %2837 = vmatpush1.msra.mxu0 0.0
    %2838 = vmatprep.subr.mxu0 0.0
    %2839 = vmatpush1.msra.mxu0 0.0
    %2840 = vmatprep.subr.mxu0 0.0
    %2841 = vmatpush1.msra.mxu0 0.0
    %2842 = vmatprep.subr.mxu0 0.0
    %2843 = vmatpush1.msra.mxu0 0.0
    %2844 = vmatprep.subr.mxu0 0.0
    %2845 = vmatpush1.msra.mxu0 0.0
    %2846 = vmatprep.subr.mxu0 0.0
    %2847 = vmatpush1.msra.mxu0 0.0
    %2848 = vmatprep.subr.mxu0 0.0
    %2849 = vmatpush1.msra.mxu0 0.0
    %2850 = vmatprep.subr.mxu0 0.0
    %2851 = vmatpush1.msra.mxu0 0.0
    %2852 = vmatprep.subr.mxu0 0.0
    %2853 = vmatpush1.msra.mxu0 0.0
    %2854 = vmatprep.subr.mxu0 0.0
    %2855 = vmatpush1.msra.mxu0 0.0
    %2856 = vmatprep.subr.mxu0 0.0
    %2857 = vmatpush1.msra.mxu0 0.0
    %2858 = vmatprep.subr.mxu0 0.0
    %2859 = vmatpush1.msra.mxu0 0.0
    %2860 = vmatprep.subr.mxu0 0.0
    %2861 = vmatpush1.msra.mxu0 0.0
    %2862 = vmatprep.subr.mxu0 0.0
    %2863 = vmatpush1.msra.mxu0 0.0
    %2864 = vmatprep.subr.mxu0 0.0
    %2865 = vmatpush1.msra.mxu0 0.0
    %2866 = vmatprep.mubr.f32.mxu0 0.0
    %2867 = vmatmul.mubr.f32.gmra.mrb[0].mxu0 %v2487
    %v2868 = vpop.f32.mrb[0].mxu0
    %v2869 = vadd.f32 0.0, %v2868
    %v2870 = vpop.f32.mrb[0].mxu0
    %v2871 = vadd.f32 0.0, %v2870
    %2872 = vdwg.mxu0
    %2873 = vmatprep.subr.mxu0 %v38
    %2874 = vmatpush1.msra.mxu0 %v37
    %2875 = vmatprep.subr.mxu0 %v42
    %2876 = vmatpush1.msra.mxu0 %v41
    %2877 = vmatprep.subr.mxu0 %v46
    %2878 = vmatpush1.msra.mxu0 %v45
    %2879 = vmatprep.subr.mxu0 %v50
    %2880 = vmatpush1.msra.mxu0 %v49
    %2881 = vmatprep.subr.mxu0 %v54
    %2882 = vmatpush1.msra.mxu0 %v53
    %2883 = vmatprep.subr.mxu0 %v58
    %2884 = vmatpush1.msra.mxu0 %v57
    %2885 = vmatprep.subr.mxu0 %v62
    %2886 = vmatpush1.msra.mxu0 %v61
    %2887 = vmatprep.subr.mxu0 %v66
    %2888 = vmatpush1.msra.mxu0 %v65
    %2889 = vmatprep.subr.mxu0 %v70
    %2890 = vmatpush1.msra.mxu0 %v69
    %2891 = vmatprep.subr.mxu0 %v74
    %2892 = vmatpush1.msra.mxu0 %v73
    %2893 = vmatprep.subr.mxu0 %v78
    %2894 = vmatpush1.msra.mxu0 %v77
    %2895 = vmatprep.subr.mxu0 %v82
    %2896 = vmatpush1.msra.mxu0 %v81
    %2897 = vmatprep.subr.mxu0 %v86
    %2898 = vmatpush1.msra.mxu0 %v85
    %2899 = vmatprep.subr.mxu0 %v90
    %2900 = vmatpush1.msra.mxu0 %v89
    %2901 = vmatprep.subr.mxu0 %v94
    %2902 = vmatpush1.msra.mxu0 %v93
    %2903 = vmatprep.subr.mxu0 %v98
    %2904 = vmatpush1.msra.mxu0 %v97
    %2905 = vmatprep.subr.mxu0 0.0
    %2906 = vmatpush1.msra.mxu0 0.0
    %2907 = vmatprep.subr.mxu0 0.0
    %2908 = vmatpush1.msra.mxu0 0.0
    %2909 = vmatprep.subr.mxu0 0.0
    %2910 = vmatpush1.msra.mxu0 0.0
    %2911 = vmatprep.subr.mxu0 0.0
    %2912 = vmatpush1.msra.mxu0 0.0
    %2913 = vmatprep.subr.mxu0 0.0
    %2914 = vmatpush1.msra.mxu0 0.0
    %2915 = vmatprep.subr.mxu0 0.0
    %2916 = vmatpush1.msra.mxu0 0.0
    %2917 = vmatprep.subr.mxu0 0.0
    %2918 = vmatpush1.msra.mxu0 0.0
    %2919 = vmatprep.subr.mxu0 0.0
    %2920 = vmatpush1.msra.mxu0 0.0
    %2921 = vmatprep.subr.mxu0 0.0
    %2922 = vmatpush1.msra.mxu0 0.0
    %2923 = vmatprep.subr.mxu0 0.0
    %2924 = vmatpush1.msra.mxu0 0.0
    %2925 = vmatprep.subr.mxu0 0.0
    %2926 = vmatpush1.msra.mxu0 0.0
    %2927 = vmatprep.subr.mxu0 0.0
    %2928 = vmatpush1.msra.mxu0 0.0
    %2929 = vmatprep.subr.mxu0 0.0
    %2930 = vmatpush1.msra.mxu0 0.0
    %2931 = vmatprep.subr.mxu0 0.0
    %2932 = vmatpush1.msra.mxu0 0.0
    %2933 = vmatprep.subr.mxu0 0.0
    %2934 = vmatpush1.msra.mxu0 0.0
    %2935 = vmatprep.subr.mxu0 0.0
    %2936 = vmatpush1.msra.mxu0 0.0
    %2937 = vmatprep.mubr.f32.mxu0 0.0
    %2938 = vmatmul.mubr.f32.gmra.mrb[0].mxu0 %v2487
    %v2939 = vpop.f32.mrb[0].mxu0
    %v2940 = vadd.f32 0.0, %v2939
    %v2941 = vpop.f32.mrb[0].mxu0
    %v2942 = vadd.f32 0.0, %v2941
    %2943 = vdwg.mxu0
    %v2945 = vsel %vm376, %v2801, 0
    %2947 = vmatprep.subr.mxu0 %v383
    %2948 = vmatpush1.msra.mxu0 %v381
    %2949 = vmatprep.subr.mxu0 0.0
    %2950 = vmatpush1.msra.mxu0 0.0
    %2951 = vmatprep.subr.mxu0 0.0
    %2952 = vmatpush1.msra.mxu0 0.0
    %2953 = vmatprep.subr.mxu0 0.0
    %2954 = vmatpush1.msra.mxu0 0.0
    %2955 = vmatprep.subr.mxu0 0.0
    %2956 = vmatpush1.msra.mxu0 0.0
    %2957 = vmatprep.subr.mxu0 0.0
    %2958 = vmatpush1.msra.mxu0 0.0
    %2959 = vmatprep.subr.mxu0 0.0
    %2960 = vmatpush1.msra.mxu0 0.0
    %2961 = vmatprep.subr.mxu0 0.0
    %2962 = vmatpush1.msra.mxu0 0.0
    %2963 = vmatprep.subr.mxu0 0.0
    %2964 = vmatpush1.msra.mxu0 0.0
    %2965 = vmatprep.subr.mxu0 0.0
    %2966 = vmatpush1.msra.mxu0 0.0
    %2967 = vmatprep.subr.mxu0 0.0
    %2968 = vmatpush1.msra.mxu0 0.0
    %2969 = vmatprep.subr.mxu0 0.0
    %2970 = vmatpush1.msra.mxu0 0.0
    %2971 = vmatprep.subr.mxu0 0.0
    %2972 = vmatpush1.msra.mxu0 0.0
    %2973 = vmatprep.subr.mxu0 0.0
    %2974 = vmatpush1.msra.mxu0 0.0
    %2975 = vmatprep.subr.mxu0 0.0
    %2976 = vmatpush1.msra.mxu0 0.0
    %2977 = vmatprep.subr.mxu0 0.0
    %2978 = vmatpush1.msra.mxu0 0.0
    %2979 = vmatprep.subr.mxu0 0.0
    %2980 = vmatpush1.msra.mxu0 0.0
    %2981 = vmatprep.subr.mxu0 0.0
    %2982 = vmatpush1.msra.mxu0 0.0
    %2983 = vmatprep.subr.mxu0 0.0
    %2984 = vmatpush1.msra.mxu0 0.0
    %2985 = vmatprep.subr.mxu0 0.0
    %2986 = vmatpush1.msra.mxu0 0.0
    %2987 = vmatprep.subr.mxu0 0.0
    %2988 = vmatpush1.msra.mxu0 0.0
    %2989 = vmatprep.subr.mxu0 0.0
    %2990 = vmatpush1.msra.mxu0 0.0
    %2991 = vmatprep.subr.mxu0 0.0
    %2992 = vmatpush1.msra.mxu0 0.0
    %2993 = vmatprep.subr.mxu0 0.0
    %2994 = vmatpush1.msra.mxu0 0.0
    %2995 = vmatprep.subr.mxu0 0.0
    %2996 = vmatpush1.msra.mxu0 0.0
    %2997 = vmatprep.subr.mxu0 0.0
    %2998 = vmatpush1.msra.mxu0 0.0
    %2999 = vmatprep.subr.mxu0 0.0
    %3000 = vmatpush1.msra.mxu0 0.0
    %3001 = vmatprep.subr.mxu0 0.0
    %3002 = vmatpush1.msra.mxu0 0.0
    %3003 = vmatprep.subr.mxu0 0.0
    %3004 = vmatpush1.msra.mxu0 0.0
    %3005 = vmatprep.subr.mxu0 0.0
    %3006 = vmatpush1.msra.mxu0 0.0
    %3007 = vmatprep.subr.mxu0 0.0
    %3008 = vmatpush1.msra.mxu0 0.0
    %3009 = vmatprep.subr.mxu0 0.0
    %3010 = vmatpush1.msra.mxu0 0.0
    %3011 = vmatprep.mubr.f32.mxu0 0.0
    %3012 = vmatmul.mubr.f32.gmra.mrb[0].mxu0 %v2945
    %v3013 = vpop.f32.mrb[0].mxu0
    %v3014 = vadd.f32 %v2869, %v3013
    %v3015 = vpop.f32.mrb[0].mxu0
    %v3016 = vadd.f32 %v2871, %v3015
    %3017 = vdwg.mxu0
    %3018 = vmatprep.subr.mxu0 %v387
    %3019 = vmatpush1.msra.mxu0 %v385
    %3020 = vmatprep.subr.mxu0 0.0
    %3021 = vmatpush1.msra.mxu0 0.0
    %3022 = vmatprep.subr.mxu0 0.0
    %3023 = vmatpush1.msra.mxu0 0.0
    %3024 = vmatprep.subr.mxu0 0.0
    %3025 = vmatpush1.msra.mxu0 0.0
    %3026 = vmatprep.subr.mxu0 0.0
    %3027 = vmatpush1.msra.mxu0 0.0
    %3028 = vmatprep.subr.mxu0 0.0
    %3029 = vmatpush1.msra.mxu0 0.0
    %3030 = vmatprep.subr.mxu0 0.0
    %3031 = vmatpush1.msra.mxu0 0.0
    %3032 = vmatprep.subr.mxu0 0.0
    %3033 = vmatpush1.msra.mxu0 0.0
    %3034 = vmatprep.subr.mxu0 0.0
    %3035 = vmatpush1.msra.mxu0 0.0
    %3036 = vmatprep.subr.mxu0 0.0
    %3037 = vmatpush1.msra.mxu0 0.0
    %3038 = vmatprep.subr.mxu0 0.0
    %3039 = vmatpush1.msra.mxu0 0.0
    %3040 = vmatprep.subr.mxu0 0.0
    %3041 = vmatpush1.msra.mxu0 0.0
    %3042 = vmatprep.subr.mxu0 0.0
    %3043 = vmatpush1.msra.mxu0 0.0
    %3044 = vmatprep.subr.mxu0 0.0
    %3045 = vmatpush1.msra.mxu0 0.0
    %3046 = vmatprep.subr.mxu0 0.0
    %3047 = vmatpush1.msra.mxu0 0.0
    %3048 = vmatprep.subr.mxu0 0.0
    %3049 = vmatpush1.msra.mxu0 0.0
    %3050 = vmatprep.subr.mxu0 0.0
    %3051 = vmatpush1.msra.mxu0 0.0
    %3052 = vmatprep.subr.mxu0 0.0
    %3053 = vmatpush1.msra.mxu0 0.0
    %3054 = vmatprep.subr.mxu0 0.0
    %3055 = vmatpush1.msra.mxu0 0.0
    %3056 = vmatprep.subr.mxu0 0.0
    %3057 = vmatpush1.msra.mxu0 0.0
    %3058 = vmatprep.subr.mxu0 0.0
    %3059 = vmatpush1.msra.mxu0 0.0
    %3060 = vmatprep.subr.mxu0 0.0
    %3061 = vmatpush1.msra.mxu0 0.0
    %3062 = vmatprep.subr.mxu0 0.0
    %3063 = vmatpush1.msra.mxu0 0.0
    %3064 = vmatprep.subr.mxu0 0.0
    %3065 = vmatpush1.msra.mxu0 0.0
    %3066 = vmatprep.subr.mxu0 0.0
    %3067 = vmatpush1.msra.mxu0 0.0
    %3068 = vmatprep.subr.mxu0 0.0
    %3069 = vmatpush1.msra.mxu0 0.0
    %3070 = vmatprep.subr.mxu0 0.0
    %3071 = vmatpush1.msra.mxu0 0.0
    %3072 = vmatprep.subr.mxu0 0.0
    %3073 = vmatpush1.msra.mxu0 0.0
    %3074 = vmatprep.subr.mxu0 0.0
    %3075 = vmatpush1.msra.mxu0 0.0
    %3076 = vmatprep.subr.mxu0 0.0
    %3077 = vmatpush1.msra.mxu0 0.0
    %3078 = vmatprep.subr.mxu0 0.0
    %3079 = vmatpush1.msra.mxu0 0.0
    %3080 = vmatprep.subr.mxu0 0.0
    %3081 = vmatpush1.msra.mxu0 0.0
    %3082 = vmatprep.mubr.f32.mxu0 0.0
    %3083 = vmatmul.mubr.f32.gmra.mrb[0].mxu0 %v2945
    %v3084 = vpop.f32.mrb[0].mxu0
    %v3085 = vadd.f32 %v2940, %v3084
    %v3086 = vpop.f32.mrb[0].mxu0
    %v3087 = vadd.f32 %v2942, %v3086
    %3088 = vdwg.mxu0
    %v3089 = vadd.f32 %v3014, %v535
    %v3090 = vadd.f32 %v3016, %v539
    %v3091 = vadd.f32 %v3085, %v543
    %v3092 = vadd.f32 %v3087, %v547
    %v3093 = vxor.u32 %v3089, 2147483648
    %v3094 = vmul.f32 %v3093, 1.442695
    %v3095 = vpow.pop %v3094
    %v3096 = vadd.f32 %v3095, 1.0
    %v3097 = vrcp.pop %v3096
    %v3098 = vmul.f32 1.0, %v3097
    %v3099 = vxor.u32 %v3090, 2147483648
    %v3100 = vmul.f32 %v3099, 1.442695
    %v3101 = vpow.pop %v3100
    %v3102 = vadd.f32 %v3101, 1.0
    %v3103 = vrcp.pop %v3102
    %v3104 = vmul.f32 1.0, %v3103
    %v3105 = vtanh.pop %v3091
    %v3106 = vxor.u32 %v3092, 2147483648
    %v3107 = vmul.f32 %v3106, 1.442695
    %v3108 = vpow.pop %v3107
    %v3109 = vadd.f32 %v3108, 1.0
    %v3110 = vrcp.pop %v3109
    %v3111 = vmul.f32 1.0, %v3110
    %v3112 = vmul.f32 %v3104, %v2485
    %v3113 = vmul.f32 %v3098, %v3105
    %v3114 = vadd.f32 %v3112, %v3113
    %v3115 = vtanh.pop %v3114
    %v3116 = vmul.f32 %v3111, %v3115
    %3117 = vmatprep.subr.mxu0 %v165
    %3118 = vmatpush1.msra.mxu0 %v164
    %3119 = vmatprep.subr.mxu0 %v169
    %3120 = vmatpush1.msra.mxu0 %v168
    %3121 = vmatprep.subr.mxu0 %v173
    %3122 = vmatpush1.msra.mxu0 %v172
    %3123 = vmatprep.subr.mxu0 %v177
    %3124 = vmatpush1.msra.mxu0 %v176
    %3125 = vmatprep.subr.mxu0 %v181
    %3126 = vmatpush1.msra.mxu0 %v180
    %3127 = vmatprep.subr.mxu0 %v185
    %3128 = vmatpush1.msra.mxu0 %v184
    %3129 = vmatprep.subr.mxu0 %v189
    %3130 = vmatpush1.msra.mxu0 %v188
    %3131 = vmatprep.subr.mxu0 %v193
    %3132 = vmatpush1.msra.mxu0 %v192
    %3133 = vmatprep.subr.mxu0 %v197
    %3134 = vmatpush1.msra.mxu0 %v196
    %3135 = vmatprep.subr.mxu0 %v201
    %3136 = vmatpush1.msra.mxu0 %v200
    %3137 = vmatprep.subr.mxu0 %v205
    %3138 = vmatpush1.msra.mxu0 %v204
    %3139 = vmatprep.subr.mxu0 %v209
    %3140 = vmatpush1.msra.mxu0 %v208
    %3141 = vmatprep.subr.mxu0 %v213
    %3142 = vmatpush1.msra.mxu0 %v212
    %3143 = vmatprep.subr.mxu0 %v217
    %3144 = vmatpush1.msra.mxu0 %v216
    %3145 = vmatprep.subr.mxu0 %v221
    %3146 = vmatpush1.msra.mxu0 %v220
    %3147 = vmatprep.subr.mxu0 %v225
    %3148 = vmatpush1.msra.mxu0 %v224
    %3149 = vmatprep.subr.mxu0 0.0
    %3150 = vmatpush1.msra.mxu0 0.0
    %3151 = vmatprep.subr.mxu0 0.0
    %3152 = vmatpush1.msra.mxu0 0.0
    %3153 = vmatprep.subr.mxu0 0.0
    %3154 = vmatpush1.msra.mxu0 0.0
    %3155 = vmatprep.subr.mxu0 0.0
    %3156 = vmatpush1.msra.mxu0 0.0
    %3157 = vmatprep.subr.mxu0 0.0
    %3158 = vmatpush1.msra.mxu0 0.0
    %3159 = vmatprep.subr.mxu0 0.0
    %3160 = vmatpush1.msra.mxu0 0.0
    %3161 = vmatprep.subr.mxu0 0.0
    %3162 = vmatpush1.msra.mxu0 0.0
    %3163 = vmatprep.subr.mxu0 0.0
    %3164 = vmatpush1.msra.mxu0 0.0
    %3165 = vmatprep.subr.mxu0 0.0
    %3166 = vmatpush1.msra.mxu0 0.0
    %3167 = vmatprep.subr.mxu0 0.0
    %3168 = vmatpush1.msra.mxu0 0.0
    %3169 = vmatprep.subr.mxu0 0.0
    %3170 = vmatpush1.msra.mxu0 0.0
    %3171 = vmatprep.subr.mxu0 0.0
    %3172 = vmatpush1.msra.mxu0 0.0
    %3173 = vmatprep.subr.mxu0 0.0
    %3174 = vmatpush1.msra.mxu0 0.0
    %3175 = vmatprep.subr.mxu0 0.0
    %3176 = vmatpush1.msra.mxu0 0.0
    %3177 = vmatprep.subr.mxu0 0.0
    %3178 = vmatpush1.msra.mxu0 0.0
    %3179 = vmatprep.subr.mxu0 0.0
    %3180 = vmatpush1.msra.mxu0 0.0
    %3181 = vmatprep.mubr.f32.mxu0 0.0
    %3182 = vmatmul.mubr.f32.gmra.mrb[0].mxu0 %v2799
    %v3183 = vpop.f32.mrb[0].mxu0
    %v3184 = vadd.f32 0.0, %v3183
    %v3185 = vpop.f32.mrb[0].mxu0
    %v3186 = vadd.f32 0.0, %v3185
    %3187 = vdwg.mxu0
    %3188 = vmatprep.subr.mxu0 %v167
    %3189 = vmatpush1.msra.mxu0 %v166
    %3190 = vmatprep.subr.mxu0 %v171
    %3191 = vmatpush1.msra.mxu0 %v170
    %3192 = vmatprep.subr.mxu0 %v175
    %3193 = vmatpush1.msra.mxu0 %v174
    %3194 = vmatprep.subr.mxu0 %v179
    %3195 = vmatpush1.msra.mxu0 %v178
    %3196 = vmatprep.subr.mxu0 %v183
    %3197 = vmatpush1.msra.mxu0 %v182
    %3198 = vmatprep.subr.mxu0 %v187
    %3199 = vmatpush1.msra.mxu0 %v186
    %3200 = vmatprep.subr.mxu0 %v191
    %3201 = vmatpush1.msra.mxu0 %v190
    %3202 = vmatprep.subr.mxu0 %v195
    %3203 = vmatpush1.msra.mxu0 %v194
    %3204 = vmatprep.subr.mxu0 %v199
    %3205 = vmatpush1.msra.mxu0 %v198
    %3206 = vmatprep.subr.mxu0 %v203
    %3207 = vmatpush1.msra.mxu0 %v202
    %3208 = vmatprep.subr.mxu0 %v207
    %3209 = vmatpush1.msra.mxu0 %v206
    %3210 = vmatprep.subr.mxu0 %v211
    %3211 = vmatpush1.msra.mxu0 %v210
    %3212 = vmatprep.subr.mxu0 %v215
    %3213 = vmatpush1.msra.mxu0 %v214
    %3214 = vmatprep.subr.mxu0 %v219
    %3215 = vmatpush1.msra.mxu0 %v218
    %3216 = vmatprep.subr.mxu0 %v223
    %3217 = vmatpush1.msra.mxu0 %v222
    %3218 = vmatprep.subr.mxu0 %v227
    %3219 = vmatpush1.msra.mxu0 %v226
    %3220 = vmatprep.subr.mxu0 0.0
    %3221 = vmatpush1.msra.mxu0 0.0
    %3222 = vmatprep.subr.mxu0 0.0
    %3223 = vmatpush1.msra.mxu0 0.0
    %3224 = vmatprep.subr.mxu0 0.0
    %3225 = vmatpush1.msra.mxu0 0.0
    %3226 = vmatprep.subr.mxu0 0.0
    %3227 = vmatpush1.msra.mxu0 0.0
    %3228 = vmatprep.subr.mxu0 0.0
    %3229 = vmatpush1.msra.mxu0 0.0
    %3230 = vmatprep.subr.mxu0 0.0
    %3231 = vmatpush1.msra.mxu0 0.0
    %3232 = vmatprep.subr.mxu0 0.0
    %3233 = vmatpush1.msra.mxu0 0.0
    %3234 = vmatprep.subr.mxu0 0.0
    %3235 = vmatpush1.msra.mxu0 0.0
    %3236 = vmatprep.subr.mxu0 0.0
    %3237 = vmatpush1.msra.mxu0 0.0
    %3238 = vmatprep.subr.mxu0 0.0
    %3239 = vmatpush1.msra.mxu0 0.0
    %3240 = vmatprep.subr.mxu0 0.0
    %3241 = vmatpush1.msra.mxu0 0.0
    %3242 = vmatprep.subr.mxu0 0.0
    %3243 = vmatpush1.msra.mxu0 0.0
    %3244 = vmatprep.subr.mxu0 0.0
    %3245 = vmatpush1.msra.mxu0 0.0
    %3246 = vmatprep.subr.mxu0 0.0
    %3247 = vmatpush1.msra.mxu0 0.0
    %3248 = vmatprep.subr.mxu0 0.0
    %3249 = vmatpush1.msra.mxu0 0.0
    %3250 = vmatprep.subr.mxu0 0.0
    %3251 = vmatpush1.msra.mxu0 0.0
    %3252 = vmatprep.mubr.f32.mxu0 0.0
    %3253 = vmatmul.mubr.f32.gmra.mrb[0].mxu0 %v2799
    %v3254 = vpop.f32.mrb[0].mxu0
    %v3255 = vadd.f32 0.0, %v3254
    %v3256 = vpop.f32.mrb[0].mxu0
    %v3257 = vadd.f32 0.0, %v3256
    %3258 = vdwg.mxu0
    %3259 = vmatprep.subr.mxu0 %v101
    %3260 = vmatpush1.msra.mxu0 %v100
    %3261 = vmatprep.subr.mxu0 %v105
    %3262 = vmatpush1.msra.mxu0 %v104
    %3263 = vmatprep.subr.mxu0 %v109
    %3264 = vmatpush1.msra.mxu0 %v108
    %3265 = vmatprep.subr.mxu0 %v113
    %3266 = vmatpush1.msra.mxu0 %v112
    %3267 = vmatprep.subr.mxu0 %v117
    %3268 = vmatpush1.msra.mxu0 %v116
    %3269 = vmatprep.subr.mxu0 %v121
    %3270 = vmatpush1.msra.mxu0 %v120
    %3271 = vmatprep.subr.mxu0 %v125
    %3272 = vmatpush1.msra.mxu0 %v124
    %3273 = vmatprep.subr.mxu0 %v129
    %3274 = vmatpush1.msra.mxu0 %v128
    %3275 = vmatprep.subr.mxu0 %v133
    %3276 = vmatpush1.msra.mxu0 %v132
    %3277 = vmatprep.subr.mxu0 %v137
    %3278 = vmatpush1.msra.mxu0 %v136
    %3279 = vmatprep.subr.mxu0 %v141
    %3280 = vmatpush1.msra.mxu0 %v140
    %3281 = vmatprep.subr.mxu0 %v145
    %3282 = vmatpush1.msra.mxu0 %v144
    %3283 = vmatprep.subr.mxu0 %v149
    %3284 = vmatpush1.msra.mxu0 %v148
    %3285 = vmatprep.subr.mxu0 %v153
    %3286 = vmatpush1.msra.mxu0 %v152
    %3287 = vmatprep.subr.mxu0 %v157
    %3288 = vmatpush1.msra.mxu0 %v156
    %3289 = vmatprep.subr.mxu0 %v161
    %3290 = vmatpush1.msra.mxu0 %v160
    %3291 = vmatprep.subr.mxu0 0.0
    %3292 = vmatpush1.msra.mxu0 0.0
    %3293 = vmatprep.subr.mxu0 0.0
    %3294 = vmatpush1.msra.mxu0 0.0
    %3295 = vmatprep.subr.mxu0 0.0
    %3296 = vmatpush1.msra.mxu0 0.0
    %3297 = vmatprep.subr.mxu0 0.0
    %3298 = vmatpush1.msra.mxu0 0.0
    %3299 = vmatprep.subr.mxu0 0.0
    %3300 = vmatpush1.msra.mxu0 0.0
    %3301 = vmatprep.subr.mxu0 0.0
    %3302 = vmatpush1.msra.mxu0 0.0
    %3303 = vmatprep.subr.mxu0 0.0
    %3304 = vmatpush1.msra.mxu0 0.0
    %3305 = vmatprep.subr.mxu0 0.0
    %3306 = vmatpush1.msra.mxu0 0.0
    %3307 = vmatprep.subr.mxu0 0.0
    %3308 = vmatpush1.msra.mxu0 0.0
    %3309 = vmatprep.subr.mxu0 0.0
    %3310 = vmatpush1.msra.mxu0 0.0
    %3311 = vmatprep.subr.mxu0 0.0
    %3312 = vmatpush1.msra.mxu0 0.0
    %3313 = vmatprep.subr.mxu0 0.0
    %3314 = vmatpush1.msra.mxu0 0.0
    %3315 = vmatprep.subr.mxu0 0.0
    %3316 = vmatpush1.msra.mxu0 0.0
    %3317 = vmatprep.subr.mxu0 0.0
    %3318 = vmatpush1.msra.mxu0 0.0
    %3319 = vmatprep.subr.mxu0 0.0
    %3320 = vmatpush1.msra.mxu0 0.0
    %3321 = vmatprep.subr.mxu0 0.0
    %3322 = vmatpush1.msra.mxu0 0.0
    %3323 = vmatprep.mubr.f32.mxu0 0.0
    %3324 = vmatmul.mubr.f32.gmra.mrb[0].mxu0 %v3116
    %v3325 = vpop.f32.mrb[0].mxu0
    %v3326 = vadd.f32 %v3184, %v3325
    %v3327 = vpop.f32.mrb[0].mxu0
    %v3328 = vadd.f32 %v3186, %v3327
    %3329 = vdwg.mxu0
    %3330 = vmatprep.subr.mxu0 %v103
    %3331 = vmatpush1.msra.mxu0 %v102
    %3332 = vmatprep.subr.mxu0 %v107
    %3333 = vmatpush1.msra.mxu0 %v106
    %3334 = vmatprep.subr.mxu0 %v111
    %3335 = vmatpush1.msra.mxu0 %v110
    %3336 = vmatprep.subr.mxu0 %v115
    %3337 = vmatpush1.msra.mxu0 %v114
    %3338 = vmatprep.subr.mxu0 %v119
    %3339 = vmatpush1.msra.mxu0 %v118
    %3340 = vmatprep.subr.mxu0 %v123
    %3341 = vmatpush1.msra.mxu0 %v122
    %3342 = vmatprep.subr.mxu0 %v127
    %3343 = vmatpush1.msra.mxu0 %v126
    %3344 = vmatprep.subr.mxu0 %v131
    %3345 = vmatpush1.msra.mxu0 %v130
    %3346 = vmatprep.subr.mxu0 %v135
    %3347 = vmatpush1.msra.mxu0 %v134
    %3348 = vmatprep.subr.mxu0 %v139
    %3349 = vmatpush1.msra.mxu0 %v138
    %3350 = vmatprep.subr.mxu0 %v143
    %3351 = vmatpush1.msra.mxu0 %v142
    %3352 = vmatprep.subr.mxu0 %v147
    %3353 = vmatpush1.msra.mxu0 %v146
    %3354 = vmatprep.subr.mxu0 %v151
    %3355 = vmatpush1.msra.mxu0 %v150
    %3356 = vmatprep.subr.mxu0 %v155
    %3357 = vmatpush1.msra.mxu0 %v154
    %3358 = vmatprep.subr.mxu0 %v159
    %3359 = vmatpush1.msra.mxu0 %v158
    %3360 = vmatprep.subr.mxu0 %v163
    %3361 = vmatpush1.msra.mxu0 %v162
    %3362 = vmatprep.subr.mxu0 0.0
    %3363 = vmatpush1.msra.mxu0 0.0
    %3364 = vmatprep.subr.mxu0 0.0
    %3365 = vmatpush1.msra.mxu0 0.0
    %3366 = vmatprep.subr.mxu0 0.0
    %3367 = vmatpush1.msra.mxu0 0.0
    %3368 = vmatprep.subr.mxu0 0.0
    %3369 = vmatpush1.msra.mxu0 0.0
    %3370 = vmatprep.subr.mxu0 0.0
    %3371 = vmatpush1.msra.mxu0 0.0
    %3372 = vmatprep.subr.mxu0 0.0
    %3373 = vmatpush1.msra.mxu0 0.0
    %3374 = vmatprep.subr.mxu0 0.0
    %3375 = vmatpush1.msra.mxu0 0.0
    %3376 = vmatprep.subr.mxu0 0.0
    %3377 = vmatpush1.msra.mxu0 0.0
    %3378 = vmatprep.subr.mxu0 0.0
    %3379 = vmatpush1.msra.mxu0 0.0
    %3380 = vmatprep.subr.mxu0 0.0
    %3381 = vmatpush1.msra.mxu0 0.0
    %3382 = vmatprep.subr.mxu0 0.0
    %3383 = vmatpush1.msra.mxu0 0.0
    %3384 = vmatprep.subr.mxu0 0.0
    %3385 = vmatpush1.msra.mxu0 0.0
    %3386 = vmatprep.subr.mxu0 0.0
    %3387 = vmatpush1.msra.mxu0 0.0
    %3388 = vmatprep.subr.mxu0 0.0
    %3389 = vmatpush1.msra.mxu0 0.0
    %3390 = vmatprep.subr.mxu0 0.0
    %3391 = vmatpush1.msra.mxu0 0.0
    %3392 = vmatprep.subr.mxu0 0.0
    %3393 = vmatpush1.msra.mxu0 0.0
    %3394 = vmatprep.mubr.f32.mxu0 0.0
    %3395 = vmatmul.mubr.f32.gmra.mrb[0].mxu0 %v3116
    %v3396 = vpop.f32.mrb[0].mxu0
    %v3397 = vadd.f32 %v3255, %v3396
    %v3398 = vpop.f32.mrb[0].mxu0
    %v3399 = vadd.f32 %v3257, %v3398
    %3400 = vdwg.mxu0
    %v3401 = vadd.f32 %v3326, %v868
    %v3402 = vadd.f32 %v3328, %v872
    %v3403 = vadd.f32 %v3397, %v876
    %v3404 = vadd.f32 %v3399, %v880
    %v3405 = vxor.u32 %v3401, 2147483648
    %v3406 = vmul.f32 %v3405, 1.442695
    %v3407 = vpow.pop %v3406
    %v3408 = vadd.f32 %v3407, 1.0
    %v3409 = vrcp.pop %v3408
    %v3410 = vmul.f32 1.0, %v3409
    %v3411 = vxor.u32 %v3402, 2147483648
    %v3412 = vmul.f32 %v3411, 1.442695
    %v3413 = vpow.pop %v3412
    %v3414 = vadd.f32 %v3413, 1.0
    %v3415 = vrcp.pop %v3414
    %v3416 = vmul.f32 1.0, %v3415
    %v3417 = vtanh.pop %v3403
    %v3418 = vxor.u32 %v3404, 2147483648
    %v3419 = vmul.f32 %v3418, 1.442695
    %v3420 = vpow.pop %v3419
    %v3421 = vadd.f32 %v3420, 1.0
    %v3422 = vrcp.pop %v3421
    %v3423 = vmul.f32 1.0, %v3422
    %v3424 = vmul.f32 %v3416, %v2797
    %v3425 = vmul.f32 %v3410, %v3417
    %v3426 = vadd.f32 %v3424, %v3425
    %v3427 = vtanh.pop %v3426
    %v3428 = vmul.f32 %v3423, %v3427
    %s3429 = scalar_lea.vmem %s0, 10
    %v3430 = vld [vmem:[%s3429] sm:$0x3]
    %3431 = vmatprep.subr.mxu0 %v36
    %3432 = vmatpush1.msra.mxu0 %v35
    %3433 = vmatprep.subr.mxu0 %v40
    %3434 = vmatpush1.msra.mxu0 %v39
    %3435 = vmatprep.subr.mxu0 %v44
    %3436 = vmatpush1.msra.mxu0 %v43
    %3437 = vmatprep.subr.mxu0 %v48
    %3438 = vmatpush1.msra.mxu0 %v47
    %3439 = vmatprep.subr.mxu0 %v52
    %3440 = vmatpush1.msra.mxu0 %v51
    %3441 = vmatprep.subr.mxu0 %v56
    %3442 = vmatpush1.msra.mxu0 %v55
    %3443 = vmatprep.subr.mxu0 %v60
    %3444 = vmatpush1.msra.mxu0 %v59
    %3445 = vmatprep.subr.mxu0 %v64
    %3446 = vmatpush1.msra.mxu0 %v63
    %3447 = vmatprep.subr.mxu0 %v68
    %3448 = vmatpush1.msra.mxu0 %v67
    %3449 = vmatprep.subr.mxu0 %v72
    %3450 = vmatpush1.msra.mxu0 %v71
    %3451 = vmatprep.subr.mxu0 %v76
    %3452 = vmatpush1.msra.mxu0 %v75
    %3453 = vmatprep.subr.mxu0 %v80
    %3454 = vmatpush1.msra.mxu0 %v79
    %3455 = vmatprep.subr.mxu0 %v84
    %3456 = vmatpush1.msra.mxu0 %v83
    %3457 = vmatprep.subr.mxu0 %v88
    %3458 = vmatpush1.msra.mxu0 %v87
    %3459 = vmatprep.subr.mxu0 %v92
    %3460 = vmatpush1.msra.mxu0 %v91
    %3461 = vmatprep.subr.mxu0 %v96
    %3462 = vmatpush1.msra.mxu0 %v95
    %3463 = vmatprep.subr.mxu0 0.0
    %3464 = vmatpush1.msra.mxu0 0.0
    %3465 = vmatprep.subr.mxu0 0.0
    %3466 = vmatpush1.msra.mxu0 0.0
    %3467 = vmatprep.subr.mxu0 0.0
    %3468 = vmatpush1.msra.mxu0 0.0
    %3469 = vmatprep.subr.mxu0 0.0
    %3470 = vmatpush1.msra.mxu0 0.0
    %3471 = vmatprep.subr.mxu0 0.0
    %3472 = vmatpush1.msra.mxu0 0.0
    %3473 = vmatprep.subr.mxu0 0.0
    %3474 = vmatpush1.msra.mxu0 0.0
    %3475 = vmatprep.subr.mxu0 0.0
    %3476 = vmatpush1.msra.mxu0 0.0
    %3477 = vmatprep.subr.mxu0 0.0
    %3478 = vmatpush1.msra.mxu0 0.0
    %3479 = vmatprep.subr.mxu0 0.0
    %3480 = vmatpush1.msra.mxu0 0.0
    %3481 = vmatprep.subr.mxu0 0.0
    %3482 = vmatpush1.msra.mxu0 0.0
    %3483 = vmatprep.subr.mxu0 0.0
    %3484 = vmatpush1.msra.mxu0 0.0
    %3485 = vmatprep.subr.mxu0 0.0
    %3486 = vmatpush1.msra.mxu0 0.0
    %3487 = vmatprep.subr.mxu0 0.0
    %3488 = vmatpush1.msra.mxu0 0.0
    %3489 = vmatprep.subr.mxu0 0.0
    %3490 = vmatpush1.msra.mxu0 0.0
    %3491 = vmatprep.subr.mxu0 0.0
    %3492 = vmatpush1.msra.mxu0 0.0
    %3493 = vmatprep.subr.mxu0 0.0
    %3494 = vmatpush1.msra.mxu0 0.0
    %3495 = vmatprep.mubr.f32.mxu0 0.0
    %3496 = vmatmul.mubr.f32.gmra.mrb[0].mxu0 %v3116
    %v3497 = vpop.f32.mrb[0].mxu0
    %v3498 = vadd.f32 0.0, %v3497
    %v3499 = vpop.f32.mrb[0].mxu0
    %v3500 = vadd.f32 0.0, %v3499
    %3501 = vdwg.mxu0
    %3502 = vmatprep.subr.mxu0 %v38
    %3503 = vmatpush1.msra.mxu0 %v37
    %3504 = vmatprep.subr.mxu0 %v42
    %3505 = vmatpush1.msra.mxu0 %v41
    %3506 = vmatprep.subr.mxu0 %v46
    %3507 = vmatpush1.msra.mxu0 %v45
    %3508 = vmatprep.subr.mxu0 %v50
    %3509 = vmatpush1.msra.mxu0 %v49
    %3510 = vmatprep.subr.mxu0 %v54
    %3511 = vmatpush1.msra.mxu0 %v53
    %3512 = vmatprep.subr.mxu0 %v58
    %3513 = vmatpush1.msra.mxu0 %v57
    %3514 = vmatprep.subr.mxu0 %v62
    %3515 = vmatpush1.msra.mxu0 %v61
    %3516 = vmatprep.subr.mxu0 %v66
    %3517 = vmatpush1.msra.mxu0 %v65
    %3518 = vmatprep.subr.mxu0 %v70
    %3519 = vmatpush1.msra.mxu0 %v69
    %3520 = vmatprep.subr.mxu0 %v74
    %3521 = vmatpush1.msra.mxu0 %v73
    %3522 = vmatprep.subr.mxu0 %v78
    %3523 = vmatpush1.msra.mxu0 %v77
    %3524 = vmatprep.subr.mxu0 %v82
    %3525 = vmatpush1.msra.mxu0 %v81
    %3526 = vmatprep.subr.mxu0 %v86
    %3527 = vmatpush1.msra.mxu0 %v85
    %3528 = vmatprep.subr.mxu0 %v90
    %3529 = vmatpush1.msra.mxu0 %v89
    %3530 = vmatprep.subr.mxu0 %v94
    %3531 = vmatpush1.msra.mxu0 %v93
    %3532 = vmatprep.subr.mxu0 %v98
    %3533 = vmatpush1.msra.mxu0 %v97
    %3534 = vmatprep.subr.mxu0 0.0
    %3535 = vmatpush1.msra.mxu0 0.0
    %3536 = vmatprep.subr.mxu0 0.0
    %3537 = vmatpush1.msra.mxu0 0.0
    %3538 = vmatprep.subr.mxu0 0.0
    %3539 = vmatpush1.msra.mxu0 0.0
    %3540 = vmatprep.subr.mxu0 0.0
    %3541 = vmatpush1.msra.mxu0 0.0
    %3542 = vmatprep.subr.mxu0 0.0
    %3543 = vmatpush1.msra.mxu0 0.0
    %3544 = vmatprep.subr.mxu0 0.0
    %3545 = vmatpush1.msra.mxu0 0.0
    %3546 = vmatprep.subr.mxu0 0.0
    %3547 = vmatpush1.msra.mxu0 0.0
    %3548 = vmatprep.subr.mxu0 0.0
    %3549 = vmatpush1.msra.mxu0 0.0
    %3550 = vmatprep.subr.mxu0 0.0
    %3551 = vmatpush1.msra.mxu0 0.0
    %3552 = vmatprep.subr.mxu0 0.0
    %3553 = vmatpush1.msra.mxu0 0.0
    %3554 = vmatprep.subr.mxu0 0.0
    %3555 = vmatpush1.msra.mxu0 0.0
    %3556 = vmatprep.subr.mxu0 0.0
    %3557 = vmatpush1.msra.mxu0 0.0
    %3558 = vmatprep.subr.mxu0 0.0
    %3559 = vmatpush1.msra.mxu0 0.0
    %3560 = vmatprep.subr.mxu0 0.0
    %3561 = vmatpush1.msra.mxu0 0.0
    %3562 = vmatprep.subr.mxu0 0.0
    %3563 = vmatpush1.msra.mxu0 0.0
    %3564 = vmatprep.subr.mxu0 0.0
    %3565 = vmatpush1.msra.mxu0 0.0
    %3566 = vmatprep.mubr.f32.mxu0 0.0
    %3567 = vmatmul.mubr.f32.gmra.mrb[0].mxu0 %v3116
    %v3568 = vpop.f32.mrb[0].mxu0
    %v3569 = vadd.f32 0.0, %v3568
    %v3570 = vpop.f32.mrb[0].mxu0
    %v3571 = vadd.f32 0.0, %v3570
    %3572 = vdwg.mxu0
    %v3574 = vsel %vm376, %v3430, 0
    %3576 = vmatprep.subr.mxu0 %v383
    %3577 = vmatpush1.msra.mxu0 %v381
    %3578 = vmatprep.subr.mxu0 0.0
    %3579 = vmatpush1.msra.mxu0 0.0
    %3580 = vmatprep.subr.mxu0 0.0
    %3581 = vmatpush1.msra.mxu0 0.0
    %3582 = vmatprep.subr.mxu0 0.0
    %3583 = vmatpush1.msra.mxu0 0.0
    %3584 = vmatprep.subr.mxu0 0.0
    %3585 = vmatpush1.msra.mxu0 0.0
    %3586 = vmatprep.subr.mxu0 0.0
    %3587 = vmatpush1.msra.mxu0 0.0
    %3588 = vmatprep.subr.mxu0 0.0
    %3589 = vmatpush1.msra.mxu0 0.0
    %3590 = vmatprep.subr.mxu0 0.0
    %3591 = vmatpush1.msra.mxu0 0.0
    %3592 = vmatprep.subr.mxu0 0.0
    %3593 = vmatpush1.msra.mxu0 0.0
    %3594 = vmatprep.subr.mxu0 0.0
    %3595 = vmatpush1.msra.mxu0 0.0
    %3596 = vmatprep.subr.mxu0 0.0
    %3597 = vmatpush1.msra.mxu0 0.0
    %3598 = vmatprep.subr.mxu0 0.0
    %3599 = vmatpush1.msra.mxu0 0.0
    %3600 = vmatprep.subr.mxu0 0.0
    %3601 = vmatpush1.msra.mxu0 0.0
    %3602 = vmatprep.subr.mxu0 0.0
    %3603 = vmatpush1.msra.mxu0 0.0
    %3604 = vmatprep.subr.mxu0 0.0
    %3605 = vmatpush1.msra.mxu0 0.0
    %3606 = vmatprep.subr.mxu0 0.0
    %3607 = vmatpush1.msra.mxu0 0.0
    %3608 = vmatprep.subr.mxu0 0.0
    %3609 = vmatpush1.msra.mxu0 0.0
    %3610 = vmatprep.subr.mxu0 0.0
    %3611 = vmatpush1.msra.mxu0 0.0
    %3612 = vmatprep.subr.mxu0 0.0
    %3613 = vmatpush1.msra.mxu0 0.0
    %3614 = vmatprep.subr.mxu0 0.0
    %3615 = vmatpush1.msra.mxu0 0.0
    %3616 = vmatprep.subr.mxu0 0.0
    %3617 = vmatpush1.msra.mxu0 0.0
    %3618 = vmatprep.subr.mxu0 0.0
    %3619 = vmatpush1.msra.mxu0 0.0
    %3620 = vmatprep.subr.mxu0 0.0
    %3621 = vmatpush1.msra.mxu0 0.0
    %3622 = vmatprep.subr.mxu0 0.0
    %3623 = vmatpush1.msra.mxu0 0.0
    %3624 = vmatprep.subr.mxu0 0.0
    %3625 = vmatpush1.msra.mxu0 0.0
    %3626 = vmatprep.subr.mxu0 0.0
    %3627 = vmatpush1.msra.mxu0 0.0
    %3628 = vmatprep.subr.mxu0 0.0
    %3629 = vmatpush1.msra.mxu0 0.0
    %3630 = vmatprep.subr.mxu0 0.0
    %3631 = vmatpush1.msra.mxu0 0.0
    %3632 = vmatprep.subr.mxu0 0.0
    %3633 = vmatpush1.msra.mxu0 0.0
    %3634 = vmatprep.subr.mxu0 0.0
    %3635 = vmatpush1.msra.mxu0 0.0
    %3636 = vmatprep.subr.mxu0 0.0
    %3637 = vmatpush1.msra.mxu0 0.0
    %3638 = vmatprep.subr.mxu0 0.0
    %3639 = vmatpush1.msra.mxu0 0.0
    %3640 = vmatprep.mubr.f32.mxu0 0.0
    %3641 = vmatmul.mubr.f32.gmra.mrb[0].mxu0 %v3574
    %v3642 = vpop.f32.mrb[0].mxu0
    %v3643 = vadd.f32 %v3498, %v3642
    %v3644 = vpop.f32.mrb[0].mxu0
    %v3645 = vadd.f32 %v3500, %v3644
    %3646 = vdwg.mxu0
    %3647 = vmatprep.subr.mxu0 %v387
    %3648 = vmatpush1.msra.mxu0 %v385
    %3649 = vmatprep.subr.mxu0 0.0
    %3650 = vmatpush1.msra.mxu0 0.0
    %3651 = vmatprep.subr.mxu0 0.0
    %3652 = vmatpush1.msra.mxu0 0.0
    %3653 = vmatprep.subr.mxu0 0.0
    %3654 = vmatpush1.msra.mxu0 0.0
    %3655 = vmatprep.subr.mxu0 0.0
    %3656 = vmatpush1.msra.mxu0 0.0
    %3657 = vmatprep.subr.mxu0 0.0
    %3658 = vmatpush1.msra.mxu0 0.0
    %3659 = vmatprep.subr.mxu0 0.0
    %3660 = vmatpush1.msra.mxu0 0.0
    %3661 = vmatprep.subr.mxu0 0.0
    %3662 = vmatpush1.msra.mxu0 0.0
    %3663 = vmatprep.subr.mxu0 0.0
    %3664 = vmatpush1.msra.mxu0 0.0
    %3665 = vmatprep.subr.mxu0 0.0
    %3666 = vmatpush1.msra.mxu0 0.0
    %3667 = vmatprep.subr.mxu0 0.0
    %3668 = vmatpush1.msra.mxu0 0.0
    %3669 = vmatprep.subr.mxu0 0.0
    %3670 = vmatpush1.msra.mxu0 0.0
    %3671 = vmatprep.subr.mxu0 0.0
    %3672 = vmatpush1.msra.mxu0 0.0
    %3673 = vmatprep.subr.mxu0 0.0
    %3674 = vmatpush1.msra.mxu0 0.0
    %3675 = vmatprep.subr.mxu0 0.0
    %3676 = vmatpush1.msra.mxu0 0.0
    %3677 = vmatprep.subr.mxu0 0.0
    %3678 = vmatpush1.msra.mxu0 0.0
    %3679 = vmatprep.subr.mxu0 0.0
    %3680 = vmatpush1.msra.mxu0 0.0
    %3681 = vmatprep.subr.mxu0 0.0
    %3682 = vmatpush1.msra.mxu0 0.0
    %3683 = vmatprep.subr.mxu0 0.0
    %3684 = vmatpush1.msra.mxu0 0.0
    %3685 = vmatprep.subr.mxu0 0.0
    %3686 = vmatpush1.msra.mxu0 0.0
    %3687 = vmatprep.subr.mxu0 0.0
    %3688 = vmatpush1.msra.mxu0 0.0
    %3689 = vmatprep.subr.mxu0 0.0
    %3690 = vmatpush1.msra.mxu0 0.0
    %3691 = vmatprep.subr.mxu0 0.0
    %3692 = vmatpush1.msra.mxu0 0.0
    %3693 = vmatprep.subr.mxu0 0.0
    %3694 = vmatpush1.msra.mxu0 0.0
    %3695 = vmatprep.subr.mxu0 0.0
    %3696 = vmatpush1.msra.mxu0 0.0
    %3697 = vmatprep.subr.mxu0 0.0
    %3698 = vmatpush1.msra.mxu0 0.0
    %3699 = vmatprep.subr.mxu0 0.0
    %3700 = vmatpush1.msra.mxu0 0.0
    %3701 = vmatprep.subr.mxu0 0.0
    %3702 = vmatpush1.msra.mxu0 0.0
    %3703 = vmatprep.subr.mxu0 0.0
    %3704 = vmatpush1.msra.mxu0 0.0
    %3705 = vmatprep.subr.mxu0 0.0
    %3706 = vmatpush1.msra.mxu0 0.0
    %3707 = vmatprep.subr.mxu0 0.0
    %3708 = vmatpush1.msra.mxu0 0.0
    %3709 = vmatprep.subr.mxu0 0.0
    %3710 = vmatpush1.msra.mxu0 0.0
    %3711 = vmatprep.mubr.f32.mxu0 0.0
    %3712 = vmatmul.mubr.f32.gmra.mrb[0].mxu0 %v3574
    %v3713 = vpop.f32.mrb[0].mxu0
    %v3714 = vadd.f32 %v3569, %v3713
    %v3715 = vpop.f32.mrb[0].mxu0
    %v3716 = vadd.f32 %v3571, %v3715
    %3717 = vdwg.mxu0
    %v3718 = vadd.f32 %v3643, %v535
    %v3719 = vadd.f32 %v3645, %v539
    %v3720 = vadd.f32 %v3714, %v543
    %v3721 = vadd.f32 %v3716, %v547
    %v3722 = vxor.u32 %v3718, 2147483648
    %v3723 = vmul.f32 %v3722, 1.442695
    %v3724 = vpow.pop %v3723
    %v3725 = vadd.f32 %v3724, 1.0
    %v3726 = vrcp.pop %v3725
    %v3727 = vmul.f32 1.0, %v3726
    %v3728 = vxor.u32 %v3719, 2147483648
    %v3729 = vmul.f32 %v3728, 1.442695
    %v3730 = vpow.pop %v3729
    %v3731 = vadd.f32 %v3730, 1.0
    %v3732 = vrcp.pop %v3731
    %v3733 = vmul.f32 1.0, %v3732
    %v3734 = vtanh.pop %v3720
    %v3735 = vxor.u32 %v3721, 2147483648
    %v3736 = vmul.f32 %v3735, 1.442695
    %v3737 = vpow.pop %v3736
    %v3738 = vadd.f32 %v3737, 1.0
    %v3739 = vrcp.pop %v3738
    %v3740 = vmul.f32 1.0, %v3739
    %v3741 = vmul.f32 %v3733, %v3114
    %v3742 = vmul.f32 %v3727, %v3734
    %v3743 = vadd.f32 %v3741, %v3742
    %v3744 = vtanh.pop %v3743
    %v3745 = vmul.f32 %v3740, %v3744
    %3746 = vmatprep.subr.mxu0 %v165
    %3747 = vmatpush1.msra.mxu0 %v164
    %3748 = vmatprep.subr.mxu0 %v169
    %3749 = vmatpush1.msra.mxu0 %v168
    %3750 = vmatprep.subr.mxu0 %v173
    %3751 = vmatpush1.msra.mxu0 %v172
    %3752 = vmatprep.subr.mxu0 %v177
    %3753 = vmatpush1.msra.mxu0 %v176
    %3754 = vmatprep.subr.mxu0 %v181
    %3755 = vmatpush1.msra.mxu0 %v180
    %3756 = vmatprep.subr.mxu0 %v185
    %3757 = vmatpush1.msra.mxu0 %v184
    %3758 = vmatprep.subr.mxu0 %v189
    %3759 = vmatpush1.msra.mxu0 %v188
    %3760 = vmatprep.subr.mxu0 %v193
    %3761 = vmatpush1.msra.mxu0 %v192
    %3762 = vmatprep.subr.mxu0 %v197
    %3763 = vmatpush1.msra.mxu0 %v196
    %3764 = vmatprep.subr.mxu0 %v201
    %3765 = vmatpush1.msra.mxu0 %v200
    %3766 = vmatprep.subr.mxu0 %v205
    %3767 = vmatpush1.msra.mxu0 %v204
    %3768 = vmatprep.subr.mxu0 %v209
    %3769 = vmatpush1.msra.mxu0 %v208
    %3770 = vmatprep.subr.mxu0 %v213
    %3771 = vmatpush1.msra.mxu0 %v212
    %3772 = vmatprep.subr.mxu0 %v217
    %3773 = vmatpush1.msra.mxu0 %v216
    %3774 = vmatprep.subr.mxu0 %v221
    %3775 = vmatpush1.msra.mxu0 %v220
    %3776 = vmatprep.subr.mxu0 %v225
    %3777 = vmatpush1.msra.mxu0 %v224
    %3778 = vmatprep.subr.mxu0 0.0
    %3779 = vmatpush1.msra.mxu0 0.0
    %3780 = vmatprep.subr.mxu0 0.0
    %3781 = vmatpush1.msra.mxu0 0.0
    %3782 = vmatprep.subr.mxu0 0.0
    %3783 = vmatpush1.msra.mxu0 0.0
    %3784 = vmatprep.subr.mxu0 0.0
    %3785 = vmatpush1.msra.mxu0 0.0
    %3786 = vmatprep.subr.mxu0 0.0
    %3787 = vmatpush1.msra.mxu0 0.0
    %3788 = vmatprep.subr.mxu0 0.0
    %3789 = vmatpush1.msra.mxu0 0.0
    %3790 = vmatprep.subr.mxu0 0.0
    %3791 = vmatpush1.msra.mxu0 0.0
    %3792 = vmatprep.subr.mxu0 0.0
    %3793 = vmatpush1.msra.mxu0 0.0
    %3794 = vmatprep.subr.mxu0 0.0
    %3795 = vmatpush1.msra.mxu0 0.0
    %3796 = vmatprep.subr.mxu0 0.0
    %3797 = vmatpush1.msra.mxu0 0.0
    %3798 = vmatprep.subr.mxu0 0.0
    %3799 = vmatpush1.msra.mxu0 0.0
    %3800 = vmatprep.subr.mxu0 0.0
    %3801 = vmatpush1.msra.mxu0 0.0
    %3802 = vmatprep.subr.mxu0 0.0
    %3803 = vmatpush1.msra.mxu0 0.0
    %3804 = vmatprep.subr.mxu0 0.0
    %3805 = vmatpush1.msra.mxu0 0.0
    %3806 = vmatprep.subr.mxu0 0.0
    %3807 = vmatpush1.msra.mxu0 0.0
    %3808 = vmatprep.subr.mxu0 0.0
    %3809 = vmatpush1.msra.mxu0 0.0
    %3810 = vmatprep.mubr.f32.mxu0 0.0
    %3811 = vmatmul.mubr.f32.gmra.mrb[0].mxu0 %v3428
    %v3812 = vpop.f32.mrb[0].mxu0
    %v3813 = vadd.f32 0.0, %v3812
    %v3814 = vpop.f32.mrb[0].mxu0
    %v3815 = vadd.f32 0.0, %v3814
    %3816 = vdwg.mxu0
    %3817 = vmatprep.subr.mxu0 %v167
    %3818 = vmatpush1.msra.mxu0 %v166
    %3819 = vmatprep.subr.mxu0 %v171
    %3820 = vmatpush1.msra.mxu0 %v170
    %3821 = vmatprep.subr.mxu0 %v175
    %3822 = vmatpush1.msra.mxu0 %v174
    %3823 = vmatprep.subr.mxu0 %v179
    %3824 = vmatpush1.msra.mxu0 %v178
    %3825 = vmatprep.subr.mxu0 %v183
    %3826 = vmatpush1.msra.mxu0 %v182
    %3827 = vmatprep.subr.mxu0 %v187
    %3828 = vmatpush1.msra.mxu0 %v186
    %3829 = vmatprep.subr.mxu0 %v191
    %3830 = vmatpush1.msra.mxu0 %v190
    %3831 = vmatprep.subr.mxu0 %v195
    %3832 = vmatpush1.msra.mxu0 %v194
    %3833 = vmatprep.subr.mxu0 %v199
    %3834 = vmatpush1.msra.mxu0 %v198
    %3835 = vmatprep.subr.mxu0 %v203
    %3836 = vmatpush1.msra.mxu0 %v202
    %3837 = vmatprep.subr.mxu0 %v207
    %3838 = vmatpush1.msra.mxu0 %v206
    %3839 = vmatprep.subr.mxu0 %v211
    %3840 = vmatpush1.msra.mxu0 %v210
    %3841 = vmatprep.subr.mxu0 %v215
    %3842 = vmatpush1.msra.mxu0 %v214
    %3843 = vmatprep.subr.mxu0 %v219
    %3844 = vmatpush1.msra.mxu0 %v218
    %3845 = vmatprep.subr.mxu0 %v223
    %3846 = vmatpush1.msra.mxu0 %v222
    %3847 = vmatprep.subr.mxu0 %v227
    %3848 = vmatpush1.msra.mxu0 %v226
    %3849 = vmatprep.subr.mxu0 0.0
    %3850 = vmatpush1.msra.mxu0 0.0
    %3851 = vmatprep.subr.mxu0 0.0
    %3852 = vmatpush1.msra.mxu0 0.0
    %3853 = vmatprep.subr.mxu0 0.0
    %3854 = vmatpush1.msra.mxu0 0.0
    %3855 = vmatprep.subr.mxu0 0.0
    %3856 = vmatpush1.msra.mxu0 0.0
    %3857 = vmatprep.subr.mxu0 0.0
    %3858 = vmatpush1.msra.mxu0 0.0
    %3859 = vmatprep.subr.mxu0 0.0
    %3860 = vmatpush1.msra.mxu0 0.0
    %3861 = vmatprep.subr.mxu0 0.0
    %3862 = vmatpush1.msra.mxu0 0.0
    %3863 = vmatprep.subr.mxu0 0.0
    %3864 = vmatpush1.msra.mxu0 0.0
    %3865 = vmatprep.subr.mxu0 0.0
    %3866 = vmatpush1.msra.mxu0 0.0
    %3867 = vmatprep.subr.mxu0 0.0
    %3868 = vmatpush1.msra.mxu0 0.0
    %3869 = vmatprep.subr.mxu0 0.0
    %3870 = vmatpush1.msra.mxu0 0.0
    %3871 = vmatprep.subr.mxu0 0.0
    %3872 = vmatpush1.msra.mxu0 0.0
    %3873 = vmatprep.subr.mxu0 0.0
    %3874 = vmatpush1.msra.mxu0 0.0
    %3875 = vmatprep.subr.mxu0 0.0
    %3876 = vmatpush1.msra.mxu0 0.0
    %3877 = vmatprep.subr.mxu0 0.0
    %3878 = vmatpush1.msra.mxu0 0.0
    %3879 = vmatprep.subr.mxu0 0.0
    %3880 = vmatpush1.msra.mxu0 0.0
    %3881 = vmatprep.mubr.f32.mxu0 0.0
    %3882 = vmatmul.mubr.f32.gmra.mrb[0].mxu0 %v3428
    %v3883 = vpop.f32.mrb[0].mxu0
    %v3884 = vadd.f32 0.0, %v3883
    %v3885 = vpop.f32.mrb[0].mxu0
    %v3886 = vadd.f32 0.0, %v3885
    %3887 = vdwg.mxu0
    %3888 = vmatprep.subr.mxu0 %v101
    %3889 = vmatpush1.msra.mxu0 %v100
    %3890 = vmatprep.subr.mxu0 %v105
    %3891 = vmatpush1.msra.mxu0 %v104
    %3892 = vmatprep.subr.mxu0 %v109
    %3893 = vmatpush1.msra.mxu0 %v108
    %3894 = vmatprep.subr.mxu0 %v113
    %3895 = vmatpush1.msra.mxu0 %v112
    %3896 = vmatprep.subr.mxu0 %v117
    %3897 = vmatpush1.msra.mxu0 %v116
    %3898 = vmatprep.subr.mxu0 %v121
    %3899 = vmatpush1.msra.mxu0 %v120
    %3900 = vmatprep.subr.mxu0 %v125
    %3901 = vmatpush1.msra.mxu0 %v124
    %3902 = vmatprep.subr.mxu0 %v129
    %3903 = vmatpush1.msra.mxu0 %v128
    %3904 = vmatprep.subr.mxu0 %v133
    %3905 = vmatpush1.msra.mxu0 %v132
    %3906 = vmatprep.subr.mxu0 %v137
    %3907 = vmatpush1.msra.mxu0 %v136
    %3908 = vmatprep.subr.mxu0 %v141
    %3909 = vmatpush1.msra.mxu0 %v140
    %3910 = vmatprep.subr.mxu0 %v145
    %3911 = vmatpush1.msra.mxu0 %v144
    %3912 = vmatprep.subr.mxu0 %v149
    %3913 = vmatpush1.msra.mxu0 %v148
    %3914 = vmatprep.subr.mxu0 %v153
    %3915 = vmatpush1.msra.mxu0 %v152
    %3916 = vmatprep.subr.mxu0 %v157
    %3917 = vmatpush1.msra.mxu0 %v156
    %3918 = vmatprep.subr.mxu0 %v161
    %3919 = vmatpush1.msra.mxu0 %v160
    %3920 = vmatprep.subr.mxu0 0.0
    %3921 = vmatpush1.msra.mxu0 0.0
    %3922 = vmatprep.subr.mxu0 0.0
    %3923 = vmatpush1.msra.mxu0 0.0
    %3924 = vmatprep.subr.mxu0 0.0
    %3925 = vmatpush1.msra.mxu0 0.0
    %3926 = vmatprep.subr.mxu0 0.0
    %3927 = vmatpush1.msra.mxu0 0.0
    %3928 = vmatprep.subr.mxu0 0.0
    %3929 = vmatpush1.msra.mxu0 0.0
    %3930 = vmatprep.subr.mxu0 0.0
    %3931 = vmatpush1.msra.mxu0 0.0
    %3932 = vmatprep.subr.mxu0 0.0
    %3933 = vmatpush1.msra.mxu0 0.0
    %3934 = vmatprep.subr.mxu0 0.0
    %3935 = vmatpush1.msra.mxu0 0.0
    %3936 = vmatprep.subr.mxu0 0.0
    %3937 = vmatpush1.msra.mxu0 0.0
    %3938 = vmatprep.subr.mxu0 0.0
    %3939 = vmatpush1.msra.mxu0 0.0
    %3940 = vmatprep.subr.mxu0 0.0
    %3941 = vmatpush1.msra.mxu0 0.0
    %3942 = vmatprep.subr.mxu0 0.0
    %3943 = vmatpush1.msra.mxu0 0.0
    %3944 = vmatprep.subr.mxu0 0.0
    %3945 = vmatpush1.msra.mxu0 0.0
    %3946 = vmatprep.subr.mxu0 0.0
    %3947 = vmatpush1.msra.mxu0 0.0
    %3948 = vmatprep.subr.mxu0 0.0
    %3949 = vmatpush1.msra.mxu0 0.0
    %3950 = vmatprep.subr.mxu0 0.0
    %3951 = vmatpush1.msra.mxu0 0.0
    %3952 = vmatprep.mubr.f32.mxu0 0.0
    %3953 = vmatmul.mubr.f32.gmra.mrb[0].mxu0 %v3745
    %v3954 = vpop.f32.mrb[0].mxu0
    %v3955 = vadd.f32 %v3813, %v3954
    %v3956 = vpop.f32.mrb[0].mxu0
    %v3957 = vadd.f32 %v3815, %v3956
    %3958 = vdwg.mxu0
    %3959 = vmatprep.subr.mxu0 %v103
    %3960 = vmatpush1.msra.mxu0 %v102
    %3961 = vmatprep.subr.mxu0 %v107
    %3962 = vmatpush1.msra.mxu0 %v106
    %3963 = vmatprep.subr.mxu0 %v111
    %3964 = vmatpush1.msra.mxu0 %v110
    %3965 = vmatprep.subr.mxu0 %v115
    %3966 = vmatpush1.msra.mxu0 %v114
    %3967 = vmatprep.subr.mxu0 %v119
    %3968 = vmatpush1.msra.mxu0 %v118
    %3969 = vmatprep.subr.mxu0 %v123
    %3970 = vmatpush1.msra.mxu0 %v122
    %3971 = vmatprep.subr.mxu0 %v127
    %3972 = vmatpush1.msra.mxu0 %v126
    %3973 = vmatprep.subr.mxu0 %v131
    %3974 = vmatpush1.msra.mxu0 %v130
    %3975 = vmatprep.subr.mxu0 %v135
    %3976 = vmatpush1.msra.mxu0 %v134
    %3977 = vmatprep.subr.mxu0 %v139
    %3978 = vmatpush1.msra.mxu0 %v138
    %3979 = vmatprep.subr.mxu0 %v143
    %3980 = vmatpush1.msra.mxu0 %v142
    %3981 = vmatprep.subr.mxu0 %v147
    %3982 = vmatpush1.msra.mxu0 %v146
    %3983 = vmatprep.subr.mxu0 %v151
    %3984 = vmatpush1.msra.mxu0 %v150
    %3985 = vmatprep.subr.mxu0 %v155
    %3986 = vmatpush1.msra.mxu0 %v154
    %3987 = vmatprep.subr.mxu0 %v159
    %3988 = vmatpush1.msra.mxu0 %v158
    %3989 = vmatprep.subr.mxu0 %v163
    %3990 = vmatpush1.msra.mxu0 %v162
    %3991 = vmatprep.subr.mxu0 0.0
    %3992 = vmatpush1.msra.mxu0 0.0
    %3993 = vmatprep.subr.mxu0 0.0
    %3994 = vmatpush1.msra.mxu0 0.0
    %3995 = vmatprep.subr.mxu0 0.0
    %3996 = vmatpush1.msra.mxu0 0.0
    %3997 = vmatprep.subr.mxu0 0.0
    %3998 = vmatpush1.msra.mxu0 0.0
    %3999 = vmatprep.subr.mxu0 0.0
    %4000 = vmatpush1.msra.mxu0 0.0
    %4001 = vmatprep.subr.mxu0 0.0
    %4002 = vmatpush1.msra.mxu0 0.0
    %4003 = vmatprep.subr.mxu0 0.0
    %4004 = vmatpush1.msra.mxu0 0.0
    %4005 = vmatprep.subr.mxu0 0.0
    %4006 = vmatpush1.msra.mxu0 0.0
    %4007 = vmatprep.subr.mxu0 0.0
    %4008 = vmatpush1.msra.mxu0 0.0
    %4009 = vmatprep.subr.mxu0 0.0
    %4010 = vmatpush1.msra.mxu0 0.0
    %4011 = vmatprep.subr.mxu0 0.0
    %4012 = vmatpush1.msra.mxu0 0.0
    %4013 = vmatprep.subr.mxu0 0.0
    %4014 = vmatpush1.msra.mxu0 0.0
    %4015 = vmatprep.subr.mxu0 0.0
    %4016 = vmatpush1.msra.mxu0 0.0
    %4017 = vmatprep.subr.mxu0 0.0
    %4018 = vmatpush1.msra.mxu0 0.0
    %4019 = vmatprep.subr.mxu0 0.0
    %4020 = vmatpush1.msra.mxu0 0.0
    %4021 = vmatprep.subr.mxu0 0.0
    %4022 = vmatpush1.msra.mxu0 0.0
    %4023 = vmatprep.mubr.f32.mxu0 0.0
    %4024 = vmatmul.mubr.f32.gmra.mrb[0].mxu0 %v3745
    %v4025 = vpop.f32.mrb[0].mxu0
    %v4026 = vadd.f32 %v3884, %v4025
    %v4027 = vpop.f32.mrb[0].mxu0
    %v4028 = vadd.f32 %v3886, %v4027
    %4029 = vdwg.mxu0
    %v4030 = vadd.f32 %v3955, %v868
    %v4031 = vadd.f32 %v3957, %v872
    %v4032 = vadd.f32 %v4026, %v876
    %v4033 = vadd.f32 %v4028, %v880
    %v4034 = vxor.u32 %v4030, 2147483648
    %v4035 = vmul.f32 %v4034, 1.442695
    %v4036 = vpow.pop %v4035
    %v4037 = vadd.f32 %v4036, 1.0
    %v4038 = vrcp.pop %v4037
    %v4039 = vmul.f32 1.0, %v4038
    %v4040 = vxor.u32 %v4031, 2147483648
    %v4041 = vmul.f32 %v4040, 1.442695
    %v4042 = vpow.pop %v4041
    %v4043 = vadd.f32 %v4042, 1.0
    %v4044 = vrcp.pop %v4043
    %v4045 = vmul.f32 1.0, %v4044
    %v4046 = vtanh.pop %v4032
    %v4047 = vxor.u32 %v4033, 2147483648
    %v4048 = vmul.f32 %v4047, 1.442695
    %v4049 = vpow.pop %v4048
    %v4050 = vadd.f32 %v4049, 1.0
    %v4051 = vrcp.pop %v4050
    %v4052 = vmul.f32 1.0, %v4051
    %v4053 = vmul.f32 %v4045, %v3426
    %v4054 = vmul.f32 %v4039, %v4046
    %v4055 = vadd.f32 %v4053, %v4054
    %v4056 = vtanh.pop %v4055
    %v4057 = vmul.f32 %v4052, %v4056
    %s4058 = scalar_lea.vmem %s0, 12
    %v4059 = vld [vmem:[%s4058] sm:$0x3]
    %4060 = vmatprep.subr.mxu0 %v36
    %4061 = vmatpush1.msra.mxu0 %v35
    %4062 = vmatprep.subr.mxu0 %v40
    %4063 = vmatpush1.msra.mxu0 %v39
    %4064 = vmatprep.subr.mxu0 %v44
    %4065 = vmatpush1.msra.mxu0 %v43
    %4066 = vmatprep.subr.mxu0 %v48
    %4067 = vmatpush1.msra.mxu0 %v47
    %4068 = vmatprep.subr.mxu0 %v52
    %4069 = vmatpush1.msra.mxu0 %v51
    %4070 = vmatprep.subr.mxu0 %v56
    %4071 = vmatpush1.msra.mxu0 %v55
    %4072 = vmatprep.subr.mxu0 %v60
    %4073 = vmatpush1.msra.mxu0 %v59
    %4074 = vmatprep.subr.mxu0 %v64
    %4075 = vmatpush1.msra.mxu0 %v63
    %4076 = vmatprep.subr.mxu0 %v68
    %4077 = vmatpush1.msra.mxu0 %v67
    %4078 = vmatprep.subr.mxu0 %v72
    %4079 = vmatpush1.msra.mxu0 %v71
    %4080 = vmatprep.subr.mxu0 %v76
    %4081 = vmatpush1.msra.mxu0 %v75
    %4082 = vmatprep.subr.mxu0 %v80
    %4083 = vmatpush1.msra.mxu0 %v79
    %4084 = vmatprep.subr.mxu0 %v84
    %4085 = vmatpush1.msra.mxu0 %v83
    %4086 = vmatprep.subr.mxu0 %v88
    %4087 = vmatpush1.msra.mxu0 %v87
    %4088 = vmatprep.subr.mxu0 %v92
    %4089 = vmatpush1.msra.mxu0 %v91
    %4090 = vmatprep.subr.mxu0 %v96
    %4091 = vmatpush1.msra.mxu0 %v95
    %4092 = vmatprep.subr.mxu0 0.0
    %4093 = vmatpush1.msra.mxu0 0.0
    %4094 = vmatprep.subr.mxu0 0.0
    %4095 = vmatpush1.msra.mxu0 0.0
    %4096 = vmatprep.subr.mxu0 0.0
    %4097 = vmatpush1.msra.mxu0 0.0
    %4098 = vmatprep.subr.mxu0 0.0
    %4099 = vmatpush1.msra.mxu0 0.0
    %4100 = vmatprep.subr.mxu0 0.0
    %4101 = vmatpush1.msra.mxu0 0.0
    %4102 = vmatprep.subr.mxu0 0.0
    %4103 = vmatpush1.msra.mxu0 0.0
    %4104 = vmatprep.subr.mxu0 0.0
    %4105 = vmatpush1.msra.mxu0 0.0
    %4106 = vmatprep.subr.mxu0 0.0
    %4107 = vmatpush1.msra.mxu0 0.0
    %4108 = vmatprep.subr.mxu0 0.0
    %4109 = vmatpush1.msra.mxu0 0.0
    %4110 = vmatprep.subr.mxu0 0.0
    %4111 = vmatpush1.msra.mxu0 0.0
    %4112 = vmatprep.subr.mxu0 0.0
    %4113 = vmatpush1.msra.mxu0 0.0
    %4114 = vmatprep.subr.mxu0 0.0
    %4115 = vmatpush1.msra.mxu0 0.0
    %4116 = vmatprep.subr.mxu0 0.0
    %4117 = vmatpush1.msra.mxu0 0.0
    %4118 = vmatprep.subr.mxu0 0.0
    %4119 = vmatpush1.msra.mxu0 0.0
    %4120 = vmatprep.subr.mxu0 0.0
    %4121 = vmatpush1.msra.mxu0 0.0
    %4122 = vmatprep.subr.mxu0 0.0
    %4123 = vmatpush1.msra.mxu0 0.0
    %4124 = vmatprep.mubr.f32.mxu0 0.0
    %4125 = vmatmul.mubr.f32.gmra.mrb[0].mxu0 %v3745
    %v4126 = vpop.f32.mrb[0].mxu0
    %v4127 = vadd.f32 0.0, %v4126
    %v4128 = vpop.f32.mrb[0].mxu0
    %v4129 = vadd.f32 0.0, %v4128
    %4130 = vdwg.mxu0
    %4131 = vmatprep.subr.mxu0 %v38
    %4132 = vmatpush1.msra.mxu0 %v37
    %4133 = vmatprep.subr.mxu0 %v42
    %4134 = vmatpush1.msra.mxu0 %v41
    %4135 = vmatprep.subr.mxu0 %v46
    %4136 = vmatpush1.msra.mxu0 %v45
    %4137 = vmatprep.subr.mxu0 %v50
    %4138 = vmatpush1.msra.mxu0 %v49
    %4139 = vmatprep.subr.mxu0 %v54
    %4140 = vmatpush1.msra.mxu0 %v53
    %4141 = vmatprep.subr.mxu0 %v58
    %4142 = vmatpush1.msra.mxu0 %v57
    %4143 = vmatprep.subr.mxu0 %v62
    %4144 = vmatpush1.msra.mxu0 %v61
    %4145 = vmatprep.subr.mxu0 %v66
    %4146 = vmatpush1.msra.mxu0 %v65
    %4147 = vmatprep.subr.mxu0 %v70
    %4148 = vmatpush1.msra.mxu0 %v69
    %4149 = vmatprep.subr.mxu0 %v74
    %4150 = vmatpush1.msra.mxu0 %v73
    %4151 = vmatprep.subr.mxu0 %v78
    %4152 = vmatpush1.msra.mxu0 %v77
    %4153 = vmatprep.subr.mxu0 %v82
    %4154 = vmatpush1.msra.mxu0 %v81
    %4155 = vmatprep.subr.mxu0 %v86
    %4156 = vmatpush1.msra.mxu0 %v85
    %4157 = vmatprep.subr.mxu0 %v90
    %4158 = vmatpush1.msra.mxu0 %v89
    %4159 = vmatprep.subr.mxu0 %v94
    %4160 = vmatpush1.msra.mxu0 %v93
    %4161 = vmatprep.subr.mxu0 %v98
    %4162 = vmatpush1.msra.mxu0 %v97
    %4163 = vmatprep.subr.mxu0 0.0
    %4164 = vmatpush1.msra.mxu0 0.0
    %4165 = vmatprep.subr.mxu0 0.0
    %4166 = vmatpush1.msra.mxu0 0.0
    %4167 = vmatprep.subr.mxu0 0.0
    %4168 = vmatpush1.msra.mxu0 0.0
    %4169 = vmatprep.subr.mxu0 0.0
    %4170 = vmatpush1.msra.mxu0 0.0
    %4171 = vmatprep.subr.mxu0 0.0
    %4172 = vmatpush1.msra.mxu0 0.0
    %4173 = vmatprep.subr.mxu0 0.0
    %4174 = vmatpush1.msra.mxu0 0.0
    %4175 = vmatprep.subr.mxu0 0.0
    %4176 = vmatpush1.msra.mxu0 0.0
    %4177 = vmatprep.subr.mxu0 0.0
    %4178 = vmatpush1.msra.mxu0 0.0
    %4179 = vmatprep.subr.mxu0 0.0
    %4180 = vmatpush1.msra.mxu0 0.0
    %4181 = vmatprep.subr.mxu0 0.0
    %4182 = vmatpush1.msra.mxu0 0.0
    %4183 = vmatprep.subr.mxu0 0.0
    %4184 = vmatpush1.msra.mxu0 0.0
    %4185 = vmatprep.subr.mxu0 0.0
    %4186 = vmatpush1.msra.mxu0 0.0
    %4187 = vmatprep.subr.mxu0 0.0
    %4188 = vmatpush1.msra.mxu0 0.0
    %4189 = vmatprep.subr.mxu0 0.0
    %4190 = vmatpush1.msra.mxu0 0.0
    %4191 = vmatprep.subr.mxu0 0.0
    %4192 = vmatpush1.msra.mxu0 0.0
    %4193 = vmatprep.subr.mxu0 0.0
    %4194 = vmatpush1.msra.mxu0 0.0
    %4195 = vmatprep.mubr.f32.mxu0 0.0
    %4196 = vmatmul.mubr.f32.gmra.mrb[0].mxu0 %v3745
    %v4197 = vpop.f32.mrb[0].mxu0
    %v4198 = vadd.f32 0.0, %v4197
    %v4199 = vpop.f32.mrb[0].mxu0
    %v4200 = vadd.f32 0.0, %v4199
    %4201 = vdwg.mxu0
    %v4203 = vsel %vm376, %v4059, 0
    %4205 = vmatprep.subr.mxu0 %v383
    %4206 = vmatpush1.msra.mxu0 %v381
    %4207 = vmatprep.subr.mxu0 0.0
    %4208 = vmatpush1.msra.mxu0 0.0
    %4209 = vmatprep.subr.mxu0 0.0
    %4210 = vmatpush1.msra.mxu0 0.0
    %4211 = vmatprep.subr.mxu0 0.0
    %4212 = vmatpush1.msra.mxu0 0.0
    %4213 = vmatprep.subr.mxu0 0.0
    %4214 = vmatpush1.msra.mxu0 0.0
    %4215 = vmatprep.subr.mxu0 0.0
    %4216 = vmatpush1.msra.mxu0 0.0
    %4217 = vmatprep.subr.mxu0 0.0
    %4218 = vmatpush1.msra.mxu0 0.0
    %4219 = vmatprep.subr.mxu0 0.0
    %4220 = vmatpush1.msra.mxu0 0.0
    %4221 = vmatprep.subr.mxu0 0.0
    %4222 = vmatpush1.msra.mxu0 0.0
    %4223 = vmatprep.subr.mxu0 0.0
    %4224 = vmatpush1.msra.mxu0 0.0
    %4225 = vmatprep.subr.mxu0 0.0
    %4226 = vmatpush1.msra.mxu0 0.0
    %4227 = vmatprep.subr.mxu0 0.0
    %4228 = vmatpush1.msra.mxu0 0.0
    %4229 = vmatprep.subr.mxu0 0.0
    %4230 = vmatpush1.msra.mxu0 0.0
    %4231 = vmatprep.subr.mxu0 0.0
    %4232 = vmatpush1.msra.mxu0 0.0
    %4233 = vmatprep.subr.mxu0 0.0
    %4234 = vmatpush1.msra.mxu0 0.0
    %4235 = vmatprep.subr.mxu0 0.0
    %4236 = vmatpush1.msra.mxu0 0.0
    %4237 = vmatprep.subr.mxu0 0.0
    %4238 = vmatpush1.msra.mxu0 0.0
    %4239 = vmatprep.subr.mxu0 0.0
    %4240 = vmatpush1.msra.mxu0 0.0
    %4241 = vmatprep.subr.mxu0 0.0
    %4242 = vmatpush1.msra.mxu0 0.0
    %4243 = vmatprep.subr.mxu0 0.0
    %4244 = vmatpush1.msra.mxu0 0.0
    %4245 = vmatprep.subr.mxu0 0.0
    %4246 = vmatpush1.msra.mxu0 0.0
    %4247 = vmatprep.subr.mxu0 0.0
    %4248 = vmatpush1.msra.mxu0 0.0
    %4249 = vmatprep.subr.mxu0 0.0
    %4250 = vmatpush1.msra.mxu0 0.0
    %4251 = vmatprep.subr.mxu0 0.0
    %4252 = vmatpush1.msra.mxu0 0.0
    %4253 = vmatprep.subr.mxu0 0.0
    %4254 = vmatpush1.msra.mxu0 0.0
    %4255 = vmatprep.subr.mxu0 0.0
    %4256 = vmatpush1.msra.mxu0 0.0
    %4257 = vmatprep.subr.mxu0 0.0
    %4258 = vmatpush1.msra.mxu0 0.0
    %4259 = vmatprep.subr.mxu0 0.0
    %4260 = vmatpush1.msra.mxu0 0.0
    %4261 = vmatprep.subr.mxu0 0.0
    %4262 = vmatpush1.msra.mxu0 0.0
    %4263 = vmatprep.subr.mxu0 0.0
    %4264 = vmatpush1.msra.mxu0 0.0
    %4265 = vmatprep.subr.mxu0 0.0
    %4266 = vmatpush1.msra.mxu0 0.0
    %4267 = vmatprep.subr.mxu0 0.0
    %4268 = vmatpush1.msra.mxu0 0.0
    %4269 = vmatprep.mubr.f32.mxu0 0.0
    %4270 = vmatmul.mubr.f32.gmra.mrb[0].mxu0 %v4203
    %v4271 = vpop.f32.mrb[0].mxu0
    %v4272 = vadd.f32 %v4127, %v4271
    %v4273 = vpop.f32.mrb[0].mxu0
    %v4274 = vadd.f32 %v4129, %v4273
    %4275 = vdwg.mxu0
    %4276 = vmatprep.subr.mxu0 %v387
    %4277 = vmatpush1.msra.mxu0 %v385
    %4278 = vmatprep.subr.mxu0 0.0
    %4279 = vmatpush1.msra.mxu0 0.0
    %4280 = vmatprep.subr.mxu0 0.0
    %4281 = vmatpush1.msra.mxu0 0.0
    %4282 = vmatprep.subr.mxu0 0.0
    %4283 = vmatpush1.msra.mxu0 0.0
    %4284 = vmatprep.subr.mxu0 0.0
    %4285 = vmatpush1.msra.mxu0 0.0
    %4286 = vmatprep.subr.mxu0 0.0
    %4287 = vmatpush1.msra.mxu0 0.0
    %4288 = vmatprep.subr.mxu0 0.0
    %4289 = vmatpush1.msra.mxu0 0.0
    %4290 = vmatprep.subr.mxu0 0.0
    %4291 = vmatpush1.msra.mxu0 0.0
    %4292 = vmatprep.subr.mxu0 0.0
    %4293 = vmatpush1.msra.mxu0 0.0
    %4294 = vmatprep.subr.mxu0 0.0
    %4295 = vmatpush1.msra.mxu0 0.0
    %4296 = vmatprep.subr.mxu0 0.0
    %4297 = vmatpush1.msra.mxu0 0.0
    %4298 = vmatprep.subr.mxu0 0.0
    %4299 = vmatpush1.msra.mxu0 0.0
    %4300 = vmatprep.subr.mxu0 0.0
    %4301 = vmatpush1.msra.mxu0 0.0
    %4302 = vmatprep.subr.mxu0 0.0
    %4303 = vmatpush1.msra.mxu0 0.0
    %4304 = vmatprep.subr.mxu0 0.0
    %4305 = vmatpush1.msra.mxu0 0.0
    %4306 = vmatprep.subr.mxu0 0.0
    %4307 = vmatpush1.msra.mxu0 0.0
    %4308 = vmatprep.subr.mxu0 0.0
    %4309 = vmatpush1.msra.mxu0 0.0
    %4310 = vmatprep.subr.mxu0 0.0
    %4311 = vmatpush1.msra.mxu0 0.0
    %4312 = vmatprep.subr.mxu0 0.0
    %4313 = vmatpush1.msra.mxu0 0.0
    %4314 = vmatprep.subr.mxu0 0.0
    %4315 = vmatpush1.msra.mxu0 0.0
    %4316 = vmatprep.subr.mxu0 0.0
    %4317 = vmatpush1.msra.mxu0 0.0
    %4318 = vmatprep.subr.mxu0 0.0
    %4319 = vmatpush1.msra.mxu0 0.0
    %4320 = vmatprep.subr.mxu0 0.0
    %4321 = vmatpush1.msra.mxu0 0.0
    %4322 = vmatprep.subr.mxu0 0.0
    %4323 = vmatpush1.msra.mxu0 0.0
    %4324 = vmatprep.subr.mxu0 0.0
    %4325 = vmatpush1.msra.mxu0 0.0
    %4326 = vmatprep.subr.mxu0 0.0
    %4327 = vmatpush1.msra.mxu0 0.0
    %4328 = vmatprep.subr.mxu0 0.0
    %4329 = vmatpush1.msra.mxu0 0.0
    %4330 = vmatprep.subr.mxu0 0.0
    %4331 = vmatpush1.msra.mxu0 0.0
    %4332 = vmatprep.subr.mxu0 0.0
    %4333 = vmatpush1.msra.mxu0 0.0
    %4334 = vmatprep.subr.mxu0 0.0
    %4335 = vmatpush1.msra.mxu0 0.0
    %4336 = vmatprep.subr.mxu0 0.0
    %4337 = vmatpush1.msra.mxu0 0.0
    %4338 = vmatprep.subr.mxu0 0.0
    %4339 = vmatpush1.msra.mxu0 0.0
    %4340 = vmatprep.mubr.f32.mxu0 0.0
    %4341 = vmatmul.mubr.f32.gmra.mrb[0].mxu0 %v4203
    %v4342 = vpop.f32.mrb[0].mxu0
    %v4343 = vadd.f32 %v4198, %v4342
    %v4344 = vpop.f32.mrb[0].mxu0
    %v4345 = vadd.f32 %v4200, %v4344
    %4346 = vdwg.mxu0
    %v4347 = vadd.f32 %v4272, %v535
    %v4348 = vadd.f32 %v4274, %v539
    %v4349 = vadd.f32 %v4343, %v543
    %v4350 = vadd.f32 %v4345, %v547
    %v4351 = vxor.u32 %v4347, 2147483648
    %v4352 = vmul.f32 %v4351, 1.442695
    %v4353 = vpow.pop %v4352
    %v4354 = vadd.f32 %v4353, 1.0
    %v4355 = vrcp.pop %v4354
    %v4356 = vmul.f32 1.0, %v4355
    %v4357 = vxor.u32 %v4348, 2147483648
    %v4358 = vmul.f32 %v4357, 1.442695
    %v4359 = vpow.pop %v4358
    %v4360 = vadd.f32 %v4359, 1.0
    %v4361 = vrcp.pop %v4360
    %v4362 = vmul.f32 1.0, %v4361
    %v4363 = vtanh.pop %v4349
    %v4364 = vxor.u32 %v4350, 2147483648
    %v4365 = vmul.f32 %v4364, 1.442695
    %v4366 = vpow.pop %v4365
    %v4367 = vadd.f32 %v4366, 1.0
    %v4368 = vrcp.pop %v4367
    %v4369 = vmul.f32 1.0, %v4368
    %v4370 = vmul.f32 %v4362, %v3743
    %v4371 = vmul.f32 %v4356, %v4363
    %v4372 = vadd.f32 %v4370, %v4371
    %v4373 = vtanh.pop %v4372
    %v4374 = vmul.f32 %v4369, %v4373
    %4375 = vmatprep.subr.mxu0 %v165
    %4376 = vmatpush1.msra.mxu0 %v164
    %4377 = vmatprep.subr.mxu0 %v169
    %4378 = vmatpush1.msra.mxu0 %v168
    %4379 = vmatprep.subr.mxu0 %v173
    %4380 = vmatpush1.msra.mxu0 %v172
    %4381 = vmatprep.subr.mxu0 %v177
    %4382 = vmatpush1.msra.mxu0 %v176
    %4383 = vmatprep.subr.mxu0 %v181
    %4384 = vmatpush1.msra.mxu0 %v180
    %4385 = vmatprep.subr.mxu0 %v185
    %4386 = vmatpush1.msra.mxu0 %v184
    %4387 = vmatprep.subr.mxu0 %v189
    %4388 = vmatpush1.msra.mxu0 %v188
    %4389 = vmatprep.subr.mxu0 %v193
    %4390 = vmatpush1.msra.mxu0 %v192
    %4391 = vmatprep.subr.mxu0 %v197
    %4392 = vmatpush1.msra.mxu0 %v196
    %4393 = vmatprep.subr.mxu0 %v201
    %4394 = vmatpush1.msra.mxu0 %v200
    %4395 = vmatprep.subr.mxu0 %v205
    %4396 = vmatpush1.msra.mxu0 %v204
    %4397 = vmatprep.subr.mxu0 %v209
    %4398 = vmatpush1.msra.mxu0 %v208
    %4399 = vmatprep.subr.mxu0 %v213
    %4400 = vmatpush1.msra.mxu0 %v212
    %4401 = vmatprep.subr.mxu0 %v217
    %4402 = vmatpush1.msra.mxu0 %v216
    %4403 = vmatprep.subr.mxu0 %v221
    %4404 = vmatpush1.msra.mxu0 %v220
    %4405 = vmatprep.subr.mxu0 %v225
    %4406 = vmatpush1.msra.mxu0 %v224
    %4407 = vmatprep.subr.mxu0 0.0
    %4408 = vmatpush1.msra.mxu0 0.0
    %4409 = vmatprep.subr.mxu0 0.0
    %4410 = vmatpush1.msra.mxu0 0.0
    %4411 = vmatprep.subr.mxu0 0.0
    %4412 = vmatpush1.msra.mxu0 0.0
    %4413 = vmatprep.subr.mxu0 0.0
    %4414 = vmatpush1.msra.mxu0 0.0
    %4415 = vmatprep.subr.mxu0 0.0
    %4416 = vmatpush1.msra.mxu0 0.0
    %4417 = vmatprep.subr.mxu0 0.0
    %4418 = vmatpush1.msra.mxu0 0.0
    %4419 = vmatprep.subr.mxu0 0.0
    %4420 = vmatpush1.msra.mxu0 0.0
    %4421 = vmatprep.subr.mxu0 0.0
    %4422 = vmatpush1.msra.mxu0 0.0
    %4423 = vmatprep.subr.mxu0 0.0
    %4424 = vmatpush1.msra.mxu0 0.0
    %4425 = vmatprep.subr.mxu0 0.0
    %4426 = vmatpush1.msra.mxu0 0.0
    %4427 = vmatprep.subr.mxu0 0.0
    %4428 = vmatpush1.msra.mxu0 0.0
    %4429 = vmatprep.subr.mxu0 0.0
    %4430 = vmatpush1.msra.mxu0 0.0
    %4431 = vmatprep.subr.mxu0 0.0
    %4432 = vmatpush1.msra.mxu0 0.0
    %4433 = vmatprep.subr.mxu0 0.0
    %4434 = vmatpush1.msra.mxu0 0.0
    %4435 = vmatprep.subr.mxu0 0.0
    %4436 = vmatpush1.msra.mxu0 0.0
    %4437 = vmatprep.subr.mxu0 0.0
    %4438 = vmatpush1.msra.mxu0 0.0
    %4439 = vmatprep.mubr.f32.mxu0 0.0
    %4440 = vmatmul.mubr.f32.gmra.mrb[0].mxu0 %v4057
    %v4441 = vpop.f32.mrb[0].mxu0
    %v4442 = vadd.f32 0.0, %v4441
    %v4443 = vpop.f32.mrb[0].mxu0
    %v4444 = vadd.f32 0.0, %v4443
    %4445 = vdwg.mxu0
    %4446 = vmatprep.subr.mxu0 %v167
    %4447 = vmatpush1.msra.mxu0 %v166
    %4448 = vmatprep.subr.mxu0 %v171
    %4449 = vmatpush1.msra.mxu0 %v170
    %4450 = vmatprep.subr.mxu0 %v175
    %4451 = vmatpush1.msra.mxu0 %v174
    %4452 = vmatprep.subr.mxu0 %v179
    %4453 = vmatpush1.msra.mxu0 %v178
    %4454 = vmatprep.subr.mxu0 %v183
    %4455 = vmatpush1.msra.mxu0 %v182
    %4456 = vmatprep.subr.mxu0 %v187
    %4457 = vmatpush1.msra.mxu0 %v186
    %4458 = vmatprep.subr.mxu0 %v191
    %4459 = vmatpush1.msra.mxu0 %v190
    %4460 = vmatprep.subr.mxu0 %v195
    %4461 = vmatpush1.msra.mxu0 %v194
    %4462 = vmatprep.subr.mxu0 %v199
    %4463 = vmatpush1.msra.mxu0 %v198
    %4464 = vmatprep.subr.mxu0 %v203
    %4465 = vmatpush1.msra.mxu0 %v202
    %4466 = vmatprep.subr.mxu0 %v207
    %4467 = vmatpush1.msra.mxu0 %v206
    %4468 = vmatprep.subr.mxu0 %v211
    %4469 = vmatpush1.msra.mxu0 %v210
    %4470 = vmatprep.subr.mxu0 %v215
    %4471 = vmatpush1.msra.mxu0 %v214
    %4472 = vmatprep.subr.mxu0 %v219
    %4473 = vmatpush1.msra.mxu0 %v218
    %4474 = vmatprep.subr.mxu0 %v223
    %4475 = vmatpush1.msra.mxu0 %v222
    %4476 = vmatprep.subr.mxu0 %v227
    %4477 = vmatpush1.msra.mxu0 %v226
    %4478 = vmatprep.subr.mxu0 0.0
    %4479 = vmatpush1.msra.mxu0 0.0
    %4480 = vmatprep.subr.mxu0 0.0
    %4481 = vmatpush1.msra.mxu0 0.0
    %4482 = vmatprep.subr.mxu0 0.0
    %4483 = vmatpush1.msra.mxu0 0.0
    %4484 = vmatprep.subr.mxu0 0.0
    %4485 = vmatpush1.msra.mxu0 0.0
    %4486 = vmatprep.subr.mxu0 0.0
    %4487 = vmatpush1.msra.mxu0 0.0
    %4488 = vmatprep.subr.mxu0 0.0
    %4489 = vmatpush1.msra.mxu0 0.0
    %4490 = vmatprep.subr.mxu0 0.0
    %4491 = vmatpush1.msra.mxu0 0.0
    %4492 = vmatprep.subr.mxu0 0.0
    %4493 = vmatpush1.msra.mxu0 0.0
    %4494 = vmatprep.subr.mxu0 0.0
    %4495 = vmatpush1.msra.mxu0 0.0
    %4496 = vmatprep.subr.mxu0 0.0
    %4497 = vmatpush1.msra.mxu0 0.0
    %4498 = vmatprep.subr.mxu0 0.0
    %4499 = vmatpush1.msra.mxu0 0.0
    %4500 = vmatprep.subr.mxu0 0.0
    %4501 = vmatpush1.msra.mxu0 0.0
    %4502 = vmatprep.subr.mxu0 0.0
    %4503 = vmatpush1.msra.mxu0 0.0
    %4504 = vmatprep.subr.mxu0 0.0
    %4505 = vmatpush1.msra.mxu0 0.0
    %4506 = vmatprep.subr.mxu0 0.0
    %4507 = vmatpush1.msra.mxu0 0.0
    %4508 = vmatprep.subr.mxu0 0.0
    %4509 = vmatpush1.msra.mxu0 0.0
    %4510 = vmatprep.mubr.f32.mxu0 0.0
    %4511 = vmatmul.mubr.f32.gmra.mrb[0].mxu0 %v4057
    %v4512 = vpop.f32.mrb[0].mxu0
    %v4513 = vadd.f32 0.0, %v4512
    %v4514 = vpop.f32.mrb[0].mxu0
    %v4515 = vadd.f32 0.0, %v4514
    %4516 = vdwg.mxu0
    %4517 = vmatprep.subr.mxu0 %v101
    %4518 = vmatpush1.msra.mxu0 %v100
    %4519 = vmatprep.subr.mxu0 %v105
    %4520 = vmatpush1.msra.mxu0 %v104
    %4521 = vmatprep.subr.mxu0 %v109
    %4522 = vmatpush1.msra.mxu0 %v108
    %4523 = vmatprep.subr.mxu0 %v113
    %4524 = vmatpush1.msra.mxu0 %v112
    %4525 = vmatprep.subr.mxu0 %v117
    %4526 = vmatpush1.msra.mxu0 %v116
    %4527 = vmatprep.subr.mxu0 %v121
    %4528 = vmatpush1.msra.mxu0 %v120
    %4529 = vmatprep.subr.mxu0 %v125
    %4530 = vmatpush1.msra.mxu0 %v124
    %4531 = vmatprep.subr.mxu0 %v129
    %4532 = vmatpush1.msra.mxu0 %v128
    %4533 = vmatprep.subr.mxu0 %v133
    %4534 = vmatpush1.msra.mxu0 %v132
    %4535 = vmatprep.subr.mxu0 %v137
    %4536 = vmatpush1.msra.mxu0 %v136
    %4537 = vmatprep.subr.mxu0 %v141
    %4538 = vmatpush1.msra.mxu0 %v140
    %4539 = vmatprep.subr.mxu0 %v145
    %4540 = vmatpush1.msra.mxu0 %v144
    %4541 = vmatprep.subr.mxu0 %v149
    %4542 = vmatpush1.msra.mxu0 %v148
    %4543 = vmatprep.subr.mxu0 %v153
    %4544 = vmatpush1.msra.mxu0 %v152
    %4545 = vmatprep.subr.mxu0 %v157
    %4546 = vmatpush1.msra.mxu0 %v156
    %4547 = vmatprep.subr.mxu0 %v161
    %4548 = vmatpush1.msra.mxu0 %v160
    %4549 = vmatprep.subr.mxu0 0.0
    %4550 = vmatpush1.msra.mxu0 0.0
    %4551 = vmatprep.subr.mxu0 0.0
    %4552 = vmatpush1.msra.mxu0 0.0
    %4553 = vmatprep.subr.mxu0 0.0
    %4554 = vmatpush1.msra.mxu0 0.0
    %4555 = vmatprep.subr.mxu0 0.0
    %4556 = vmatpush1.msra.mxu0 0.0
    %4557 = vmatprep.subr.mxu0 0.0
    %4558 = vmatpush1.msra.mxu0 0.0
    %4559 = vmatprep.subr.mxu0 0.0
    %4560 = vmatpush1.msra.mxu0 0.0
    %4561 = vmatprep.subr.mxu0 0.0
    %4562 = vmatpush1.msra.mxu0 0.0
    %4563 = vmatprep.subr.mxu0 0.0
    %4564 = vmatpush1.msra.mxu0 0.0
    %4565 = vmatprep.subr.mxu0 0.0
    %4566 = vmatpush1.msra.mxu0 0.0
    %4567 = vmatprep.subr.mxu0 0.0
    %4568 = vmatpush1.msra.mxu0 0.0
    %4569 = vmatprep.subr.mxu0 0.0
    %4570 = vmatpush1.msra.mxu0 0.0
    %4571 = vmatprep.subr.mxu0 0.0
    %4572 = vmatpush1.msra.mxu0 0.0
    %4573 = vmatprep.subr.mxu0 0.0
    %4574 = vmatpush1.msra.mxu0 0.0
    %4575 = vmatprep.subr.mxu0 0.0
    %4576 = vmatpush1.msra.mxu0 0.0
    %4577 = vmatprep.subr.mxu0 0.0
    %4578 = vmatpush1.msra.mxu0 0.0
    %4579 = vmatprep.subr.mxu0 0.0
    %4580 = vmatpush1.msra.mxu0 0.0
    %4581 = vmatprep.mubr.f32.mxu0 0.0
    %4582 = vmatmul.mubr.f32.gmra.mrb[0].mxu0 %v4374
    %v4583 = vpop.f32.mrb[0].mxu0
    %v4584 = vadd.f32 %v4442, %v4583
    %v4585 = vpop.f32.mrb[0].mxu0
    %v4586 = vadd.f32 %v4444, %v4585
    %4587 = vdwg.mxu0
    %4588 = vmatprep.subr.mxu0 %v103
    %4589 = vmatpush1.msra.mxu0 %v102
    %4590 = vmatprep.subr.mxu0 %v107
    %4591 = vmatpush1.msra.mxu0 %v106
    %4592 = vmatprep.subr.mxu0 %v111
    %4593 = vmatpush1.msra.mxu0 %v110
    %4594 = vmatprep.subr.mxu0 %v115
    %4595 = vmatpush1.msra.mxu0 %v114
    %4596 = vmatprep.subr.mxu0 %v119
    %4597 = vmatpush1.msra.mxu0 %v118
    %4598 = vmatprep.subr.mxu0 %v123
    %4599 = vmatpush1.msra.mxu0 %v122
    %4600 = vmatprep.subr.mxu0 %v127
    %4601 = vmatpush1.msra.mxu0 %v126
    %4602 = vmatprep.subr.mxu0 %v131
    %4603 = vmatpush1.msra.mxu0 %v130
    %4604 = vmatprep.subr.mxu0 %v135
    %4605 = vmatpush1.msra.mxu0 %v134
    %4606 = vmatprep.subr.mxu0 %v139
    %4607 = vmatpush1.msra.mxu0 %v138
    %4608 = vmatprep.subr.mxu0 %v143
    %4609 = vmatpush1.msra.mxu0 %v142
    %4610 = vmatprep.subr.mxu0 %v147
    %4611 = vmatpush1.msra.mxu0 %v146
    %4612 = vmatprep.subr.mxu0 %v151
    %4613 = vmatpush1.msra.mxu0 %v150
    %4614 = vmatprep.subr.mxu0 %v155
    %4615 = vmatpush1.msra.mxu0 %v154
    %4616 = vmatprep.subr.mxu0 %v159
    %4617 = vmatpush1.msra.mxu0 %v158
    %4618 = vmatprep.subr.mxu0 %v163
    %4619 = vmatpush1.msra.mxu0 %v162
    %4620 = vmatprep.subr.mxu0 0.0
    %4621 = vmatpush1.msra.mxu0 0.0
    %4622 = vmatprep.subr.mxu0 0.0
    %4623 = vmatpush1.msra.mxu0 0.0
    %4624 = vmatprep.subr.mxu0 0.0
    %4625 = vmatpush1.msra.mxu0 0.0
    %4626 = vmatprep.subr.mxu0 0.0
    %4627 = vmatpush1.msra.mxu0 0.0
    %4628 = vmatprep.subr.mxu0 0.0
    %4629 = vmatpush1.msra.mxu0 0.0
    %4630 = vmatprep.subr.mxu0 0.0
    %4631 = vmatpush1.msra.mxu0 0.0
    %4632 = vmatprep.subr.mxu0 0.0
    %4633 = vmatpush1.msra.mxu0 0.0
    %4634 = vmatprep.subr.mxu0 0.0
    %4635 = vmatpush1.msra.mxu0 0.0
    %4636 = vmatprep.subr.mxu0 0.0
    %4637 = vmatpush1.msra.mxu0 0.0
    %4638 = vmatprep.subr.mxu0 0.0
    %4639 = vmatpush1.msra.mxu0 0.0
    %4640 = vmatprep.subr.mxu0 0.0
    %4641 = vmatpush1.msra.mxu0 0.0
    %4642 = vmatprep.subr.mxu0 0.0
    %4643 = vmatpush1.msra.mxu0 0.0
    %4644 = vmatprep.subr.mxu0 0.0
    %4645 = vmatpush1.msra.mxu0 0.0
    %4646 = vmatprep.subr.mxu0 0.0
    %4647 = vmatpush1.msra.mxu0 0.0
    %4648 = vmatprep.subr.mxu0 0.0
    %4649 = vmatpush1.msra.mxu0 0.0
    %4650 = vmatprep.subr.mxu0 0.0
    %4651 = vmatpush1.msra.mxu0 0.0
    %4652 = vmatprep.mubr.f32.mxu0 0.0
    %4653 = vmatmul.mubr.f32.gmra.mrb[0].mxu0 %v4374
    %v4654 = vpop.f32.mrb[0].mxu0
    %v4655 = vadd.f32 %v4513, %v4654
    %v4656 = vpop.f32.mrb[0].mxu0
    %v4657 = vadd.f32 %v4515, %v4656
    %4658 = vdwg.mxu0
    %v4659 = vadd.f32 %v4584, %v868
    %v4660 = vadd.f32 %v4586, %v872
    %v4661 = vadd.f32 %v4655, %v876
    %v4662 = vadd.f32 %v4657, %v880
    %v4663 = vxor.u32 %v4659, 2147483648
    %v4664 = vmul.f32 %v4663, 1.442695
    %v4665 = vpow.pop %v4664
    %v4666 = vadd.f32 %v4665, 1.0
    %v4667 = vrcp.pop %v4666
    %v4668 = vmul.f32 1.0, %v4667
    %v4669 = vxor.u32 %v4660, 2147483648
    %v4670 = vmul.f32 %v4669, 1.442695
    %v4671 = vpow.pop %v4670
    %v4672 = vadd.f32 %v4671, 1.0
    %v4673 = vrcp.pop %v4672
    %v4674 = vmul.f32 1.0, %v4673
    %v4675 = vtanh.pop %v4661
    %v4676 = vxor.u32 %v4662, 2147483648
    %v4677 = vmul.f32 %v4676, 1.442695
    %v4678 = vpow.pop %v4677
    %v4679 = vadd.f32 %v4678, 1.0
    %v4680 = vrcp.pop %v4679
    %v4681 = vmul.f32 1.0, %v4680
    %v4682 = vmul.f32 %v4674, %v4055
    %v4683 = vmul.f32 %v4668, %v4675
    %v4684 = vadd.f32 %v4682, %v4683
    %v4685 = vtanh.pop %v4684
    %v4686 = vmul.f32 %v4681, %v4685
    %s4687 = scalar_lea.vmem %s0, 14
    %v4688 = vld [vmem:[%s4687] sm:$0x3]
    %4689 = vmatprep.subr.mxu0 %v36
    %4690 = vmatpush1.msra.mxu0 %v35
    %4691 = vmatprep.subr.mxu0 %v40
    %4692 = vmatpush1.msra.mxu0 %v39
    %4693 = vmatprep.subr.mxu0 %v44
    %4694 = vmatpush1.msra.mxu0 %v43
    %4695 = vmatprep.subr.mxu0 %v48
    %4696 = vmatpush1.msra.mxu0 %v47
    %4697 = vmatprep.subr.mxu0 %v52
    %4698 = vmatpush1.msra.mxu0 %v51
    %4699 = vmatprep.subr.mxu0 %v56
    %4700 = vmatpush1.msra.mxu0 %v55
    %4701 = vmatprep.subr.mxu0 %v60
    %4702 = vmatpush1.msra.mxu0 %v59
    %4703 = vmatprep.subr.mxu0 %v64
    %4704 = vmatpush1.msra.mxu0 %v63
    %4705 = vmatprep.subr.mxu0 %v68
    %4706 = vmatpush1.msra.mxu0 %v67
    %4707 = vmatprep.subr.mxu0 %v72
    %4708 = vmatpush1.msra.mxu0 %v71
    %4709 = vmatprep.subr.mxu0 %v76
    %4710 = vmatpush1.msra.mxu0 %v75
    %4711 = vmatprep.subr.mxu0 %v80
    %4712 = vmatpush1.msra.mxu0 %v79
    %4713 = vmatprep.subr.mxu0 %v84
    %4714 = vmatpush1.msra.mxu0 %v83
    %4715 = vmatprep.subr.mxu0 %v88
    %4716 = vmatpush1.msra.mxu0 %v87
    %4717 = vmatprep.subr.mxu0 %v92
    %4718 = vmatpush1.msra.mxu0 %v91
    %4719 = vmatprep.subr.mxu0 %v96
    %4720 = vmatpush1.msra.mxu0 %v95
    %4721 = vmatprep.subr.mxu0 0.0
    %4722 = vmatpush1.msra.mxu0 0.0
    %4723 = vmatprep.subr.mxu0 0.0
    %4724 = vmatpush1.msra.mxu0 0.0
    %4725 = vmatprep.subr.mxu0 0.0
    %4726 = vmatpush1.msra.mxu0 0.0
    %4727 = vmatprep.subr.mxu0 0.0
    %4728 = vmatpush1.msra.mxu0 0.0
    %4729 = vmatprep.subr.mxu0 0.0
    %4730 = vmatpush1.msra.mxu0 0.0
    %4731 = vmatprep.subr.mxu0 0.0
    %4732 = vmatpush1.msra.mxu0 0.0
    %4733 = vmatprep.subr.mxu0 0.0
    %4734 = vmatpush1.msra.mxu0 0.0
    %4735 = vmatprep.subr.mxu0 0.0
    %4736 = vmatpush1.msra.mxu0 0.0
    %4737 = vmatprep.subr.mxu0 0.0
    %4738 = vmatpush1.msra.mxu0 0.0
    %4739 = vmatprep.subr.mxu0 0.0
    %4740 = vmatpush1.msra.mxu0 0.0
    %4741 = vmatprep.subr.mxu0 0.0
    %4742 = vmatpush1.msra.mxu0 0.0
    %4743 = vmatprep.subr.mxu0 0.0
    %4744 = vmatpush1.msra.mxu0 0.0
    %4745 = vmatprep.subr.mxu0 0.0
    %4746 = vmatpush1.msra.mxu0 0.0
    %4747 = vmatprep.subr.mxu0 0.0
    %4748 = vmatpush1.msra.mxu0 0.0
    %4749 = vmatprep.subr.mxu0 0.0
    %4750 = vmatpush1.msra.mxu0 0.0
    %4751 = vmatprep.subr.mxu0 0.0
    %4752 = vmatpush1.msra.mxu0 0.0
    %4753 = vmatprep.mubr.f32.mxu0 0.0
    %4754 = vmatmul.mubr.f32.gmra.mrb[0].mxu0 %v4374
    %v4755 = vpop.f32.mrb[0].mxu0
    %v4756 = vadd.f32 0.0, %v4755
    %v4757 = vpop.f32.mrb[0].mxu0
    %v4758 = vadd.f32 0.0, %v4757
    %4759 = vdwg.mxu0
    %4760 = vmatprep.subr.mxu0 %v38
    %4761 = vmatpush1.msra.mxu0 %v37
    %4762 = vmatprep.subr.mxu0 %v42
    %4763 = vmatpush1.msra.mxu0 %v41
    %4764 = vmatprep.subr.mxu0 %v46
    %4765 = vmatpush1.msra.mxu0 %v45
    %4766 = vmatprep.subr.mxu0 %v50
    %4767 = vmatpush1.msra.mxu0 %v49
    %4768 = vmatprep.subr.mxu0 %v54
    %4769 = vmatpush1.msra.mxu0 %v53
    %4770 = vmatprep.subr.mxu0 %v58
    %4771 = vmatpush1.msra.mxu0 %v57
    %4772 = vmatprep.subr.mxu0 %v62
    %4773 = vmatpush1.msra.mxu0 %v61
    %4774 = vmatprep.subr.mxu0 %v66
    %4775 = vmatpush1.msra.mxu0 %v65
    %4776 = vmatprep.subr.mxu0 %v70
    %4777 = vmatpush1.msra.mxu0 %v69
    %4778 = vmatprep.subr.mxu0 %v74
    %4779 = vmatpush1.msra.mxu0 %v73
    %4780 = vmatprep.subr.mxu0 %v78
    %4781 = vmatpush1.msra.mxu0 %v77
    %4782 = vmatprep.subr.mxu0 %v82
    %4783 = vmatpush1.msra.mxu0 %v81
    %4784 = vmatprep.subr.mxu0 %v86
    %4785 = vmatpush1.msra.mxu0 %v85
    %4786 = vmatprep.subr.mxu0 %v90
    %4787 = vmatpush1.msra.mxu0 %v89
    %4788 = vmatprep.subr.mxu0 %v94
    %4789 = vmatpush1.msra.mxu0 %v93
    %4790 = vmatprep.subr.mxu0 %v98
    %4791 = vmatpush1.msra.mxu0 %v97
    %4792 = vmatprep.subr.mxu0 0.0
    %4793 = vmatpush1.msra.mxu0 0.0
    %4794 = vmatprep.subr.mxu0 0.0
    %4795 = vmatpush1.msra.mxu0 0.0
    %4796 = vmatprep.subr.mxu0 0.0
    %4797 = vmatpush1.msra.mxu0 0.0
    %4798 = vmatprep.subr.mxu0 0.0
    %4799 = vmatpush1.msra.mxu0 0.0
    %4800 = vmatprep.subr.mxu0 0.0
    %4801 = vmatpush1.msra.mxu0 0.0
    %4802 = vmatprep.subr.mxu0 0.0
    %4803 = vmatpush1.msra.mxu0 0.0
    %4804 = vmatprep.subr.mxu0 0.0
    %4805 = vmatpush1.msra.mxu0 0.0
    %4806 = vmatprep.subr.mxu0 0.0
    %4807 = vmatpush1.msra.mxu0 0.0
    %4808 = vmatprep.subr.mxu0 0.0
    %4809 = vmatpush1.msra.mxu0 0.0
    %4810 = vmatprep.subr.mxu0 0.0
    %4811 = vmatpush1.msra.mxu0 0.0
    %4812 = vmatprep.subr.mxu0 0.0
    %4813 = vmatpush1.msra.mxu0 0.0
    %4814 = vmatprep.subr.mxu0 0.0
    %4815 = vmatpush1.msra.mxu0 0.0
    %4816 = vmatprep.subr.mxu0 0.0
    %4817 = vmatpush1.msra.mxu0 0.0
    %4818 = vmatprep.subr.mxu0 0.0
    %4819 = vmatpush1.msra.mxu0 0.0
    %4820 = vmatprep.subr.mxu0 0.0
    %4821 = vmatpush1.msra.mxu0 0.0
    %4822 = vmatprep.subr.mxu0 0.0
    %4823 = vmatpush1.msra.mxu0 0.0
    %4824 = vmatprep.mubr.f32.mxu0 0.0
    %4825 = vmatmul.mubr.f32.gmra.mrb[0].mxu0 %v4374
    %v4826 = vpop.f32.mrb[0].mxu0
    %v4827 = vadd.f32 0.0, %v4826
    %v4828 = vpop.f32.mrb[0].mxu0
    %v4829 = vadd.f32 0.0, %v4828
    %4830 = vdwg.mxu0
    %v4832 = vsel %vm376, %v4688, 0
    %4834 = vmatprep.subr.mxu0 %v383
    %4835 = vmatpush1.msra.mxu0 %v381
    %4836 = vmatprep.subr.mxu0 0.0
    %4837 = vmatpush1.msra.mxu0 0.0
    %4838 = vmatprep.subr.mxu0 0.0
    %4839 = vmatpush1.msra.mxu0 0.0
    %4840 = vmatprep.subr.mxu0 0.0
    %4841 = vmatpush1.msra.mxu0 0.0
    %4842 = vmatprep.subr.mxu0 0.0
    %4843 = vmatpush1.msra.mxu0 0.0
    %4844 = vmatprep.subr.mxu0 0.0
    %4845 = vmatpush1.msra.mxu0 0.0
    %4846 = vmatprep.subr.mxu0 0.0
    %4847 = vmatpush1.msra.mxu0 0.0
    %4848 = vmatprep.subr.mxu0 0.0
    %4849 = vmatpush1.msra.mxu0 0.0
    %4850 = vmatprep.subr.mxu0 0.0
    %4851 = vmatpush1.msra.mxu0 0.0
    %4852 = vmatprep.subr.mxu0 0.0
    %4853 = vmatpush1.msra.mxu0 0.0
    %4854 = vmatprep.subr.mxu0 0.0
    %4855 = vmatpush1.msra.mxu0 0.0
    %4856 = vmatprep.subr.mxu0 0.0
    %4857 = vmatpush1.msra.mxu0 0.0
    %4858 = vmatprep.subr.mxu0 0.0
    %4859 = vmatpush1.msra.mxu0 0.0
    %4860 = vmatprep.subr.mxu0 0.0
    %4861 = vmatpush1.msra.mxu0 0.0
    %4862 = vmatprep.subr.mxu0 0.0
    %4863 = vmatpush1.msra.mxu0 0.0
    %4864 = vmatprep.subr.mxu0 0.0
    %4865 = vmatpush1.msra.mxu0 0.0
    %4866 = vmatprep.subr.mxu0 0.0
    %4867 = vmatpush1.msra.mxu0 0.0
    %4868 = vmatprep.subr.mxu0 0.0
    %4869 = vmatpush1.msra.mxu0 0.0
    %4870 = vmatprep.subr.mxu0 0.0
    %4871 = vmatpush1.msra.mxu0 0.0
    %4872 = vmatprep.subr.mxu0 0.0
    %4873 = vmatpush1.msra.mxu0 0.0
    %4874 = vmatprep.subr.mxu0 0.0
    %4875 = vmatpush1.msra.mxu0 0.0
    %4876 = vmatprep.subr.mxu0 0.0
    %4877 = vmatpush1.msra.mxu0 0.0
    %4878 = vmatprep.subr.mxu0 0.0
    %4879 = vmatpush1.msra.mxu0 0.0
    %4880 = vmatprep.subr.mxu0 0.0
    %4881 = vmatpush1.msra.mxu0 0.0
    %4882 = vmatprep.subr.mxu0 0.0
    %4883 = vmatpush1.msra.mxu0 0.0
    %4884 = vmatprep.subr.mxu0 0.0
    %4885 = vmatpush1.msra.mxu0 0.0
    %4886 = vmatprep.subr.mxu0 0.0
    %4887 = vmatpush1.msra.mxu0 0.0
    %4888 = vmatprep.subr.mxu0 0.0
    %4889 = vmatpush1.msra.mxu0 0.0
    %4890 = vmatprep.subr.mxu0 0.0
    %4891 = vmatpush1.msra.mxu0 0.0
    %4892 = vmatprep.subr.mxu0 0.0
    %4893 = vmatpush1.msra.mxu0 0.0
    %4894 = vmatprep.subr.mxu0 0.0
    %4895 = vmatpush1.msra.mxu0 0.0
    %4896 = vmatprep.subr.mxu0 0.0
    %4897 = vmatpush1.msra.mxu0 0.0
    %4898 = vmatprep.mubr.f32.mxu0 0.0
    %4899 = vmatmul.mubr.f32.gmra.mrb[0].mxu0 %v4832
    %v4900 = vpop.f32.mrb[0].mxu0
    %v4901 = vadd.f32 %v4756, %v4900
    %v4902 = vpop.f32.mrb[0].mxu0
    %v4903 = vadd.f32 %v4758, %v4902
    %4904 = vdwg.mxu0
    %4905 = vmatprep.subr.mxu0 %v387
    %4906 = vmatpush1.msra.mxu0 %v385
    %4907 = vmatprep.subr.mxu0 0.0
    %4908 = vmatpush1.msra.mxu0 0.0
    %4909 = vmatprep.subr.mxu0 0.0
    %4910 = vmatpush1.msra.mxu0 0.0
    %4911 = vmatprep.subr.mxu0 0.0
    %4912 = vmatpush1.msra.mxu0 0.0
    %4913 = vmatprep.subr.mxu0 0.0
    %4914 = vmatpush1.msra.mxu0 0.0
    %4915 = vmatprep.subr.mxu0 0.0
    %4916 = vmatpush1.msra.mxu0 0.0
    %4917 = vmatprep.subr.mxu0 0.0
    %4918 = vmatpush1.msra.mxu0 0.0
    %4919 = vmatprep.subr.mxu0 0.0
    %4920 = vmatpush1.msra.mxu0 0.0
    %4921 = vmatprep.subr.mxu0 0.0
    %4922 = vmatpush1.msra.mxu0 0.0
    %4923 = vmatprep.subr.mxu0 0.0
    %4924 = vmatpush1.msra.mxu0 0.0
    %4925 = vmatprep.subr.mxu0 0.0
    %4926 = vmatpush1.msra.mxu0 0.0
    %4927 = vmatprep.subr.mxu0 0.0
    %4928 = vmatpush1.msra.mxu0 0.0
    %4929 = vmatprep.subr.mxu0 0.0
    %4930 = vmatpush1.msra.mxu0 0.0
    %4931 = vmatprep.subr.mxu0 0.0
    %4932 = vmatpush1.msra.mxu0 0.0
    %4933 = vmatprep.subr.mxu0 0.0
    %4934 = vmatpush1.msra.mxu0 0.0
    %4935 = vmatprep.subr.mxu0 0.0
    %4936 = vmatpush1.msra.mxu0 0.0
    %4937 = vmatprep.subr.mxu0 0.0
    %4938 = vmatpush1.msra.mxu0 0.0
    %4939 = vmatprep.subr.mxu0 0.0
    %4940 = vmatpush1.msra.mxu0 0.0
    %4941 = vmatprep.subr.mxu0 0.0
    %4942 = vmatpush1.msra.mxu0 0.0
    %4943 = vmatprep.subr.mxu0 0.0
    %4944 = vmatpush1.msra.mxu0 0.0
    %4945 = vmatprep.subr.mxu0 0.0
    %4946 = vmatpush1.msra.mxu0 0.0
    %4947 = vmatprep.subr.mxu0 0.0
    %4948 = vmatpush1.msra.mxu0 0.0
    %4949 = vmatprep.subr.mxu0 0.0
    %4950 = vmatpush1.msra.mxu0 0.0
    %4951 = vmatprep.subr.mxu0 0.0
    %4952 = vmatpush1.msra.mxu0 0.0
    %4953 = vmatprep.subr.mxu0 0.0
    %4954 = vmatpush1.msra.mxu0 0.0
    %4955 = vmatprep.subr.mxu0 0.0
    %4956 = vmatpush1.msra.mxu0 0.0
    %4957 = vmatprep.subr.mxu0 0.0
    %4958 = vmatpush1.msra.mxu0 0.0
    %4959 = vmatprep.subr.mxu0 0.0
    %4960 = vmatpush1.msra.mxu0 0.0
    %4961 = vmatprep.subr.mxu0 0.0
    %4962 = vmatpush1.msra.mxu0 0.0
    %4963 = vmatprep.subr.mxu0 0.0
    %4964 = vmatpush1.msra.mxu0 0.0
    %4965 = vmatprep.subr.mxu0 0.0
    %4966 = vmatpush1.msra.mxu0 0.0
    %4967 = vmatprep.subr.mxu0 0.0
    %4968 = vmatpush1.msra.mxu0 0.0
    %4969 = vmatprep.mubr.f32.mxu0 0.0
    %4970 = vmatmul.mubr.f32.gmra.mrb[0].mxu0 %v4832
    %v4971 = vpop.f32.mrb[0].mxu0
    %v4972 = vadd.f32 %v4827, %v4971
    %v4973 = vpop.f32.mrb[0].mxu0
    %v4974 = vadd.f32 %v4829, %v4973
    %4975 = vdwg.mxu0
    %v4976 = vadd.f32 %v4901, %v535
    %v4977 = vadd.f32 %v4903, %v539
    %v4978 = vadd.f32 %v4972, %v543
    %v4979 = vadd.f32 %v4974, %v547
    %v4980 = vxor.u32 %v4976, 2147483648
    %v4981 = vmul.f32 %v4980, 1.442695
    %v4982 = vpow.pop %v4981
    %v4983 = vadd.f32 %v4982, 1.0
    %v4984 = vrcp.pop %v4983
    %v4985 = vmul.f32 1.0, %v4984
    %v4986 = vxor.u32 %v4977, 2147483648
    %v4987 = vmul.f32 %v4986, 1.442695
    %v4988 = vpow.pop %v4987
    %v4989 = vadd.f32 %v4988, 1.0
    %v4990 = vrcp.pop %v4989
    %v4991 = vmul.f32 1.0, %v4990
    %v4992 = vtanh.pop %v4978
    %v4993 = vxor.u32 %v4979, 2147483648
    %v4994 = vmul.f32 %v4993, 1.442695
    %v4995 = vpow.pop %v4994
    %v4996 = vadd.f32 %v4995, 1.0
    %v4997 = vrcp.pop %v4996
    %v4998 = vmul.f32 1.0, %v4997
    %v4999 = vmul.f32 %v4991, %v4372
    %v5000 = vmul.f32 %v4985, %v4992
    %v5001 = vadd.f32 %v4999, %v5000
    %v5002 = vtanh.pop %v5001
    %v5003 = vmul.f32 %v4998, %v5002
    %5004 = vmatprep.subr.mxu0 %v165
    %5005 = vmatpush1.msra.mxu0 %v164
    %5006 = vmatprep.subr.mxu0 %v169
    %5007 = vmatpush1.msra.mxu0 %v168
    %5008 = vmatprep.subr.mxu0 %v173
    %5009 = vmatpush1.msra.mxu0 %v172
    %5010 = vmatprep.subr.mxu0 %v177
    %5011 = vmatpush1.msra.mxu0 %v176
    %5012 = vmatprep.subr.mxu0 %v181
    %5013 = vmatpush1.msra.mxu0 %v180
    %5014 = vmatprep.subr.mxu0 %v185
    %5015 = vmatpush1.msra.mxu0 %v184
    %5016 = vmatprep.subr.mxu0 %v189
    %5017 = vmatpush1.msra.mxu0 %v188
    %5018 = vmatprep.subr.mxu0 %v193
    %5019 = vmatpush1.msra.mxu0 %v192
    %5020 = vmatprep.subr.mxu0 %v197
    %5021 = vmatpush1.msra.mxu0 %v196
    %5022 = vmatprep.subr.mxu0 %v201
    %5023 = vmatpush1.msra.mxu0 %v200
    %5024 = vmatprep.subr.mxu0 %v205
    %5025 = vmatpush1.msra.mxu0 %v204
    %5026 = vmatprep.subr.mxu0 %v209
    %5027 = vmatpush1.msra.mxu0 %v208
    %5028 = vmatprep.subr.mxu0 %v213
    %5029 = vmatpush1.msra.mxu0 %v212
    %5030 = vmatprep.subr.mxu0 %v217
    %5031 = vmatpush1.msra.mxu0 %v216
    %5032 = vmatprep.subr.mxu0 %v221
    %5033 = vmatpush1.msra.mxu0 %v220
    %5034 = vmatprep.subr.mxu0 %v225
    %5035 = vmatpush1.msra.mxu0 %v224
    %5036 = vmatprep.subr.mxu0 0.0
    %5037 = vmatpush1.msra.mxu0 0.0
    %5038 = vmatprep.subr.mxu0 0.0
    %5039 = vmatpush1.msra.mxu0 0.0
    %5040 = vmatprep.subr.mxu0 0.0
    %5041 = vmatpush1.msra.mxu0 0.0
    %5042 = vmatprep.subr.mxu0 0.0
    %5043 = vmatpush1.msra.mxu0 0.0
    %5044 = vmatprep.subr.mxu0 0.0
    %5045 = vmatpush1.msra.mxu0 0.0
    %5046 = vmatprep.subr.mxu0 0.0
    %5047 = vmatpush1.msra.mxu0 0.0
    %5048 = vmatprep.subr.mxu0 0.0
    %5049 = vmatpush1.msra.mxu0 0.0
    %5050 = vmatprep.subr.mxu0 0.0
    %5051 = vmatpush1.msra.mxu0 0.0
    %5052 = vmatprep.subr.mxu0 0.0
    %5053 = vmatpush1.msra.mxu0 0.0
    %5054 = vmatprep.subr.mxu0 0.0
    %5055 = vmatpush1.msra.mxu0 0.0
    %5056 = vmatprep.subr.mxu0 0.0
    %5057 = vmatpush1.msra.mxu0 0.0
    %5058 = vmatprep.subr.mxu0 0.0
    %5059 = vmatpush1.msra.mxu0 0.0
    %5060 = vmatprep.subr.mxu0 0.0
    %5061 = vmatpush1.msra.mxu0 0.0
    %5062 = vmatprep.subr.mxu0 0.0
    %5063 = vmatpush1.msra.mxu0 0.0
    %5064 = vmatprep.subr.mxu0 0.0
    %5065 = vmatpush1.msra.mxu0 0.0
    %5066 = vmatprep.subr.mxu0 0.0
    %5067 = vmatpush1.msra.mxu0 0.0
    %5068 = vmatprep.mubr.f32.mxu0 0.0
    %5069 = vmatmul.mubr.f32.gmra.mrb[0].mxu0 %v4686
    %v5070 = vpop.f32.mrb[0].mxu0
    %v5071 = vadd.f32 0.0, %v5070
    %v5072 = vpop.f32.mrb[0].mxu0
    %v5073 = vadd.f32 0.0, %v5072
    %5074 = vdwg.mxu0
    %5075 = vmatprep.subr.mxu0 %v167
    %5076 = vmatpush1.msra.mxu0 %v166
    %5077 = vmatprep.subr.mxu0 %v171
    %5078 = vmatpush1.msra.mxu0 %v170
    %5079 = vmatprep.subr.mxu0 %v175
    %5080 = vmatpush1.msra.mxu0 %v174
    %5081 = vmatprep.subr.mxu0 %v179
    %5082 = vmatpush1.msra.mxu0 %v178
    %5083 = vmatprep.subr.mxu0 %v183
    %5084 = vmatpush1.msra.mxu0 %v182
    %5085 = vmatprep.subr.mxu0 %v187
    %5086 = vmatpush1.msra.mxu0 %v186
    %5087 = vmatprep.subr.mxu0 %v191
    %5088 = vmatpush1.msra.mxu0 %v190
    %5089 = vmatprep.subr.mxu0 %v195
    %5090 = vmatpush1.msra.mxu0 %v194
    %5091 = vmatprep.subr.mxu0 %v199
    %5092 = vmatpush1.msra.mxu0 %v198
    %5093 = vmatprep.subr.mxu0 %v203
    %5094 = vmatpush1.msra.mxu0 %v202
    %5095 = vmatprep.subr.mxu0 %v207
    %5096 = vmatpush1.msra.mxu0 %v206
    %5097 = vmatprep.subr.mxu0 %v211
    %5098 = vmatpush1.msra.mxu0 %v210
    %5099 = vmatprep.subr.mxu0 %v215
    %5100 = vmatpush1.msra.mxu0 %v214
    %5101 = vmatprep.subr.mxu0 %v219
    %5102 = vmatpush1.msra.mxu0 %v218
    %5103 = vmatprep.subr.mxu0 %v223
    %5104 = vmatpush1.msra.mxu0 %v222
    %5105 = vmatprep.subr.mxu0 %v227
    %5106 = vmatpush1.msra.mxu0 %v226
    %5107 = vmatprep.subr.mxu0 0.0
    %5108 = vmatpush1.msra.mxu0 0.0
    %5109 = vmatprep.subr.mxu0 0.0
    %5110 = vmatpush1.msra.mxu0 0.0
    %5111 = vmatprep.subr.mxu0 0.0
    %5112 = vmatpush1.msra.mxu0 0.0
    %5113 = vmatprep.subr.mxu0 0.0
    %5114 = vmatpush1.msra.mxu0 0.0
    %5115 = vmatprep.subr.mxu0 0.0
    %5116 = vmatpush1.msra.mxu0 0.0
    %5117 = vmatprep.subr.mxu0 0.0
    %5118 = vmatpush1.msra.mxu0 0.0
    %5119 = vmatprep.subr.mxu0 0.0
    %5120 = vmatpush1.msra.mxu0 0.0
    %5121 = vmatprep.subr.mxu0 0.0
    %5122 = vmatpush1.msra.mxu0 0.0
    %5123 = vmatprep.subr.mxu0 0.0
    %5124 = vmatpush1.msra.mxu0 0.0
    %5125 = vmatprep.subr.mxu0 0.0
    %5126 = vmatpush1.msra.mxu0 0.0
    %5127 = vmatprep.subr.mxu0 0.0
    %5128 = vmatpush1.msra.mxu0 0.0
    %5129 = vmatprep.subr.mxu0 0.0
    %5130 = vmatpush1.msra.mxu0 0.0
    %5131 = vmatprep.subr.mxu0 0.0
    %5132 = vmatpush1.msra.mxu0 0.0
    %5133 = vmatprep.subr.mxu0 0.0
    %5134 = vmatpush1.msra.mxu0 0.0
    %5135 = vmatprep.subr.mxu0 0.0
    %5136 = vmatpush1.msra.mxu0 0.0
    %5137 = vmatprep.subr.mxu0 0.0
    %5138 = vmatpush1.msra.mxu0 0.0
    %5139 = vmatprep.mubr.f32.mxu0 0.0
    %5140 = vmatmul.mubr.f32.gmra.mrb[0].mxu0 %v4686
    %v5141 = vpop.f32.mrb[0].mxu0
    %v5142 = vadd.f32 0.0, %v5141
    %v5143 = vpop.f32.mrb[0].mxu0
    %v5144 = vadd.f32 0.0, %v5143
    %5145 = vdwg.mxu0
    %5146 = vmatprep.subr.mxu0 %v101
    %5147 = vmatpush1.msra.mxu0 %v100
    %5148 = vmatprep.subr.mxu0 %v105
    %5149 = vmatpush1.msra.mxu0 %v104
    %5150 = vmatprep.subr.mxu0 %v109
    %5151 = vmatpush1.msra.mxu0 %v108
    %5152 = vmatprep.subr.mxu0 %v113
    %5153 = vmatpush1.msra.mxu0 %v112
    %5154 = vmatprep.subr.mxu0 %v117
    %5155 = vmatpush1.msra.mxu0 %v116
    %5156 = vmatprep.subr.mxu0 %v121
    %5157 = vmatpush1.msra.mxu0 %v120
    %5158 = vmatprep.subr.mxu0 %v125
    %5159 = vmatpush1.msra.mxu0 %v124
    %5160 = vmatprep.subr.mxu0 %v129
    %5161 = vmatpush1.msra.mxu0 %v128
    %5162 = vmatprep.subr.mxu0 %v133
    %5163 = vmatpush1.msra.mxu0 %v132
    %5164 = vmatprep.subr.mxu0 %v137
    %5165 = vmatpush1.msra.mxu0 %v136
    %5166 = vmatprep.subr.mxu0 %v141
    %5167 = vmatpush1.msra.mxu0 %v140
    %5168 = vmatprep.subr.mxu0 %v145
    %5169 = vmatpush1.msra.mxu0 %v144
    %5170 = vmatprep.subr.mxu0 %v149
    %5171 = vmatpush1.msra.mxu0 %v148
    %5172 = vmatprep.subr.mxu0 %v153
    %5173 = vmatpush1.msra.mxu0 %v152
    %5174 = vmatprep.subr.mxu0 %v157
    %5175 = vmatpush1.msra.mxu0 %v156
    %5176 = vmatprep.subr.mxu0 %v161
    %5177 = vmatpush1.msra.mxu0 %v160
    %5178 = vmatprep.subr.mxu0 0.0
    %5179 = vmatpush1.msra.mxu0 0.0
    %5180 = vmatprep.subr.mxu0 0.0
    %5181 = vmatpush1.msra.mxu0 0.0
    %5182 = vmatprep.subr.mxu0 0.0
    %5183 = vmatpush1.msra.mxu0 0.0
    %5184 = vmatprep.subr.mxu0 0.0
    %5185 = vmatpush1.msra.mxu0 0.0
    %5186 = vmatprep.subr.mxu0 0.0
    %5187 = vmatpush1.msra.mxu0 0.0
    %5188 = vmatprep.subr.mxu0 0.0
    %5189 = vmatpush1.msra.mxu0 0.0
    %5190 = vmatprep.subr.mxu0 0.0
    %5191 = vmatpush1.msra.mxu0 0.0
    %5192 = vmatprep.subr.mxu0 0.0
    %5193 = vmatpush1.msra.mxu0 0.0
    %5194 = vmatprep.subr.mxu0 0.0
    %5195 = vmatpush1.msra.mxu0 0.0
    %5196 = vmatprep.subr.mxu0 0.0
    %5197 = vmatpush1.msra.mxu0 0.0
    %5198 = vmatprep.subr.mxu0 0.0
    %5199 = vmatpush1.msra.mxu0 0.0
    %5200 = vmatprep.subr.mxu0 0.0
    %5201 = vmatpush1.msra.mxu0 0.0
    %5202 = vmatprep.subr.mxu0 0.0
    %5203 = vmatpush1.msra.mxu0 0.0
    %5204 = vmatprep.subr.mxu0 0.0
    %5205 = vmatpush1.msra.mxu0 0.0
    %5206 = vmatprep.subr.mxu0 0.0
    %5207 = vmatpush1.msra.mxu0 0.0
    %5208 = vmatprep.subr.mxu0 0.0
    %5209 = vmatpush1.msra.mxu0 0.0
    %5210 = vmatprep.mubr.f32.mxu0 0.0
    %5211 = vmatmul.mubr.f32.gmra.mrb[0].mxu0 %v5003
    %v5212 = vpop.f32.mrb[0].mxu0
    %v5213 = vadd.f32 %v5071, %v5212
    %v5214 = vpop.f32.mrb[0].mxu0
    %v5215 = vadd.f32 %v5073, %v5214
    %5216 = vdwg.mxu0
    %5217 = vmatprep.subr.mxu0 %v103
    %5218 = vmatpush1.msra.mxu0 %v102
    %5219 = vmatprep.subr.mxu0 %v107
    %5220 = vmatpush1.msra.mxu0 %v106
    %5221 = vmatprep.subr.mxu0 %v111
    %5222 = vmatpush1.msra.mxu0 %v110
    %5223 = vmatprep.subr.mxu0 %v115
    %5224 = vmatpush1.msra.mxu0 %v114
    %5225 = vmatprep.subr.mxu0 %v119
    %5226 = vmatpush1.msra.mxu0 %v118
    %5227 = vmatprep.subr.mxu0 %v123
    %5228 = vmatpush1.msra.mxu0 %v122
    %5229 = vmatprep.subr.mxu0 %v127
    %5230 = vmatpush1.msra.mxu0 %v126
    %5231 = vmatprep.subr.mxu0 %v131
    %5232 = vmatpush1.msra.mxu0 %v130
    %5233 = vmatprep.subr.mxu0 %v135
    %5234 = vmatpush1.msra.mxu0 %v134
    %5235 = vmatprep.subr.mxu0 %v139
    %5236 = vmatpush1.msra.mxu0 %v138
    %5237 = vmatprep.subr.mxu0 %v143
    %5238 = vmatpush1.msra.mxu0 %v142
    %5239 = vmatprep.subr.mxu0 %v147
    %5240 = vmatpush1.msra.mxu0 %v146
    %5241 = vmatprep.subr.mxu0 %v151
    %5242 = vmatpush1.msra.mxu0 %v150
    %5243 = vmatprep.subr.mxu0 %v155
    %5244 = vmatpush1.msra.mxu0 %v154
    %5245 = vmatprep.subr.mxu0 %v159
    %5246 = vmatpush1.msra.mxu0 %v158
    %5247 = vmatprep.subr.mxu0 %v163
    %5248 = vmatpush1.msra.mxu0 %v162
    %5249 = vmatprep.subr.mxu0 0.0
    %5250 = vmatpush1.msra.mxu0 0.0
    %5251 = vmatprep.subr.mxu0 0.0
    %5252 = vmatpush1.msra.mxu0 0.0
    %5253 = vmatprep.subr.mxu0 0.0
    %5254 = vmatpush1.msra.mxu0 0.0
    %5255 = vmatprep.subr.mxu0 0.0
    %5256 = vmatpush1.msra.mxu0 0.0
    %5257 = vmatprep.subr.mxu0 0.0
    %5258 = vmatpush1.msra.mxu0 0.0
    %5259 = vmatprep.subr.mxu0 0.0
    %5260 = vmatpush1.msra.mxu0 0.0
    %5261 = vmatprep.subr.mxu0 0.0
    %5262 = vmatpush1.msra.mxu0 0.0
    %5263 = vmatprep.subr.mxu0 0.0
    %5264 = vmatpush1.msra.mxu0 0.0
    %5265 = vmatprep.subr.mxu0 0.0
    %5266 = vmatpush1.msra.mxu0 0.0
    %5267 = vmatprep.subr.mxu0 0.0
    %5268 = vmatpush1.msra.mxu0 0.0
    %5269 = vmatprep.subr.mxu0 0.0
    %5270 = vmatpush1.msra.mxu0 0.0
    %5271 = vmatprep.subr.mxu0 0.0
    %5272 = vmatpush1.msra.mxu0 0.0
    %5273 = vmatprep.subr.mxu0 0.0
    %5274 = vmatpush1.msra.mxu0 0.0
    %5275 = vmatprep.subr.mxu0 0.0
    %5276 = vmatpush1.msra.mxu0 0.0
    %5277 = vmatprep.subr.mxu0 0.0
    %5278 = vmatpush1.msra.mxu0 0.0
    %5279 = vmatprep.subr.mxu0 0.0
    %5280 = vmatpush1.msra.mxu0 0.0
    %5281 = vmatprep.mubr.f32.mxu0 0.0
    %5282 = vmatmul.mubr.f32.gmra.mrb[0].mxu0 %v5003
    %v5283 = vpop.f32.mrb[0].mxu0
    %v5284 = vadd.f32 %v5142, %v5283
    %v5285 = vpop.f32.mrb[0].mxu0
    %v5286 = vadd.f32 %v5144, %v5285
    %5287 = vdwg.mxu0
    %v5288 = vadd.f32 %v5213, %v868
    %v5289 = vadd.f32 %v5215, %v872
    %v5290 = vadd.f32 %v5284, %v876
    %v5291 = vadd.f32 %v5286, %v880
    %v5292 = vxor.u32 %v5288, 2147483648
    %v5293 = vmul.f32 %v5292, 1.442695
    %v5294 = vpow.pop %v5293
    %v5295 = vadd.f32 %v5294, 1.0
    %v5296 = vrcp.pop %v5295
    %v5297 = vmul.f32 1.0, %v5296
    %v5298 = vxor.u32 %v5289, 2147483648
    %v5299 = vmul.f32 %v5298, 1.442695
    %v5300 = vpow.pop %v5299
    %v5301 = vadd.f32 %v5300, 1.0
    %v5302 = vrcp.pop %v5301
    %v5303 = vmul.f32 1.0, %v5302
    %v5304 = vtanh.pop %v5290
    %v5305 = vxor.u32 %v5291, 2147483648
    %v5306 = vmul.f32 %v5305, 1.442695
    %v5307 = vpow.pop %v5306
    %v5308 = vadd.f32 %v5307, 1.0
    %v5309 = vrcp.pop %v5308
    %v5310 = vmul.f32 1.0, %v5309
    %v5311 = vmul.f32 %v5303, %v4684
    %v5312 = vmul.f32 %v5297, %v5304
    %v5313 = vadd.f32 %v5311, %v5312
    %v5314 = vtanh.pop %v5313
    %v5315 = vmul.f32 %v5310, %v5314
    %v5316 = vld [vmem:[%s7] sm:$0xff]
    %v5317 = vld [vmem:[%s7 + $0x8] sm:$0xff]
    %v5318 = vld [vmem:[%s7 + $0x10] sm:$0xff]
    %v5319 = vld [vmem:[%s7 + $0x18] sm:$0xff]
    %v5320 = vld [vmem:[%s7 + $0x20] sm:$0xff]
    %v5321 = vld [vmem:[%s7 + $0x28] sm:$0xff]
    %v5322 = vld [vmem:[%s7 + $0x30] sm:$0xff]
    %v5323 = vld [vmem:[%s7 + $0x38] sm:$0xff]
    %v5324 = vld [vmem:[%s7 + $0x40] sm:$0xff]
    %v5325 = vld [vmem:[%s7 + $0x48] sm:$0xff]
    %v5326 = vld [vmem:[%s7 + $0x50] sm:$0xff]
    %v5327 = vld [vmem:[%s7 + $0x58] sm:$0xff]
    %v5328 = vld [vmem:[%s7 + $0x60] sm:$0xff]
    %v5329 = vld [vmem:[%s7 + $0x68] sm:$0xff]
    %v5330 = vld [vmem:[%s7 + $0x70] sm:$0xff]
    %v5331 = vld [vmem:[%s7 + $0x78] sm:$0xff]
    %v5332 = vld [vmem:[%s8] sm:$0x1]
    %v5334 = vlaneseq
    %v5335 = vshrl.u32 %v5334, 7
    %v5336 = vsub.s32 0, %v5335
    %v5337 = vrot.slane %v5332, %v5336
    %5339 = vmatprep.subr.mxu0 0.0
    %5340 = vmatpush1.msra.mxu0 %v5316
    %5341 = vmatprep.subr.mxu0 0.0
    %5342 = vmatpush1.msra.mxu0 %v5317
    %5343 = vmatprep.subr.mxu0 0.0
    %5344 = vmatpush1.msra.mxu0 %v5318
    %5345 = vmatprep.subr.mxu0 0.0
    %5346 = vmatpush1.msra.mxu0 %v5319
    %5347 = vmatprep.subr.mxu0 0.0
    %5348 = vmatpush1.msra.mxu0 %v5320
    %5349 = vmatprep.subr.mxu0 0.0
    %5350 = vmatpush1.msra.mxu0 %v5321
    %5351 = vmatprep.subr.mxu0 0.0
    %5352 = vmatpush1.msra.mxu0 %v5322
    %5353 = vmatprep.subr.mxu0 0.0
    %5354 = vmatpush1.msra.mxu0 %v5323
    %5355 = vmatprep.subr.mxu0 0.0
    %5356 = vmatpush1.msra.mxu0 %v5324
    %5357 = vmatprep.subr.mxu0 0.0
    %5358 = vmatpush1.msra.mxu0 %v5325
    %5359 = vmatprep.subr.mxu0 0.0
    %5360 = vmatpush1.msra.mxu0 %v5326
    %5361 = vmatprep.subr.mxu0 0.0
    %5362 = vmatpush1.msra.mxu0 %v5327
    %5363 = vmatprep.subr.mxu0 0.0
    %5364 = vmatpush1.msra.mxu0 %v5328
    %5365 = vmatprep.subr.mxu0 0.0
    %5366 = vmatpush1.msra.mxu0 %v5329
    %5367 = vmatprep.subr.mxu0 0.0
    %5368 = vmatpush1.msra.mxu0 %v5330
    %5369 = vmatprep.subr.mxu0 0.0
    %5370 = vmatpush1.msra.mxu0 %v5331
    %5371 = vmatprep.subr.mxu0 0.0
    %5372 = vmatpush1.msra.mxu0 0.0
    %5373 = vmatprep.subr.mxu0 0.0
    %5374 = vmatpush1.msra.mxu0 0.0
    %5375 = vmatprep.subr.mxu0 0.0
    %5376 = vmatpush1.msra.mxu0 0.0
    %5377 = vmatprep.subr.mxu0 0.0
    %5378 = vmatpush1.msra.mxu0 0.0
    %5379 = vmatprep.subr.mxu0 0.0
    %5380 = vmatpush1.msra.mxu0 0.0
    %5381 = vmatprep.subr.mxu0 0.0
    %5382 = vmatpush1.msra.mxu0 0.0
    %5383 = vmatprep.subr.mxu0 0.0
    %5384 = vmatpush1.msra.mxu0 0.0
    %5385 = vmatprep.subr.mxu0 0.0
    %5386 = vmatpush1.msra.mxu0 0.0
    %5387 = vmatprep.subr.mxu0 0.0
    %5388 = vmatpush1.msra.mxu0 0.0
    %5389 = vmatprep.subr.mxu0 0.0
    %5390 = vmatpush1.msra.mxu0 0.0
    %5391 = vmatprep.subr.mxu0 0.0
    %5392 = vmatpush1.msra.mxu0 0.0
    %5393 = vmatprep.subr.mxu0 0.0
    %5394 = vmatpush1.msra.mxu0 0.0
    %5395 = vmatprep.subr.mxu0 0.0
    %5396 = vmatpush1.msra.mxu0 0.0
    %5397 = vmatprep.subr.mxu0 0.0
    %5398 = vmatpush1.msra.mxu0 0.0
    %5399 = vmatprep.subr.mxu0 0.0
    %5400 = vmatpush1.msra.mxu0 0.0
    %5401 = vmatprep.subr.mxu0 0.0
    %5402 = vmatpush1.msra.mxu0 0.0
    %5403 = vmatprep.mubr.f32.mxu0 0.0
    %5404 = vmatmul.mubr.f32.gmra.mrb[0].mxu0 %v5315
    %v5405 = vpop.f32.mrb[0].mxu0
    %v5406 = vadd.f32 %v5337, %v5405
    %v5407 = vpop.f32.mrb[0].mxu0
    %5408 = vdwg.mxu0
    %5409 = vst [vmem:[#allocation2] sm:$0x3] %v5406
    // Predicated region
    $region38: #{stock_model_lstm_forward.1} parent=1 // pred_check
      _
    $region39: #{stock_model_lstm_forward.1} parent=1 // pred_check_branch
      %5411 = sbr.rel (0) target = $region41
    $region40: #{stock_model_lstm_forward.1} parent=1 // pred_region
      %s5413 = ssub.s32 32, 32
      %5414 = vsyncadd [#allocation3], %s5413
      %s5416 = sshll.u32 [#allocation2], 4
      %s5417 = int_to_ptr.vmem [resolvable:$true] %s5416
      %5419 = dma.vmem_to_hbm [thread:$0]  %s5417, 32, %s9, [#allocation3]
    $region41: #{stock_model_lstm_forward.1} parent=1 // pred_fallthru
      _
    // Predicated region
    $region42: #{stock_model_lstm_forward.1} parent=1 // pred_check
      _
    $region43: #{stock_model_lstm_forward.1} parent=1 // pred_check_branch
      %5421 = sbr.rel (0) target = $region45
    $region44: #{stock_model_lstm_forward.1} parent=1 // pred_region
      %5422 = dma.done [#allocation3], 32
    $region45: #{stock_model_lstm_forward.1} parent=1 // pred_fallthru
      _
    %5423 = vsyncpa [#allocation3], 1

</llo_original>
